<compile_context>
chip_gen: v6e
topology: v6e:2x2x1
jax: 0.10.0
libtpu: 0.0.40
codegen_flags: <defaults>
</compile_context>

<pallas_src>
import functools
import math

import jax
import jax.numpy as jnp
from jax.experimental import pallas as pl
from jax.experimental.pallas import tpu as pltpu

LN_EPS = 1e-5
MASK_NEG = -1e6  # same fill value as masked_softmax in the PyTorch code


# ----------------------------- in-kernel helpers -----------------------------
def _layer_norm(y, gamma, beta):
    mu = jnp.mean(y, axis=-1, keepdims=True)
    var = jnp.mean(jnp.square(y - mu), axis=-1, keepdims=True)
    return (y - mu) * jax.lax.rsqrt(var + LN_EPS) * gamma + beta


def _mha(xq, xkv, mask, wq, wkv, wo, num_heads):
    """Multi-head attention for one batch element.
    xq: (Tq, D)  xkv: (Tk, D)  mask: (Tq, Tk) with 1.0 = attend, 0.0 = masked.
    wq: (D, D)   wkv: (D, 2D) fused [W_k | W_v]   wo: (D, D)
    """
    tq, d = xq.shape
    dh = d // num_heads
    scale = 1.0 / math.sqrt(dh)

    q = jnp.dot(xq, wq, preferred_element_type=jnp.float32)     # (Tq, D)
    kv = jnp.dot(xkv, wkv, preferred_element_type=jnp.float32)  # (Tk, 2D)

    out = jnp.zeros((tq, d), jnp.float32)
    for h in range(num_heads):                      # static unroll, small H
        qh = q[:, h * dh:(h + 1) * dh]              # (Tq, dh)
        kh = kv[:, h * dh:(h + 1) * dh]             # (Tk, dh)
        vh = kv[:, d + h * dh:d + (h + 1) * dh]     # (Tk, dh)
        # scores = qh @ kh^T / sqrt(dh)
        s = jax.lax.dot_general(qh, kh, (((1,), (1,)), ((), ())),
                                preferred_element_type=jnp.float32) * scale
        s = jnp.where(mask > 0.5, s, MASK_NEG)
        p = jax.nn.softmax(s, axis=-1)
        ctx_h = jnp.dot(p, vh, preferred_element_type=jnp.float32)   # (Tq, dh)
        # head h of concat(ctx) @ W_o  ==  ctx_h @ W_o[h*dh:(h+1)*dh, :]
        out = out + jnp.dot(ctx_h, wo[h * dh:(h + 1) * dh, :],
                            preferred_element_type=jnp.float32)
    return out


# ------------------------------ fused decoder -------------------------------
def decoder_stack_kernel(num_heads,
                         x_ref, enc_ref, cmask_ref, emask_ref,
                         wq1_ref, wkv1_ref, wo1_ref, g1_ref, b1_ref,
                         wq2_ref, wkv2_ref, wo2_ref, g2_ref, b2_ref,
                         wf1_ref, bf1_ref, wf2_ref, bf2_ref, g3_ref, b3_ref,
                         out_ref, kvstate_ref,
                         act_ref):
    """grid = (batch, layer).  act_ref (VMEM) carries the activation across layers."""
    l = pl.program_id(1)

    @pl.when(l == 0)
    def _():
        act_ref[...] = x_ref[0]          # positional-encoded embedding

    x = act_ref[...]                     # (T, D): input of block l
    # state[2][l]: with a fresh decoding state, key_values == the block input.
    kvstate_ref[...] = x[None, None, :, :]

    # --- masked self-attention + AddNorm ---
    x2 = _mha(x, x, cmask_ref[0], wq1_ref[0], wkv1_ref[0], wo1_ref[0], num_heads)
    y = _layer_norm(x + x2, g1_ref[0], b1_ref[0])

    # --- encoder-decoder cross-attention + AddNorm ---
    y2 = _mha(y, enc_ref[0], emask_ref[0], wq2_ref[0], wkv2_ref[0], wo2_ref[0],
              num_heads)
    z = _layer_norm(y + y2, g2_ref[0], b2_ref[0])

    # --- position-wise FFN + AddNorm ---
    h = jax.nn.relu(jnp.dot(z, wf1_ref[0], preferred_element_type=jnp.float32)
                    + bf1_ref[0])
    f = jnp.dot(h, wf2_ref[0], preferred_element_type=jnp.float32) + bf2_ref[0]
    out = _layer_norm(z + f, g3_ref[0], b3_ref[0])

    act_ref[...] = out
    out_ref[0] = out                     # resident across l; one HBM writeback / batch


def dense_kernel(x_ref, w_ref, b_ref, o_ref):
    o_ref[...] = (jnp.dot(x_ref[...], w_ref[...],
                          preferred_element_type=jnp.float32) + b_ref[...])


def dense_pallas(x2d, w, b):
    m, d = x2d.shape
    v = w.shape[1]
    return pl.pallas_call(
        dense_kernel,
        grid=(1,),
        in_specs=[pl.BlockSpec((m, d), lambda i: (0, 0)),
                  pl.BlockSpec((d, v), lambda i: (0, 0)),
                  pl.BlockSpec((1, v), lambda i: (0, 0))],
        out_specs=pl.BlockSpec((m, v), lambda i: (0, 0)),
        out_shape=jax.ShapeDtypeStruct((m, v), jnp.float32),
    )(x2d, w, b)


# ------------------------------ model wrapper --------------------------------
def positional_encoding(max_len, num_hiddens):
    pos = jnp.arange(max_len, dtype=jnp.float32)[:, None]
    div = jnp.power(10000.0,
                    jnp.arange(0, num_hiddens, 2, dtype=jnp.float32) / num_hiddens)
    ang = pos / div
    p = jnp.zeros((max_len, num_hiddens), jnp.float32)
    p = p.at[:, 0::2].set(jnp.sin(ang))
    p = p.at[:, 1::2].set(jnp.cos(ang))
    return p[None]                                   # (1, max_len, D)


def build_masks(batch, t, s, enc_valid_lens):
    """1.0 = attend, 0.0 = masked (matches masked_softmax's -1e6 fill)."""
    causal = (jnp.arange(t)[None, :] <= jnp.arange(t)[:, None])
    causal = causal.astype(jnp.float32)[None]        # (1, T, T)
    if enc_valid_lens is None:
        emask = jnp.ones((batch, t, s), jnp.float32)
    else:
        emask = (jnp.arange(s)[None, None, :]
                 < enc_valid_lens[:, None, None]).astype(jnp.float32)
        emask = jnp.broadcast_to(emask, (batch, t, s))
    return causal, emask


def transformer_decoder_forward(tokens, enc_outputs, enc_valid_lens, params,
                                num_heads):
    emb = params["embedding"]
    vocab, d = emb.shape
    batch, t = tokens.shape
    s = enc_outputs.shape[1]
    num_layers = params["wq1"].shape[0]
    fh = params["wf1"].shape[2]

    # Embedding gather * sqrt(D) + positional encoding (plain-JAX glue).
    x = jnp.take(emb, tokens, axis=0) * math.sqrt(d) + params["pos"][:, :t, :]
    x = x.astype(jnp.float32)

    causal, emask = build_masks(batch, t, s, enc_valid_lens)

    def bmap(bs):      # per-batch data, constant over the layer axis
        return pl.BlockSpec(bs, lambda b, l: (b, 0, 0))

    def lmap(bs):      # per-layer weights (stacked along a leading L axis)
        return pl.BlockSpec(bs, lambda b, l: (l, 0, 0))

    in_specs = [
        bmap((1, t, d)),                                       # x
        bmap((1, s, d)),                                       # enc_outputs
        pl.BlockSpec((1, t, t), lambda b, l: (0, 0, 0)),       # causal mask
        bmap((1, t, s)),                                       # encoder valid-len mask
        lmap((1, d, d)), lmap((1, d, 2 * d)), lmap((1, d, d)), # Wq1, Wkv1, Wo1
        lmap((1, 1, d)), lmap((1, 1, d)),                      # ln1 gamma, beta
        lmap((1, d, d)), lmap((1, d, 2 * d)), lmap((1, d, d)), # Wq2, Wkv2, Wo2
        lmap((1, 1, d)), lmap((1, 1, d)),                      # ln2 gamma, beta
        lmap((1, d, fh)), lmap((1, 1, fh)),                    # Wffn1, bffn1
        lmap((1, fh, d)), lmap((1, 1, d)),                     # Wffn2, bffn2
        lmap((1, 1, d)), lmap((1, 1, d)),                      # ln3 gamma, beta
    ]
    out_specs = [
        pl.BlockSpec((1, t, d), lambda b, l: (b, 0, 0)),       # final activations
        pl.BlockSpec((1, 1, t, d), lambda b, l: (b, l, 0, 0)), # per-layer key_values
    ]
    out_shape = [
        jax.ShapeDtypeStruct((batch, t, d), jnp.float32),
        jax.ShapeDtypeStruct((batch, num_layers, t, d), jnp.float32),
    ]

    dec_out, kv_state = pl.pallas_call(
        functools.partial(decoder_stack_kernel, num_heads),
        grid=(batch, num_layers),
        in_specs=in_specs,
        out_specs=out_specs,
        out_shape=out_shape,
        scratch_shapes=[pltpu.VMEM((t, d), jnp.float32)],
        compiler_params=pltpu.CompilerParams(
            dimension_semantics=("parallel", "arbitrary")),
    )(x, enc_outputs, causal, emask,
      params["wq1"], params["wkv1"], params["wo1"], params["g1"], params["b1"],
      params["wq2"], params["wkv2"], params["wo2"], params["g2"], params["b2"],
      params["wf1"], params["bf1"], params["wf2"], params["bf2"],
      params["g3"], params["b3"])

    logits = dense_pallas(dec_out.reshape(batch * t, d),
                          params["wd"], params["bd"]).reshape(batch, t, vocab)

    state = [enc_outputs, enc_valid_lens,
             [kv_state[:, i] for i in range(num_layers)]]
    return logits, state


# -------------------------- parameter construction ---------------------------
def init_params(key, vocab_size, num_hiddens, ffn_num_hiddens, num_layers,
                max_len=1000):
    d, fh, nl = num_hiddens, ffn_num_hiddens, num_layers
    ks = iter(jax.random.split(key, 19))

    def rnd(shape, scale=0.05):
        return scale * jax.random.normal(next(ks), shape, jnp.float32)

    return {
        "embedding": rnd((vocab_size, d), 0.1),
        "pos": positional_encoding(max_len, d),
        "wq1": rnd((nl, d, d)), "wkv1": rnd((nl, d, 2 * d)), "wo1": rnd((nl, d, d)),
        "g1": 1.0 + rnd((nl, 1, d)), "b1": rnd((nl, 1, d)),
        "wq2": rnd((nl, d, d)), "wkv2": rnd((nl, d, 2 * d)), "wo2": rnd((nl, d, d)),
        "g2": 1.0 + rnd((nl, 1, d)), "b2": rnd((nl, 1, d)),
        "wf1": rnd((nl, d, fh)), "bf1": rnd((nl, 1, fh)),
        "wf2": rnd((nl, fh, d)), "bf2": rnd((nl, 1, d)),
        "g3": 1.0 + rnd((nl, 1, d)), "b3": rnd((nl, 1, d)),
        "wd": rnd((d, vocab_size)), "bd": rnd((1, vocab_size)),
    }


# ------------------------------ pure-JAX ref ----------------------------------
def _ref_ln(y, g, b):
    mu = y.mean(-1, keepdims=True)
    var = ((y - mu) ** 2).mean(-1, keepdims=True)
    return (y - mu) / jnp.sqrt(var + LN_EPS) * g + b


def _ref_mha(q_in, kv_in, mask, wq, wkv, wo, num_heads):
    b, tq, d = q_in.shape
    dh = d // num_heads
    q = q_in @ wq
    k = kv_in @ wkv[:, :d]
    v = kv_in @ wkv[:, d:]

    def split(a):
        return a.reshape(b, -1, num_heads, dh).transpose(0, 2, 1, 3)

    qh, kh, vh = split(q), split(k), split(v)
    s = jnp.einsum("bhqd,bhkd->bhqk", qh, kh) / math.sqrt(dh)
    s = jnp.where(mask[:, None, :, :] > 0.5, s, MASK_NEG)
    p = jax.nn.softmax(s, axis=-1)
    ctx = jnp.einsum("bhqk,bhkd->bhqd", p, vh)
    ctx = ctx.transpose(0, 2, 1, 3).reshape(b, tq, d)
    return ctx @ wo


def ref_forward(tokens, enc_outputs, enc_valid_lens, params, num_heads):
    emb = params["embedding"]
    vocab, d = emb.shape
    batch, t = tokens.shape
    s = enc_outputs.shape[1]
    num_layers = params["wq1"].shape[0]

    x = jnp.take(emb, tokens, axis=0) * math.sqrt(d) + params["pos"][:, :t, :]
    causal, emask = build_masks(batch, t, s, enc_valid_lens)

    kv_states = []
    for l in range(num_layers):
        kv_states.append(x)
        x2 = _ref_mha(x, x, jnp.broadcast_to(causal, (batch, t, t)),
                      params["wq1"][l], params["wkv1"][l], params["wo1"][l],
                      num_heads)
        y = _ref_ln(x + x2, params["g1"][l], params["b1"][l])
        y2 = _ref_mha(y, enc_outputs, emask,
                      params["wq2"][l], params["wkv2"][l], params["wo2"][l],
                      num_heads)
        z = _ref_ln(y + y2, params["g2"][l], params["b2"][l])
        h = jax.nn.relu(z @ params["wf1"][l] + params["bf1"][l])
        f = h @ params["wf2"][l] + params["bf2"][l]
        x = _ref_ln(z + f, params["g3"][l], params["b3"][l])
    logits = x @ params["wd"] + params["bd"]
    return logits, kv_states


# ---------------------------------- main --------------------------------------
if __name__ == "__main__":
    vocab_size = 128        # lane-dense vocab projection
    num_hiddens = 128       # lane-dense model dim
    ffn_num_hiddens = 256
    num_heads = 4
    num_layers = 2
    batch, seq_len, enc_len = 2, 8, 8
    # dropout == 0.0 -> deterministic forward (AddNorm/attention dropout = identity)

    key = jax.random.PRNGKey(0)
    k_tok, k_enc, k_par = jax.random.split(key, 3)
    tokens = jax.random.randint(k_tok, (batch, seq_len), 0, vocab_size, jnp.int32)
    enc_outputs = jax.random.normal(k_enc, (batch, enc_len, num_hiddens),
                                    jnp.float32)
    enc_valid_lens = jnp.array([enc_len, enc_len - 3], jnp.int32)

    params = init_params(k_par, vocab_size, num_hiddens, ffn_num_hiddens,
                         num_layers)

    logits, state = transformer_decoder_forward(
        tokens, enc_outputs, enc_valid_lens, params, num_heads)
    logits = jax.block_until_ready(logits)

    assert logits.shape == (batch, seq_len, vocab_size)
    assert len(state[2]) == num_layers
    assert state[2][0].shape == (batch, seq_len, num_hiddens)

    # correctness check against a pure-JAX reference
    ref_logits, ref_kv = ref_forward(tokens, enc_outputs, enc_valid_lens,
                                     params, num_heads)
    assert jnp.allclose(logits, ref_logits, atol=2e-3, rtol=2e-3), \
        float(jnp.max(jnp.abs(logits - ref_logits)))
    for l in range(num_layers):
        assert jnp.allclose(state[2][l], ref_kv[l], atol=2e-3, rtol=2e-3)

    # TODO(synk): per-layer attention_weights bookkeeping (module attribute, not a
    # forward output) is not materialized.

    print("KERNEL_OK")
</pallas_src>

<mosaic_0001>
module attributes {stable_mosaic.version = 11 : i64} {
  func.func @decoder_stack_kernel(%arg0: i32, %arg1: i32, %arg2: memref<1x8x128xf32, #tpu.memory_space<vmem>>, %arg3: memref<1x8x128xf32, #tpu.memory_space<vmem>>, %arg4: memref<1x8x8xf32, #tpu.memory_space<vmem>>, %arg5: memref<1x8x8xf32, #tpu.memory_space<vmem>>, %arg6: memref<1x128x128xf32, #tpu.memory_space<vmem>>, %arg7: memref<1x128x256xf32, #tpu.memory_space<vmem>>, %arg8: memref<1x128x128xf32, #tpu.memory_space<vmem>>, %arg9: memref<1x1x128xf32, #tpu.memory_space<vmem>>, %arg10: memref<1x1x128xf32, #tpu.memory_space<vmem>>, %arg11: memref<1x128x128xf32, #tpu.memory_space<vmem>>, %arg12: memref<1x128x256xf32, #tpu.memory_space<vmem>>, %arg13: memref<1x128x128xf32, #tpu.memory_space<vmem>>, %arg14: memref<1x1x128xf32, #tpu.memory_space<vmem>>, %arg15: memref<1x1x128xf32, #tpu.memory_space<vmem>>, %arg16: memref<1x128x256xf32, #tpu.memory_space<vmem>>, %arg17: memref<1x1x256xf32, #tpu.memory_space<vmem>>, %arg18: memref<1x256x128xf32, #tpu.memory_space<vmem>>, %arg19: memref<1x1x128xf32, #tpu.memory_space<vmem>>, %arg20: memref<1x1x128xf32, #tpu.memory_space<vmem>>, %arg21: memref<1x1x128xf32, #tpu.memory_space<vmem>>, %arg22: memref<1x8x128xf32, #tpu.memory_space<vmem>>, %arg23: memref<1x1x8x128xf32, #tpu.memory_space<vmem>>, %arg24: memref<8x128xf32, #tpu.memory_space<vmem>>) attributes {dimension_semantics = [#tpu.dimension_semantics<parallel>, #tpu.dimension_semantics<arbitrary>], iteration_bounds = array<i64: 2, 2>, scalar_prefetch = 0 : i64, scratch_operands = 1 : i64, tpu.core_type = #tpu.core_type<tc>, window_params = [{transform_indices = @transform_0, window_bounds = array<i64: 1, 8, 128>}, {transform_indices = @transform_1, window_bounds = array<i64: 1, 8, 128>}, {pipeline_mode = #tpu.pipeline_mode<synchronous>, transform_indices = @transform_2, window_bounds = array<i64: 1, 8, 8>}, {transform_indices = @transform_3, window_bounds = array<i64: 1, 8, 8>}, {transform_indices = @transform_4, window_bounds = array<i64: 1, 128, 128>}, {transform_indices = @transform_5, window_bounds = array<i64: 1, 128, 256>}, {transform_indices = @transform_6, window_bounds = array<i64: 1, 128, 128>}, {transform_indices = @transform_7, window_bounds = array<i64: 1, 1, 128>}, {transform_indices = @transform_8, window_bounds = array<i64: 1, 1, 128>}, {transform_indices = @transform_9, window_bounds = array<i64: 1, 128, 128>}, {transform_indices = @transform_10, window_bounds = array<i64: 1, 128, 256>}, {transform_indices = @transform_11, window_bounds = array<i64: 1, 128, 128>}, {transform_indices = @transform_12, window_bounds = array<i64: 1, 1, 128>}, {transform_indices = @transform_13, window_bounds = array<i64: 1, 1, 128>}, {transform_indices = @transform_14, window_bounds = array<i64: 1, 128, 256>}, {transform_indices = @transform_15, window_bounds = array<i64: 1, 1, 256>}, {transform_indices = @transform_16, window_bounds = array<i64: 1, 256, 128>}, {transform_indices = @transform_17, window_bounds = array<i64: 1, 1, 128>}, {transform_indices = @transform_18, window_bounds = array<i64: 1, 1, 128>}, {transform_indices = @transform_19, window_bounds = array<i64: 1, 1, 128>}, {transform_indices = @transform_20, window_bounds = array<i64: 1, 8, 128>}, {transform_indices = @transform_21, window_bounds = array<i64: 1, 1, 8, 128>}]} {
    %c0_i32 = arith.constant 0 : i32
    %0 = arith.cmpi eq, %arg1, %c0_i32 : i32
    %1 = arith.extui %0 : i1 to i32
    %c0_i32_0 = arith.constant 0 : i32
    %2 = arith.cmpi ne, %1, %c0_i32_0 : i32
    scf.if %2 {
      %c0_163 = arith.constant 0 : index
      %c0_164 = arith.constant 0 : index
      %c0_165 = arith.constant 0 : index
      %331 = vector.load %arg2[%c0_163, %c0_164, %c0_165] : memref<1x8x128xf32, #tpu.memory_space<vmem>>, vector<1x8x128xf32>
      %332 = vector.shape_cast %331 : vector<1x8x128xf32> to vector<8x128xf32>
      %c0_166 = arith.constant 0 : index
      %c0_167 = arith.constant 0 : index
      %333 = vector.load %arg24[%c0_166, %c0_167] : memref<8x128xf32, #tpu.memory_space<vmem>>, vector<8x128xf32>
      tpu.vector_store %arg24[%c0_166, %c0_167], %332 {strides = array<i32>} : memref<8x128xf32, #tpu.memory_space<vmem>>, vector<8x128xf32>,
    } else {
    }
    %c0 = arith.constant 0 : index
    %c0_1 = arith.constant 0 : index
    %3 = vector.load %arg24[%c0, %c0_1] : memref<8x128xf32, #tpu.memory_space<vmem>>, vector<8x128xf32>
    %4 = vector.shape_cast %3 : vector<8x128xf32> to vector<1x1x8x128xf32>
    %c0_2 = arith.constant 0 : index
    %c0_3 = arith.constant 0 : index
    %c0_4 = arith.constant 0 : index
    %c0_5 = arith.constant 0 : index
    %5 = vector.load %arg23[%c0_2, %c0_3, %c0_4, %c0_5] : memref<1x1x8x128xf32, #tpu.memory_space<vmem>>, vector<1x1x8x128xf32>
    tpu.vector_store %arg23[%c0_2, %c0_3, %c0_4, %c0_5], %4 {strides = array<i32>} : memref<1x1x8x128xf32, #tpu.memory_space<vmem>>, vector<1x1x8x128xf32>,
    %c0_6 = arith.constant 0 : index
    %c0_7 = arith.constant 0 : index
    %c0_8 = arith.constant 0 : index
    %6 = vector.load %arg4[%c0_6, %c0_7, %c0_8] : memref<1x8x8xf32, #tpu.memory_space<vmem>>, vector<1x8x8xf32>
    %7 = vector.shape_cast %6 : vector<1x8x8xf32> to vector<8x8xf32>
    %c0_9 = arith.constant 0 : index
    %c0_10 = arith.constant 0 : index
    %c0_11 = arith.constant 0 : index
    %8 = vector.load %arg6[%c0_9, %c0_10, %c0_11] : memref<1x128x128xf32, #tpu.memory_space<vmem>>, vector<1x128x128xf32>
    %9 = vector.shape_cast %8 : vector<1x128x128xf32> to vector<128x128xf32>
    %c0_12 = arith.constant 0 : index
    %c0_13 = arith.constant 0 : index
    %c0_14 = arith.constant 0 : index
    %10 = vector.load %arg7[%c0_12, %c0_13, %c0_14] : memref<1x128x256xf32, #tpu.memory_space<vmem>>, vector<1x128x256xf32>
    %11 = vector.shape_cast %10 : vector<1x128x256xf32> to vector<128x256xf32>
    %c0_15 = arith.constant 0 : index
    %c0_16 = arith.constant 0 : index
    %c0_17 = arith.constant 0 : index
    %12 = vector.load %arg8[%c0_15, %c0_16, %c0_17] : memref<1x128x128xf32, #tpu.memory_space<vmem>>, vector<1x128x128xf32>
    %13 = vector.shape_cast %12 : vector<1x128x128xf32> to vector<128x128xf32>
    %cst = arith.constant dense<0.000000e+00> : vector<8x128xf32>
    %14 = tpu.matmul %3, %9, %cst {dimension_numbers = #tpu.dot_dimension_numbers<[1], [0], [0], [1], [0, 0, 1, 1], [], []>} : vector<8x128xf32>, vector<128x128xf32>, vector<8x128xf32> -> vector<8x128xf32>
    %cst_18 = arith.constant dense<0.000000e+00> : vector<8x256xf32>
    %15 = tpu.matmul %3, %11, %cst_18 {dimension_numbers = #tpu.dot_dimension_numbers<[1], [0], [0], [1], [0, 0, 1, 1], [], []>} : vector<8x128xf32>, vector<128x256xf32>, vector<8x256xf32> -> vector<8x256xf32>
    %cst_19 = arith.constant 0.000000e+00 : f32
    %16 = vector.broadcast %cst_19 : f32 to vector<8x128xf32>
    %17 = vector.extract_strided_slice %14 {offsets = [0, 0], sizes = [8, 32], strides = [1, 1]} : vector<8x128xf32> to vector<8x32xf32>
    %18 = vector.extract_strided_slice %15 {offsets = [0, 0], sizes = [8, 32], strides = [1, 1]} : vector<8x256xf32> to vector<8x32xf32>
    %19 = vector.extract_strided_slice %15 {offsets = [0, 128], sizes = [8, 32], strides = [1, 1]} : vector<8x256xf32> to vector<8x32xf32>
    %cst_20 = arith.constant dense<0.000000e+00> : vector<8x8xf32>
    %20 = tpu.matmul %17, %18, %cst_20 {dimension_numbers = #tpu.dot_dimension_numbers<[1], [1], [0], [0], [0, 0, 1, 0], [], []>} : vector<8x32xf32>, vector<8x32xf32>, vector<8x8xf32> -> vector<8x8xf32>
    %cst_21 = arith.constant 0.176776692 : f32
    %21 = vector.broadcast %cst_21 : f32 to vector<8x8xf32>
    %22 = arith.mulf %20, %21 : vector<8x8xf32>
    %cst_22 = arith.constant 5.000000e-01 : f32
    %23 = vector.broadcast %cst_22 : f32 to vector<8x8xf32>
    %24 = arith.cmpf ogt, %7, %23 : vector<8x8xf32>
    %cst_23 = arith.constant -1.000000e+06 : f32
    %25 = vector.broadcast %cst_23 : f32 to vector<8x8xf32>
    %26 = arith.select %24, %22, %25 : vector<8x8xi1>, vector<8x8xf32>
    %cst_24 = arith.constant dense<0xFF800000> : vector<8xf32>
    %27 = vector.multi_reduction <maximumf>, %26, %cst_24 [1] : vector<8x8xf32> to vector<8xf32>
    %cst_25 = arith.constant 0xFF800000 : f32
    %28 = vector.broadcast %cst_25 : f32 to vector<8xf32>
    %29 = arith.maximumf %28, %27 : vector<8xf32>
    %30 = vector.shape_cast %29 : vector<8xf32> to vector<8x1xf32>
    %31 = vector.broadcast %30 : vector<8x1xf32> to vector<8x8xf32>
    %32 = arith.subf %26, %31 : vector<8x8xf32>
    %33 = math.exp %32 : vector<8x8xf32>
    %cst_26 = arith.constant dense<0.000000e+00> : vector<8xf32>
    %34 = vector.multi_reduction <add>, %33, %cst_26 [1] : vector<8x8xf32> to vector<8xf32>
    %35 = vector.shape_cast %34 : vector<8xf32> to vector<8x1xf32>
    %36 = vector.broadcast %35 : vector<8x1xf32> to vector<8x8xf32>
    %37 = arith.divf %33, %36 : vector<8x8xf32>
    %cst_27 = arith.constant dense<0.000000e+00> : vector<8x32xf32>
    %38 = tpu.matmul %37, %19, %cst_27 {dimension_numbers = #tpu.dot_dimension_numbers<[1], [0], [0], [1], [0, 0, 1, 1], [], []>} : vector<8x8xf32>, vector<8x32xf32>, vector<8x32xf32> -> vector<8x32xf32>
    %39 = vector.extract_strided_slice %13 {offsets = [0, 0], sizes = [32, 128], strides = [1, 1]} : vector<128x128xf32> to vector<32x128xf32>
    %cst_28 = arith.constant dense<0.000000e+00> : vector<8x128xf32>
    %40 = tpu.matmul %38, %39, %cst_28 {dimension_numbers = #tpu.dot_dimension_numbers<[1], [0], [0], [1], [0, 0, 1, 1], [], []>} : vector<8x32xf32>, vector<32x128xf32>, vector<8x128xf32> -> vector<8x128xf32>
    %41 = arith.addf %16, %40 : vector<8x128xf32>
    %42 = vector.extract_strided_slice %14 {offsets = [0, 32], sizes = [8, 32], strides = [1, 1]} : vector<8x128xf32> to vector<8x32xf32>
    %43 = vector.extract_strided_slice %15 {offsets = [0, 32], sizes = [8, 32], strides = [1, 1]} : vector<8x256xf32> to vector<8x32xf32>
    %44 = vector.extract_strided_slice %15 {offsets = [0, 160], sizes = [8, 32], strides = [1, 1]} : vector<8x256xf32> to vector<8x32xf32>
    %cst_29 = arith.constant dense<0.000000e+00> : vector<8x8xf32>
    %45 = tpu.matmul %42, %43, %cst_29 {dimension_numbers = #tpu.dot_dimension_numbers<[1], [1], [0], [0], [0, 0, 1, 0], [], []>} : vector<8x32xf32>, vector<8x32xf32>, vector<8x8xf32> -> vector<8x8xf32>
    %cst_30 = arith.constant 0.176776692 : f32
    %46 = vector.broadcast %cst_30 : f32 to vector<8x8xf32>
    %47 = arith.mulf %45, %46 : vector<8x8xf32>
    %cst_31 = arith.constant 5.000000e-01 : f32
    %48 = vector.broadcast %cst_31 : f32 to vector<8x8xf32>
    %49 = arith.cmpf ogt, %7, %48 : vector<8x8xf32>
    %cst_32 = arith.constant -1.000000e+06 : f32
    %50 = vector.broadcast %cst_32 : f32 to vector<8x8xf32>
    %51 = arith.select %49, %47, %50 : vector<8x8xi1>, vector<8x8xf32>
    %cst_33 = arith.constant dense<0xFF800000> : vector<8xf32>
    %52 = vector.multi_reduction <maximumf>, %51, %cst_33 [1] : vector<8x8xf32> to vector<8xf32>
    %cst_34 = arith.constant 0xFF800000 : f32
    %53 = vector.broadcast %cst_34 : f32 to vector<8xf32>
    %54 = arith.maximumf %53, %52 : vector<8xf32>
    %55 = vector.shape_cast %54 : vector<8xf32> to vector<8x1xf32>
    %56 = vector.broadcast %55 : vector<8x1xf32> to vector<8x8xf32>
    %57 = arith.subf %51, %56 : vector<8x8xf32>
    %58 = math.exp %57 : vector<8x8xf32>
    %cst_35 = arith.constant dense<0.000000e+00> : vector<8xf32>
    %59 = vector.multi_reduction <add>, %58, %cst_35 [1] : vector<8x8xf32> to vector<8xf32>
    %60 = vector.shape_cast %59 : vector<8xf32> to vector<8x1xf32>
    %61 = vector.broadcast %60 : vector<8x1xf32> to vector<8x8xf32>
    %62 = arith.divf %58, %61 : vector<8x8xf32>
    %cst_36 = arith.constant dense<0.000000e+00> : vector<8x32xf32>
    %63 = tpu.matmul %62, %44, %cst_36 {dimension_numbers = #tpu.dot_dimension_numbers<[1], [0], [0], [1], [0, 0, 1, 1], [], []>} : vector<8x8xf32>, vector<8x32xf32>, vector<8x32xf32> -> vector<8x32xf32>
    %64 = vector.extract_strided_slice %13 {offsets = [32, 0], sizes = [32, 128], strides = [1, 1]} : vector<128x128xf32> to vector<32x128xf32>
    %cst_37 = arith.constant dense<0.000000e+00> : vector<8x128xf32>
    %65 = tpu.matmul %63, %64, %cst_37 {dimension_numbers = #tpu.dot_dimension_numbers<[1], [0], [0], [1], [0, 0, 1, 1], [], []>} : vector<8x32xf32>, vector<32x128xf32>, vector<8x128xf32> -> vector<8x128xf32>
    %66 = arith.addf %41, %65 : vector<8x128xf32>
    %67 = vector.extract_strided_slice %14 {offsets = [0, 64], sizes = [8, 32], strides = [1, 1]} : vector<8x128xf32> to vector<8x32xf32>
    %68 = vector.extract_strided_slice %15 {offsets = [0, 64], sizes = [8, 32], strides = [1, 1]} : vector<8x256xf32> to vector<8x32xf32>
    %69 = vector.extract_strided_slice %15 {offsets = [0, 192], sizes = [8, 32], strides = [1, 1]} : vector<8x256xf32> to vector<8x32xf32>
    %cst_38 = arith.constant dense<0.000000e+00> : vector<8x8xf32>
    %70 = tpu.matmul %67, %68, %cst_38 {dimension_numbers = #tpu.dot_dimension_numbers<[1], [1], [0], [0], [0, 0, 1, 0], [], []>} : vector<8x32xf32>, vector<8x32xf32>, vector<8x8xf32> -> vector<8x8xf32>
    %cst_39 = arith.constant 0.176776692 : f32
    %71 = vector.broadcast %cst_39 : f32 to vector<8x8xf32>
    %72 = arith.mulf %70, %71 : vector<8x8xf32>
    %cst_40 = arith.constant 5.000000e-01 : f32
    %73 = vector.broadcast %cst_40 : f32 to vector<8x8xf32>
    %74 = arith.cmpf ogt, %7, %73 : vector<8x8xf32>
    %cst_41 = arith.constant -1.000000e+06 : f32
    %75 = vector.broadcast %cst_41 : f32 to vector<8x8xf32>
    %76 = arith.select %74, %72, %75 : vector<8x8xi1>, vector<8x8xf32>
    %cst_42 = arith.constant dense<0xFF800000> : vector<8xf32>
    %77 = vector.multi_reduction <maximumf>, %76, %cst_42 [1] : vector<8x8xf32> to vector<8xf32>
    %cst_43 = arith.constant 0xFF800000 : f32
    %78 = vector.broadcast %cst_43 : f32 to vector<8xf32>
    %79 = arith.maximumf %78, %77 : vector<8xf32>
    %80 = vector.shape_cast %79 : vector<8xf32> to vector<8x1xf32>
    %81 = vector.broadcast %80 : vector<8x1xf32> to vector<8x8xf32>
    %82 = arith.subf %76, %81 : vector<8x8xf32>
    %83 = math.exp %82 : vector<8x8xf32>
    %cst_44 = arith.constant dense<0.000000e+00> : vector<8xf32>
    %84 = vector.multi_reduction <add>, %83, %cst_44 [1] : vector<8x8xf32> to vector<8xf32>
    %85 = vector.shape_cast %84 : vector<8xf32> to vector<8x1xf32>
    %86 = vector.broadcast %85 : vector<8x1xf32> to vector<8x8xf32>
    %87 = arith.divf %83, %86 : vector<8x8xf32>
    %cst_45 = arith.constant dense<0.000000e+00> : vector<8x32xf32>
    %88 = tpu.matmul %87, %69, %cst_45 {dimension_numbers = #tpu.dot_dimension_numbers<[1], [0], [0], [1], [0, 0, 1, 1], [], []>} : vector<8x8xf32>, vector<8x32xf32>, vector<8x32xf32> -> vector<8x32xf32>
    %89 = vector.extract_strided_slice %13 {offsets = [64, 0], sizes = [32, 128], strides = [1, 1]} : vector<128x128xf32> to vector<32x128xf32>
    %cst_46 = arith.constant dense<0.000000e+00> : vector<8x128xf32>
    %90 = tpu.matmul %88, %89, %cst_46 {dimension_numbers = #tpu.dot_dimension_numbers<[1], [0], [0], [1], [0, 0, 1, 1], [], []>} : vector<8x32xf32>, vector<32x128xf32>, vector<8x128xf32> -> vector<8x128xf32>
    %91 = arith.addf %66, %90 : vector<8x128xf32>
    %92 = vector.extract_strided_slice %14 {offsets = [0, 96], sizes = [8, 32], strides = [1, 1]} : vector<8x128xf32> to vector<8x32xf32>
    %93 = vector.extract_strided_slice %15 {offsets = [0, 96], sizes = [8, 32], strides = [1, 1]} : vector<8x256xf32> to vector<8x32xf32>
    %94 = vector.extract_strided_slice %15 {offsets = [0, 224], sizes = [8, 32], strides = [1, 1]} : vector<8x256xf32> to vector<8x32xf32>
    %cst_47 = arith.constant dense<0.000000e+00> : vector<8x8xf32>
    %95 = tpu.matmul %92, %93, %cst_47 {dimension_numbers = #tpu.dot_dimension_numbers<[1], [1], [0], [0], [0, 0, 1, 0], [], []>} : vector<8x32xf32>, vector<8x32xf32>, vector<8x8xf32> -> vector<8x8xf32>
    %cst_48 = arith.constant 0.176776692 : f32
    %96 = vector.broadcast %cst_48 : f32 to vector<8x8xf32>
    %97 = arith.mulf %95, %96 : vector<8x8xf32>
    %cst_49 = arith.constant 5.000000e-01 : f32
    %98 = vector.broadcast %cst_49 : f32 to vector<8x8xf32>
    %99 = arith.cmpf ogt, %7, %98 : vector<8x8xf32>
    %cst_50 = arith.constant -1.000000e+06 : f32
    %100 = vector.broadcast %cst_50 : f32 to vector<8x8xf32>
    %101 = arith.select %99, %97, %100 : vector<8x8xi1>, vector<8x8xf32>
    %cst_51 = arith.constant dense<0xFF800000> : vector<8xf32>
    %102 = vector.multi_reduction <maximumf>, %101, %cst_51 [1] : vector<8x8xf32> to vector<8xf32>
    %cst_52 = arith.constant 0xFF800000 : f32
    %103 = vector.broadcast %cst_52 : f32 to vector<8xf32>
    %104 = arith.maximumf %103, %102 : vector<8xf32>
    %105 = vector.shape_cast %104 : vector<8xf32> to vector<8x1xf32>
    %106 = vector.broadcast %105 : vector<8x1xf32> to vector<8x8xf32>
    %107 = arith.subf %101, %106 : vector<8x8xf32>
    %108 = math.exp %107 : vector<8x8xf32>
    %cst_53 = arith.constant dense<0.000000e+00> : vector<8xf32>
    %109 = vector.multi_reduction <add>, %108, %cst_53 [1] : vector<8x8xf32> to vector<8xf32>
    %110 = vector.shape_cast %109 : vector<8xf32> to vector<8x1xf32>
    %111 = vector.broadcast %110 : vector<8x1xf32> to vector<8x8xf32>
    %112 = arith.divf %108, %111 : vector<8x8xf32>
    %cst_54 = arith.constant dense<0.000000e+00> : vector<8x32xf32>
    %113 = tpu.matmul %112, %94, %cst_54 {dimension_numbers = #tpu.dot_dimension_numbers<[1], [0], [0], [1], [0, 0, 1, 1], [], []>} : vector<8x8xf32>, vector<8x32xf32>, vector<8x32xf32> -> vector<8x32xf32>
    %114 = vector.extract_strided_slice %13 {offsets = [96, 0], sizes = [32, 128], strides = [1, 1]} : vector<128x128xf32> to vector<32x128xf32>
    %cst_55 = arith.constant dense<0.000000e+00> : vector<8x128xf32>
    %115 = tpu.matmul %113, %114, %cst_55 {dimension_numbers = #tpu.dot_dimension_numbers<[1], [0], [0], [1], [0, 0, 1, 1], [], []>} : vector<8x32xf32>, vector<32x128xf32>, vector<8x128xf32> -> vector<8x128xf32>
    %116 = arith.addf %91, %115 : vector<8x128xf32>
    %117 = arith.addf %3, %116 : vector<8x128xf32>
    %c0_56 = arith.constant 0 : index
    %c0_57 = arith.constant 0 : index
    %c0_58 = arith.constant 0 : index
    %118 = vector.load %arg9[%c0_56, %c0_57, %c0_58] : memref<1x1x128xf32, #tpu.memory_space<vmem>>, vector<1x1x128xf32>
    %119 = vector.shape_cast %118 : vector<1x1x128xf32> to vector<1x128xf32>
    %c0_59 = arith.constant 0 : index
    %c0_60 = arith.constant 0 : index
    %c0_61 = arith.constant 0 : index
    %120 = vector.load %arg10[%c0_59, %c0_60, %c0_61] : memref<1x1x128xf32, #tpu.memory_space<vmem>>, vector<1x1x128xf32>
    %121 = vector.shape_cast %120 : vector<1x1x128xf32> to vector<1x128xf32>
    %cst_62 = arith.constant dense<0.000000e+00> : vector<8xf32>
    %122 = vector.multi_reduction <add>, %117, %cst_62 [1] : vector<8x128xf32> to vector<8xf32>
    %123 = vector.shape_cast %122 : vector<8xf32> to vector<8x1xf32>
    %cst_63 = arith.constant 1.280000e+02 : f32
    %124 = vector.broadcast %cst_63 : f32 to vector<8x1xf32>
    %125 = arith.divf %123, %124 : vector<8x1xf32>
    %126 = vector.broadcast %125 : vector<8x1xf32> to vector<8x128xf32>
    %127 = arith.subf %117, %126 : vector<8x128xf32>
    %128 = arith.mulf %127, %127 : vector<8x128xf32>
    %cst_64 = arith.constant dense<0.000000e+00> : vector<8xf32>
    %129 = vector.multi_reduction <add>, %128, %cst_64 [1] : vector<8x128xf32> to vector<8xf32>
    %130 = vector.shape_cast %129 : vector<8xf32> to vector<8x1xf32>
    %cst_65 = arith.constant 1.280000e+02 : f32
    %131 = vector.broadcast %cst_65 : f32 to vector<8x1xf32>
    %132 = arith.divf %130, %131 : vector<8x1xf32>
    %133 = vector.broadcast %125 : vector<8x1xf32> to vector<8x128xf32>
    %134 = arith.subf %117, %133 : vector<8x128xf32>
    %cst_66 = arith.constant 9.99999974E-6 : f32
    %135 = vector.broadcast %cst_66 : f32 to vector<8x1xf32>
    %136 = arith.addf %132, %135 : vector<8x1xf32>
    %137 = math.rsqrt %136 : vector<8x1xf32>
    %138 = vector.broadcast %137 : vector<8x1xf32> to vector<8x128xf32>
    %139 = arith.mulf %134, %138 : vector<8x128xf32>
    %140 = vector.broadcast %119 : vector<1x128xf32> to vector<8x128xf32>
    %141 = arith.mulf %139, %140 : vector<8x128xf32>
    %142 = vector.broadcast %121 : vector<1x128xf32> to vector<8x128xf32>
    %143 = arith.addf %141, %142 : vector<8x128xf32>
    %c0_67 = arith.constant 0 : index
    %c0_68 = arith.constant 0 : index
    %c0_69 = arith.constant 0 : index
    %144 = vector.load %arg3[%c0_67, %c0_68, %c0_69] : memref<1x8x128xf32, #tpu.memory_space<vmem>>, vector<1x8x128xf32>
    %145 = vector.shape_cast %144 : vector<1x8x128xf32> to vector<8x128xf32>
    %c0_70 = arith.constant 0 : index
    %c0_71 = arith.constant 0 : index
    %c0_72 = arith.constant 0 : index
    %146 = vector.load %arg5[%c0_70, %c0_71, %c0_72] : memref<1x8x8xf32, #tpu.memory_space<vmem>>, vector<1x8x8xf32>
    %147 = vector.shape_cast %146 : vector<1x8x8xf32> to vector<8x8xf32>
    %c0_73 = arith.constant 0 : index
    %c0_74 = arith.constant 0 : index
    %c0_75 = arith.constant 0 : index
    %148 = vector.load %arg11[%c0_73, %c0_74, %c0_75] : memref<1x128x128xf32, #tpu.memory_space<vmem>>, vector<1x128x128xf32>
    %149 = vector.shape_cast %148 : vector<1x128x128xf32> to vector<128x128xf32>
    %c0_76 = arith.constant 0 : index
    %c0_77 = arith.constant 0 : index
    %c0_78 = arith.constant 0 : index
    %150 = vector.load %arg12[%c0_76, %c0_77, %c0_78] : memref<1x128x256xf32, #tpu.memory_space<vmem>>, vector<1x128x256xf32>
    %151 = vector.shape_cast %150 : vector<1x128x256xf32> to vector<128x256xf32>
    %c0_79 = arith.constant 0 : index
    %c0_80 = arith.constant 0 : index
    %c0_81 = arith.constant 0 : index
    %152 = vector.load %arg13[%c0_79, %c0_80, %c0_81] : memref<1x128x128xf32, #tpu.memory_space<vmem>>, vector<1x128x128xf32>
    %153 = vector.shape_cast %152 : vector<1x128x128xf32> to vector<128x128xf32>
    %cst_82 = arith.constant dense<0.000000e+00> : vector<8x128xf32>
    %154 = tpu.matmul %143, %149, %cst_82 {dimension_numbers = #tpu.dot_dimension_numbers<[1], [0], [0], [1], [0, 0, 1, 1], [], []>} : vector<8x128xf32>, vector<128x128xf32>, vector<8x128xf32> -> vector<8x128xf32>
    %cst_83 = arith.constant dense<0.000000e+00> : vector<8x256xf32>
    %155 = tpu.matmul %145, %151, %cst_83 {dimension_numbers = #tpu.dot_dimension_numbers<[1], [0], [0], [1], [0, 0, 1, 1], [], []>} : vector<8x128xf32>, vector<128x256xf32>, vector<8x256xf32> -> vector<8x256xf32>
    %cst_84 = arith.constant 0.000000e+00 : f32
    %156 = vector.broadcast %cst_84 : f32 to vector<8x128xf32>
    %157 = vector.extract_strided_slice %154 {offsets = [0, 0], sizes = [8, 32], strides = [1, 1]} : vector<8x128xf32> to vector<8x32xf32>
    %158 = vector.extract_strided_slice %155 {offsets = [0, 0], sizes = [8, 32], strides = [1, 1]} : vector<8x256xf32> to vector<8x32xf32>
    %159 = vector.extract_strided_slice %155 {offsets = [0, 128], sizes = [8, 32], strides = [1, 1]} : vector<8x256xf32> to vector<8x32xf32>
    %cst_85 = arith.constant dense<0.000000e+00> : vector<8x8xf32>
    %160 = tpu.matmul %157, %158, %cst_85 {dimension_numbers = #tpu.dot_dimension_numbers<[1], [1], [0], [0], [0, 0, 1, 0], [], []>} : vector<8x32xf32>, vector<8x32xf32>, vector<8x8xf32> -> vector<8x8xf32>
    %cst_86 = arith.constant 0.176776692 : f32
    %161 = vector.broadcast %cst_86 : f32 to vector<8x8xf32>
    %162 = arith.mulf %160, %161 : vector<8x8xf32>
    %cst_87 = arith.constant 5.000000e-01 : f32
    %163 = vector.broadcast %cst_87 : f32 to vector<8x8xf32>
    %164 = arith.cmpf ogt, %147, %163 : vector<8x8xf32>
    %cst_88 = arith.constant -1.000000e+06 : f32
    %165 = vector.broadcast %cst_88 : f32 to vector<8x8xf32>
    %166 = arith.select %164, %162, %165 : vector<8x8xi1>, vector<8x8xf32>
    %cst_89 = arith.constant dense<0xFF800000> : vector<8xf32>
    %167 = vector.multi_reduction <maximumf>, %166, %cst_89 [1] : vector<8x8xf32> to vector<8xf32>
    %cst_90 = arith.constant 0xFF800000 : f32
    %168 = vector.broadcast %cst_90 : f32 to vector<8xf32>
    %169 = arith.maximumf %168, %167 : vector<8xf32>
    %170 = vector.shape_cast %169 : vector<8xf32> to vector<8x1xf32>
    %171 = vector.broadcast %170 : vector<8x1xf32> to vector<8x8xf32>
    %172 = arith.subf %166, %171 : vector<8x8xf32>
    %173 = math.exp %172 : vector<8x8xf32>
    %cst_91 = arith.constant dense<0.000000e+00> : vector<8xf32>
    %174 = vector.multi_reduction <add>, %173, %cst_91 [1] : vector<8x8xf32> to vector<8xf32>
    %175 = vector.shape_cast %174 : vector<8xf32> to vector<8x1xf32>
    %176 = vector.broadcast %175 : vector<8x1xf32> to vector<8x8xf32>
    %177 = arith.divf %173, %176 : vector<8x8xf32>
    %cst_92 = arith.constant dense<0.000000e+00> : vector<8x32xf32>
    %178 = tpu.matmul %177, %159, %cst_92 {dimension_numbers = #tpu.dot_dimension_numbers<[1], [0], [0], [1], [0, 0, 1, 1], [], []>} : vector<8x8xf32>, vector<8x32xf32>, vector<8x32xf32> -> vector<8x32xf32>
    %179 = vector.extract_strided_slice %153 {offsets = [0, 0], sizes = [32, 128], strides = [1, 1]} : vector<128x128xf32> to vector<32x128xf32>
    %cst_93 = arith.constant dense<0.000000e+00> : vector<8x128xf32>
    %180 = tpu.matmul %178, %179, %cst_93 {dimension_numbers = #tpu.dot_dimension_numbers<[1], [0], [0], [1], [0, 0, 1, 1], [], []>} : vector<8x32xf32>, vector<32x128xf32>, vector<8x128xf32> -> vector<8x128xf32>
    %181 = arith.addf %156, %180 : vector<8x128xf32>
    %182 = vector.extract_strided_slice %154 {offsets = [0, 32], sizes = [8, 32], strides = [1, 1]} : vector<8x128xf32> to vector<8x32xf32>
    %183 = vector.extract_strided_slice %155 {offsets = [0, 32], sizes = [8, 32], strides = [1, 1]} : vector<8x256xf32> to vector<8x32xf32>
    %184 = vector.extract_strided_slice %155 {offsets = [0, 160], sizes = [8, 32], strides = [1, 1]} : vector<8x256xf32> to vector<8x32xf32>
    %cst_94 = arith.constant dense<0.000000e+00> : vector<8x8xf32>
    %185 = tpu.matmul %182, %183, %cst_94 {dimension_numbers = #tpu.dot_dimension_numbers<[1], [1], [0], [0], [0, 0, 1, 0], [], []>} : vector<8x32xf32>, vector<8x32xf32>, vector<8x8xf32> -> vector<8x8xf32>
    %cst_95 = arith.constant 0.176776692 : f32
    %186 = vector.broadcast %cst_95 : f32 to vector<8x8xf32>
    %187 = arith.mulf %185, %186 : vector<8x8xf32>
    %cst_96 = arith.constant 5.000000e-01 : f32
    %188 = vector.broadcast %cst_96 : f32 to vector<8x8xf32>
    %189 = arith.cmpf ogt, %147, %188 : vector<8x8xf32>
    %cst_97 = arith.constant -1.000000e+06 : f32
    %190 = vector.broadcast %cst_97 : f32 to vector<8x8xf32>
    %191 = arith.select %189, %187, %190 : vector<8x8xi1>, vector<8x8xf32>
    %cst_98 = arith.constant dense<0xFF800000> : vector<8xf32>
    %192 = vector.multi_reduction <maximumf>, %191, %cst_98 [1] : vector<8x8xf32> to vector<8xf32>
    %cst_99 = arith.constant 0xFF800000 : f32
    %193 = vector.broadcast %cst_99 : f32 to vector<8xf32>
    %194 = arith.maximumf %193, %192 : vector<8xf32>
    %195 = vector.shape_cast %194 : vector<8xf32> to vector<8x1xf32>
    %196 = vector.broadcast %195 : vector<8x1xf32> to vector<8x8xf32>
    %197 = arith.subf %191, %196 : vector<8x8xf32>
    %198 = math.exp %197 : vector<8x8xf32>
    %cst_100 = arith.constant dense<0.000000e+00> : vector<8xf32>
    %199 = vector.multi_reduction <add>, %198, %cst_100 [1] : vector<8x8xf32> to vector<8xf32>
    %200 = vector.shape_cast %199 : vector<8xf32> to vector<8x1xf32>
    %201 = vector.broadcast %200 : vector<8x1xf32> to vector<8x8xf32>
    %202 = arith.divf %198, %201 : vector<8x8xf32>
    %cst_101 = arith.constant dense<0.000000e+00> : vector<8x32xf32>
    %203 = tpu.matmul %202, %184, %cst_101 {dimension_numbers = #tpu.dot_dimension_numbers<[1], [0], [0], [1], [0, 0, 1, 1], [], []>} : vector<8x8xf32>, vector<8x32xf32>, vector<8x32xf32> -> vector<8x32xf32>
    %204 = vector.extract_strided_slice %153 {offsets = [32, 0], sizes = [32, 128], strides = [1, 1]} : vector<128x128xf32> to vector<32x128xf32>
    %cst_102 = arith.constant dense<0.000000e+00> : vector<8x128xf32>
    %205 = tpu.matmul %203, %204, %cst_102 {dimension_numbers = #tpu.dot_dimension_numbers<[1], [0], [0], [1], [0, 0, 1, 1], [], []>} : vector<8x32xf32>, vector<32x128xf32>, vector<8x128xf32> -> vector<8x128xf32>
    %206 = arith.addf %181, %205 : vector<8x128xf32>
    %207 = vector.extract_strided_slice %154 {offsets = [0, 64], sizes = [8, 32], strides = [1, 1]} : vector<8x128xf32> to vector<8x32xf32>
    %208 = vector.extract_strided_slice %155 {offsets = [0, 64], sizes = [8, 32], strides = [1, 1]} : vector<8x256xf32> to vector<8x32xf32>
    %209 = vector.extract_strided_slice %155 {offsets = [0, 192], sizes = [8, 32], strides = [1, 1]} : vector<8x256xf32> to vector<8x32xf32>
    %cst_103 = arith.constant dense<0.000000e+00> : vector<8x8xf32>
    %210 = tpu.matmul %207, %208, %cst_103 {dimension_numbers = #tpu.dot_dimension_numbers<[1], [1], [0], [0], [0, 0, 1, 0], [], []>} : vector<8x32xf32>, vector<8x32xf32>, vector<8x8xf32> -> vector<8x8xf32>
    %cst_104 = arith.constant 0.176776692 : f32
    %211 = vector.broadcast %cst_104 : f32 to vector<8x8xf32>
    %212 = arith.mulf %210, %211 : vector<8x8xf32>
    %cst_105 = arith.constant 5.000000e-01 : f32
    %213 = vector.broadcast %cst_105 : f32 to vector<8x8xf32>
    %214 = arith.cmpf ogt, %147, %213 : vector<8x8xf32>
    %cst_106 = arith.constant -1.000000e+06 : f32
    %215 = vector.broadcast %cst_106 : f32 to vector<8x8xf32>
    %216 = arith.select %214, %212, %215 : vector<8x8xi1>, vector<8x8xf32>
    %cst_107 = arith.constant dense<0xFF800000> : vector<8xf32>
    %217 = vector.multi_reduction <maximumf>, %216, %cst_107 [1] : vector<8x8xf32> to vector<8xf32>
    %cst_108 = arith.constant 0xFF800000 : f32
    %218 = vector.broadcast %cst_108 : f32 to vector<8xf32>
    %219 = arith.maximumf %218, %217 : vector<8xf32>
    %220 = vector.shape_cast %219 : vector<8xf32> to vector<8x1xf32>
    %221 = vector.broadcast %220 : vector<8x1xf32> to vector<8x8xf32>
    %222 = arith.subf %216, %221 : vector<8x8xf32>
    %223 = math.exp %222 : vector<8x8xf32>
    %cst_109 = arith.constant dense<0.000000e+00> : vector<8xf32>
    %224 = vector.multi_reduction <add>, %223, %cst_109 [1] : vector<8x8xf32> to vector<8xf32>
    %225 = vector.shape_cast %224 : vector<8xf32> to vector<8x1xf32>
    %226 = vector.broadcast %225 : vector<8x1xf32> to vector<8x8xf32>
    %227 = arith.divf %223, %226 : vector<8x8xf32>
    %cst_110 = arith.constant dense<0.000000e+00> : vector<8x32xf32>
    %228 = tpu.matmul %227, %209, %cst_110 {dimension_numbers = #tpu.dot_dimension_numbers<[1], [0], [0], [1], [0, 0, 1, 1], [], []>} : vector<8x8xf32>, vector<8x32xf32>, vector<8x32xf32> -> vector<8x32xf32>
    %229 = vector.extract_strided_slice %153 {offsets = [64, 0], sizes = [32, 128], strides = [1, 1]} : vector<128x128xf32> to vector<32x128xf32>
    %cst_111 = arith.constant dense<0.000000e+00> : vector<8x128xf32>
    %230 = tpu.matmul %228, %229, %cst_111 {dimension_numbers = #tpu.dot_dimension_numbers<[1], [0], [0], [1], [0, 0, 1, 1], [], []>} : vector<8x32xf32>, vector<32x128xf32>, vector<8x128xf32> -> vector<8x128xf32>
    %231 = arith.addf %206, %230 : vector<8x128xf32>
    %232 = vector.extract_strided_slice %154 {offsets = [0, 96], sizes = [8, 32], strides = [1, 1]} : vector<8x128xf32> to vector<8x32xf32>
    %233 = vector.extract_strided_slice %155 {offsets = [0, 96], sizes = [8, 32], strides = [1, 1]} : vector<8x256xf32> to vector<8x32xf32>
    %234 = vector.extract_strided_slice %155 {offsets = [0, 224], sizes = [8, 32], strides = [1, 1]} : vector<8x256xf32> to vector<8x32xf32>
    %cst_112 = arith.constant dense<0.000000e+00> : vector<8x8xf32>
    %235 = tpu.matmul %232, %233, %cst_112 {dimension_numbers = #tpu.dot_dimension_numbers<[1], [1], [0], [0], [0, 0, 1, 0], [], []>} : vector<8x32xf32>, vector<8x32xf32>, vector<8x8xf32> -> vector<8x8xf32>
    %cst_113 = arith.constant 0.176776692 : f32
    %236 = vector.broadcast %cst_113 : f32 to vector<8x8xf32>
    %237 = arith.mulf %235, %236 : vector<8x8xf32>
    %cst_114 = arith.constant 5.000000e-01 : f32
    %238 = vector.broadcast %cst_114 : f32 to vector<8x8xf32>
    %239 = arith.cmpf ogt, %147, %238 : vector<8x8xf32>
    %cst_115 = arith.constant -1.000000e+06 : f32
    %240 = vector.broadcast %cst_115 : f32 to vector<8x8xf32>
    %241 = arith.select %239, %237, %240 : vector<8x8xi1>, vector<8x8xf32>
    %cst_116 = arith.constant dense<0xFF800000> : vector<8xf32>
    %242 = vector.multi_reduction <maximumf>, %241, %cst_116 [1] : vector<8x8xf32> to vector<8xf32>
    %cst_117 = arith.constant 0xFF800000 : f32
    %243 = vector.broadcast %cst_117 : f32 to vector<8xf32>
    %244 = arith.maximumf %243, %242 : vector<8xf32>
    %245 = vector.shape_cast %244 : vector<8xf32> to vector<8x1xf32>
    %246 = vector.broadcast %245 : vector<8x1xf32> to vector<8x8xf32>
    %247 = arith.subf %241, %246 : vector<8x8xf32>
    %248 = math.exp %247 : vector<8x8xf32>
    %cst_118 = arith.constant dense<0.000000e+00> : vector<8xf32>
    %249 = vector.multi_reduction <add>, %248, %cst_118 [1] : vector<8x8xf32> to vector<8xf32>
    %250 = vector.shape_cast %249 : vector<8xf32> to vector<8x1xf32>
    %251 = vector.broadcast %250 : vector<8x1xf32> to vector<8x8xf32>
    %252 = arith.divf %248, %251 : vector<8x8xf32>
    %cst_119 = arith.constant dense<0.000000e+00> : vector<8x32xf32>
    %253 = tpu.matmul %252, %234, %cst_119 {dimension_numbers = #tpu.dot_dimension_numbers<[1], [0], [0], [1], [0, 0, 1, 1], [], []>} : vector<8x8xf32>, vector<8x32xf32>, vector<8x32xf32> -> vector<8x32xf32>
    %254 = vector.extract_strided_slice %153 {offsets = [96, 0], sizes = [32, 128], strides = [1, 1]} : vector<128x128xf32> to vector<32x128xf32>
    %cst_120 = arith.constant dense<0.000000e+00> : vector<8x128xf32>
    %255 = tpu.matmul %253, %254, %cst_120 {dimension_numbers = #tpu.dot_dimension_numbers<[1], [0], [0], [1], [0, 0, 1, 1], [], []>} : vector<8x32xf32>, vector<32x128xf32>, vector<8x128xf32> -> vector<8x128xf32>
    %256 = arith.addf %231, %255 : vector<8x128xf32>
    %257 = arith.addf %143, %256 : vector<8x128xf32>
    %c0_121 = arith.constant 0 : index
    %c0_122 = arith.constant 0 : index
    %c0_123 = arith.constant 0 : index
    %258 = vector.load %arg14[%c0_121, %c0_122, %c0_123] : memref<1x1x128xf32, #tpu.memory_space<vmem>>, vector<1x1x128xf32>
    %259 = vector.shape_cast %258 : vector<1x1x128xf32> to vector<1x128xf32>
    %c0_124 = arith.constant 0 : index
    %c0_125 = arith.constant 0 : index
    %c0_126 = arith.constant 0 : index
    %260 = vector.load %arg15[%c0_124, %c0_125, %c0_126] : memref<1x1x128xf32, #tpu.memory_space<vmem>>, vector<1x1x128xf32>
    %261 = vector.shape_cast %260 : vector<1x1x128xf32> to vector<1x128xf32>
    %cst_127 = arith.constant dense<0.000000e+00> : vector<8xf32>
    %262 = vector.multi_reduction <add>, %257, %cst_127 [1] : vector<8x128xf32> to vector<8xf32>
    %263 = vector.shape_cast %262 : vector<8xf32> to vector<8x1xf32>
    %cst_128 = arith.constant 1.280000e+02 : f32
    %264 = vector.broadcast %cst_128 : f32 to vector<8x1xf32>
    %265 = arith.divf %263, %264 : vector<8x1xf32>
    %266 = vector.broadcast %265 : vector<8x1xf32> to vector<8x128xf32>
    %267 = arith.subf %257, %266 : vector<8x128xf32>
    %268 = arith.mulf %267, %267 : vector<8x128xf32>
    %cst_129 = arith.constant dense<0.000000e+00> : vector<8xf32>
    %269 = vector.multi_reduction <add>, %268, %cst_129 [1] : vector<8x128xf32> to vector<8xf32>
    %270 = vector.shape_cast %269 : vector<8xf32> to vector<8x1xf32>
    %cst_130 = arith.constant 1.280000e+02 : f32
    %271 = vector.broadcast %cst_130 : f32 to vector<8x1xf32>
    %272 = arith.divf %270, %271 : vector<8x1xf32>
    %273 = vector.broadcast %265 : vector<8x1xf32> to vector<8x128xf32>
    %274 = arith.subf %257, %273 : vector<8x128xf32>
    %cst_131 = arith.constant 9.99999974E-6 : f32
    %275 = vector.broadcast %cst_131 : f32 to vector<8x1xf32>
    %276 = arith.addf %272, %275 : vector<8x1xf32>
    %277 = math.rsqrt %276 : vector<8x1xf32>
    %278 = vector.broadcast %277 : vector<8x1xf32> to vector<8x128xf32>
    %279 = arith.mulf %274, %278 : vector<8x128xf32>
    %280 = vector.broadcast %259 : vector<1x128xf32> to vector<8x128xf32>
    %281 = arith.mulf %279, %280 : vector<8x128xf32>
    %282 = vector.broadcast %261 : vector<1x128xf32> to vector<8x128xf32>
    %283 = arith.addf %281, %282 : vector<8x128xf32>
    %c0_132 = arith.constant 0 : index
    %c0_133 = arith.constant 0 : index
    %c0_134 = arith.constant 0 : index
    %284 = vector.load %arg16[%c0_132, %c0_133, %c0_134] : memref<1x128x256xf32, #tpu.memory_space<vmem>>, vector<1x128x256xf32>
    %285 = vector.shape_cast %284 : vector<1x128x256xf32> to vector<128x256xf32>
    %cst_135 = arith.constant dense<0.000000e+00> : vector<8x256xf32>
    %286 = tpu.matmul %283, %285, %cst_135 {dimension_numbers = #tpu.dot_dimension_numbers<[1], [0], [0], [1], [0, 0, 1, 1], [], []>} : vector<8x128xf32>, vector<128x256xf32>, vector<8x256xf32> -> vector<8x256xf32>
    %c0_136 = arith.constant 0 : index
    %c0_137 = arith.constant 0 : index
    %c0_138 = arith.constant 0 : index
    %287 = vector.load %arg17[%c0_136, %c0_137, %c0_138] : memref<1x1x256xf32, #tpu.memory_space<vmem>>, vector<1x1x256xf32>
    %288 = vector.shape_cast %287 : vector<1x1x256xf32> to vector<1x256xf32>
    %289 = vector.broadcast %288 : vector<1x256xf32> to vector<8x256xf32>
    %290 = arith.addf %286, %289 : vector<8x256xf32>
    %cst_139 = arith.constant 0.000000e+00 : f32
    %291 = vector.broadcast %cst_139 : f32 to vector<8x256xf32>
    %292 = arith.maximumf %290, %291 : vector<8x256xf32>
    %c0_140 = arith.constant 0 : index
    %c0_141 = arith.constant 0 : index
    %c0_142 = arith.constant 0 : index
    %293 = vector.load %arg18[%c0_140, %c0_141, %c0_142] : memref<1x256x128xf32, #tpu.memory_space<vmem>>, vector<1x256x128xf32>
    %294 = vector.shape_cast %293 : vector<1x256x128xf32> to vector<256x128xf32>
    %cst_143 = arith.constant dense<0.000000e+00> : vector<8x128xf32>
    %295 = tpu.matmul %292, %294, %cst_143 {dimension_numbers = #tpu.dot_dimension_numbers<[1], [0], [0], [1], [0, 0, 1, 1], [], []>} : vector<8x256xf32>, vector<256x128xf32>, vector<8x128xf32> -> vector<8x128xf32>
    %c0_144 = arith.constant 0 : index
    %c0_145 = arith.constant 0 : index
    %c0_146 = arith.constant 0 : index
    %296 = vector.load %arg19[%c0_144, %c0_145, %c0_146] : memref<1x1x128xf32, #tpu.memory_space<vmem>>, vector<1x1x128xf32>
    %297 = vector.shape_cast %296 : vector<1x1x128xf32> to vector<1x128xf32>
    %298 = vector.broadcast %297 : vector<1x128xf32> to vector<8x128xf32>
    %299 = arith.addf %295, %298 : vector<8x128xf32>
    %300 = arith.addf %283, %299 : vector<8x128xf32>
    %c0_147 = arith.constant 0 : index
    %c0_148 = arith.constant 0 : index
    %c0_149 = arith.constant 0 : index
    %301 = vector.load %arg20[%c0_147, %c0_148, %c0_149] : memref<1x1x128xf32, #tpu.memory_space<vmem>>, vector<1x1x128xf32>
    %302 = vector.shape_cast %301 : vector<1x1x128xf32> to vector<1x128xf32>
    %c0_150 = arith.constant 0 : index
    %c0_151 = arith.constant 0 : index
    %c0_152 = arith.constant 0 : index
    %303 = vector.load %arg21[%c0_150, %c0_151, %c0_152] : memref<1x1x128xf32, #tpu.memory_space<vmem>>, vector<1x1x128xf32>
    %304 = vector.shape_cast %303 : vector<1x1x128xf32> to vector<1x128xf32>
    %cst_153 = arith.constant dense<0.000000e+00> : vector<8xf32>
    %305 = vector.multi_reduction <add>, %300, %cst_153 [1] : vector<8x128xf32> to vector<8xf32>
    %306 = vector.shape_cast %305 : vector<8xf32> to vector<8x1xf32>
    %cst_154 = arith.constant 1.280000e+02 : f32
    %307 = vector.broadcast %cst_154 : f32 to vector<8x1xf32>
    %308 = arith.divf %306, %307 : vector<8x1xf32>
    %309 = vector.broadcast %308 : vector<8x1xf32> to vector<8x128xf32>
    %310 = arith.subf %300, %309 : vector<8x128xf32>
    %311 = arith.mulf %310, %310 : vector<8x128xf32>
    %cst_155 = arith.constant dense<0.000000e+00> : vector<8xf32>
    %312 = vector.multi_reduction <add>, %311, %cst_155 [1] : vector<8x128xf32> to vector<8xf32>
    %313 = vector.shape_cast %312 : vector<8xf32> to vector<8x1xf32>
    %cst_156 = arith.constant 1.280000e+02 : f32
    %314 = vector.broadcast %cst_156 : f32 to vector<8x1xf32>
    %315 = arith.divf %313, %314 : vector<8x1xf32>
    %316 = vector.broadcast %308 : vector<8x1xf32> to vector<8x128xf32>
    %317 = arith.subf %300, %316 : vector<8x128xf32>
    %cst_157 = arith.constant 9.99999974E-6 : f32
    %318 = vector.broadcast %cst_157 : f32 to vector<8x1xf32>
    %319 = arith.addf %315, %318 : vector<8x1xf32>
    %320 = math.rsqrt %319 : vector<8x1xf32>
    %321 = vector.broadcast %320 : vector<8x1xf32> to vector<8x128xf32>
    %322 = arith.mulf %317, %321 : vector<8x128xf32>
    %323 = vector.broadcast %302 : vector<1x128xf32> to vector<8x128xf32>
    %324 = arith.mulf %322, %323 : vector<8x128xf32>
    %325 = vector.broadcast %304 : vector<1x128xf32> to vector<8x128xf32>
    %326 = arith.addf %324, %325 : vector<8x128xf32>
    %c0_158 = arith.constant 0 : index
    %c0_159 = arith.constant 0 : index
    %327 = vector.load %arg24[%c0_158, %c0_159] : memref<8x128xf32, #tpu.memory_space<vmem>>, vector<8x128xf32>
    tpu.vector_store %arg24[%c0_158, %c0_159], %326 {strides = array<i32>} : memref<8x128xf32, #tpu.memory_space<vmem>>, vector<8x128xf32>,
    %c0_160 = arith.constant 0 : index
    %c0_161 = arith.constant 0 : index
    %c0_162 = arith.constant 0 : index
    %328 = vector.load %arg22[%c0_160, %c0_161, %c0_162] : memref<1x8x128xf32, #tpu.memory_space<vmem>>, vector<1x8x128xf32>
    %329 = vector.shape_cast %328 : vector<1x8x128xf32> to vector<8x128xf32>
    %330 = vector.shape_cast %326 : vector<8x128xf32> to vector<1x8x128xf32>
    tpu.vector_store %arg22[%c0_160, %c0_161, %c0_162], %330 {strides = array<i32>} : memref<1x8x128xf32, #tpu.memory_space<vmem>>, vector<1x8x128xf32>,
    return
  }
  func.func @transform_0(%arg0: i32, %arg1: i32) -> (i32, i32, i32) {
    %c0_i32 = arith.constant 0 : i32
    %c0_i32_0 = arith.constant 0 : i32
    %c0_i32_1 = arith.constant 0 : i32
    return %arg0, %c0_i32, %c0_i32_0 : i32, i32, i32
  }
  func.func @transform_1(%arg0: i32, %arg1: i32) -> (i32, i32, i32) {
    %c0_i32 = arith.constant 0 : i32
    %c0_i32_0 = arith.constant 0 : i32
    %c0_i32_1 = arith.constant 0 : i32
    return %arg0, %c0_i32, %c0_i32_0 : i32, i32, i32
  }
  func.func @transform_2(%arg0: i32, %arg1: i32) -> (i32, i32, i32) {
    %c0_i32 = arith.constant 0 : i32
    %c0_i32_0 = arith.constant 0 : i32
    %c0_i32_1 = arith.constant 0 : i32
    %c0_i32_2 = arith.constant 0 : i32
    return %c0_i32, %c0_i32_0, %c0_i32_1 : i32, i32, i32
  }
  func.func @transform_3(%arg0: i32, %arg1: i32) -> (i32, i32, i32) {
    %c0_i32 = arith.constant 0 : i32
    %c0_i32_0 = arith.constant 0 : i32
    %c0_i32_1 = arith.constant 0 : i32
    return %arg0, %c0_i32, %c0_i32_0 : i32, i32, i32
  }
  func.func @transform_4(%arg0: i32, %arg1: i32) -> (i32, i32, i32) {
    %c0_i32 = arith.constant 0 : i32
    %c0_i32_0 = arith.constant 0 : i32
    %c0_i32_1 = arith.constant 0 : i32
    return %arg1, %c0_i32, %c0_i32_0 : i32, i32, i32
  }
  func.func @transform_5(%arg0: i32, %arg1: i32) -> (i32, i32, i32) {
    %c0_i32 = arith.constant 0 : i32
    %c0_i32_0 = arith.constant 0 : i32
    %c0_i32_1 = arith.constant 0 : i32
    return %arg1, %c0_i32, %c0_i32_0 : i32, i32, i32
  }
  func.func @transform_6(%arg0: i32, %arg1: i32) -> (i32, i32, i32) {
    %c0_i32 = arith.constant 0 : i32
    %c0_i32_0 = arith.constant 0 : i32
    %c0_i32_1 = arith.constant 0 : i32
    return %arg1, %c0_i32, %c0_i32_0 : i32, i32, i32
  }
  func.func @transform_7(%arg0: i32, %arg1: i32) -> (i32, i32, i32) {
    %c0_i32 = arith.constant 0 : i32
    %c0_i32_0 = arith.constant 0 : i32
    %c0_i32_1 = arith.constant 0 : i32
    return %arg1, %c0_i32, %c0_i32_0 : i32, i32, i32
  }
  func.func @transform_8(%arg0: i32, %arg1: i32) -> (i32, i32, i32) {
    %c0_i32 = arith.constant 0 : i32
    %c0_i32_0 = arith.constant 0 : i32
    %c0_i32_1 = arith.constant 0 : i32
    return %arg1, %c0_i32, %c0_i32_0 : i32, i32, i32
  }
  func.func @transform_9(%arg0: i32, %arg1: i32) -> (i32, i32, i32) {
    %c0_i32 = arith.constant 0 : i32
    %c0_i32_0 = arith.constant 0 : i32
    %c0_i32_1 = arith.constant 0 : i32
    return %arg1, %c0_i32, %c0_i32_0 : i32, i32, i32
  }
  func.func @transform_10(%arg0: i32, %arg1: i32) -> (i32, i32, i32) {
    %c0_i32 = arith.constant 0 : i32
    %c0_i32_0 = arith.constant 0 : i32
    %c0_i32_1 = arith.constant 0 : i32
    return %arg1, %c0_i32, %c0_i32_0 : i32, i32, i32
  }
  func.func @transform_11(%arg0: i32, %arg1: i32) -> (i32, i32, i32) {
    %c0_i32 = arith.constant 0 : i32
    %c0_i32_0 = arith.constant 0 : i32
    %c0_i32_1 = arith.constant 0 : i32
    return %arg1, %c0_i32, %c0_i32_0 : i32, i32, i32
  }
  func.func @transform_12(%arg0: i32, %arg1: i32) -> (i32, i32, i32) {
    %c0_i32 = arith.constant 0 : i32
    %c0_i32_0 = arith.constant 0 : i32
    %c0_i32_1 = arith.constant 0 : i32
    return %arg1, %c0_i32, %c0_i32_0 : i32, i32, i32
  }
  func.func @transform_13(%arg0: i32, %arg1: i32) -> (i32, i32, i32) {
    %c0_i32 = arith.constant 0 : i32
    %c0_i32_0 = arith.constant 0 : i32
    %c0_i32_1 = arith.constant 0 : i32
    return %arg1, %c0_i32, %c0_i32_0 : i32, i32, i32
  }
  func.func @transform_14(%arg0: i32, %arg1: i32) -> (i32, i32, i32) {
    %c0_i32 = arith.constant 0 : i32
    %c0_i32_0 = arith.constant 0 : i32
    %c0_i32_1 = arith.constant 0 : i32
    return %arg1, %c0_i32, %c0_i32_0 : i32, i32, i32
  }
  func.func @transform_15(%arg0: i32, %arg1: i32) -> (i32, i32, i32) {
    %c0_i32 = arith.constant 0 : i32
    %c0_i32_0 = arith.constant 0 : i32
    %c0_i32_1 = arith.constant 0 : i32
    return %arg1, %c0_i32, %c0_i32_0 : i32, i32, i32
  }
  func.func @transform_16(%arg0: i32, %arg1: i32) -> (i32, i32, i32) {
    %c0_i32 = arith.constant 0 : i32
    %c0_i32_0 = arith.constant 0 : i32
    %c0_i32_1 = arith.constant 0 : i32
    return %arg1, %c0_i32, %c0_i32_0 : i32, i32, i32
  }
  func.func @transform_17(%arg0: i32, %arg1: i32) -> (i32, i32, i32) {
    %c0_i32 = arith.constant 0 : i32
    %c0_i32_0 = arith.constant 0 : i32
    %c0_i32_1 = arith.constant 0 : i32
    return %arg1, %c0_i32, %c0_i32_0 : i32, i32, i32
  }
  func.func @transform_18(%arg0: i32, %arg1: i32) -> (i32, i32, i32) {
    %c0_i32 = arith.constant 0 : i32
    %c0_i32_0 = arith.constant 0 : i32
    %c0_i32_1 = arith.constant 0 : i32
    return %arg1, %c0_i32, %c0_i32_0 : i32, i32, i32
  }
  func.func @transform_19(%arg0: i32, %arg1: i32) -> (i32, i32, i32) {
    %c0_i32 = arith.constant 0 : i32
    %c0_i32_0 = arith.constant 0 : i32
    %c0_i32_1 = arith.constant 0 : i32
    return %arg1, %c0_i32, %c0_i32_0 : i32, i32, i32
  }
  func.func @transform_20(%arg0: i32, %arg1: i32) -> (i32, i32, i32) {
    %c0_i32 = arith.constant 0 : i32
    %c0_i32_0 = arith.constant 0 : i32
    %c0_i32_1 = arith.constant 0 : i32
    return %arg0, %c0_i32, %c0_i32_0 : i32, i32, i32
  }
  func.func @transform_21(%arg0: i32, %arg1: i32) -> (i32, i32, i32, i32) {
    %c0_i32 = arith.constant 0 : i32
    %c0_i32_0 = arith.constant 0 : i32
    %c0_i32_1 = arith.constant 0 : i32
    return %arg0, %arg1, %c0_i32, %c0_i32_0 : i32, i32, i32, i32
  }
}

</mosaic_0001>

<llo_original>
// kernel: tpu_custom_call.1
$region0: #{tpu_custom_call.1}
  #allocation0 [shape = 'u32[]', space=smem, size = 0x4, offset = 0x4, fixed_abs, tag = 'smem constant byte address 0x4 - core index']
  #allocation1 [shape = 'u32[144,128]{1,0:T(1,128)}', space=vmem, size = 0x12000, scoped, tag = 'internal scratch']
  #allocation2 [shape = 'f32[8,128]{1,0:T(8,128)}', space=vmem, size = 0x1000, scoped, tag = 'scratch operand']
  %s0 = inlined_call_operand.hbm [shape: f32[2,8,128], index: 0, kind: input, shape index: {}]
  %s1 = inlined_call_operand.hbm [shape: f32[2,8,128], index: 1, kind: input, shape index: {}]
  %s2 = inlined_call_operand.hbm [shape: f32[1,8,8], index: 2, kind: input, shape index: {}]
  %s3 = inlined_call_operand.hbm [shape: f32[2,8,8], index: 3, kind: input, shape index: {}]
  %s4 = inlined_call_operand.hbm [shape: f32[2,128,128], index: 4, kind: input, shape index: {}]
  %s5 = inlined_call_operand.hbm [shape: f32[2,128,256], index: 5, kind: input, shape index: {}]
  %s6 = inlined_call_operand.hbm [shape: f32[2,128,128], index: 6, kind: input, shape index: {}]
  %s7 = inlined_call_operand.vmem [shape: f32[2,1,128], index: 7, kind: input, shape index: {}]
  %s8 = inlined_call_operand.vmem [shape: f32[2,1,128], index: 8, kind: input, shape index: {}]
  %s9 = inlined_call_operand.hbm [shape: f32[2,128,128], index: 9, kind: input, shape index: {}]
  %s10 = inlined_call_operand.hbm [shape: f32[2,128,256], index: 10, kind: input, shape index: {}]
  %s11 = inlined_call_operand.hbm [shape: f32[2,128,128], index: 11, kind: input, shape index: {}]
  %s12 = inlined_call_operand.vmem [shape: f32[2,1,128], index: 12, kind: input, shape index: {}]
  %s13 = inlined_call_operand.vmem [shape: f32[2,1,128], index: 13, kind: input, shape index: {}]
  %s14 = inlined_call_operand.hbm [shape: f32[2,128,256], index: 14, kind: input, shape index: {}]
  %s15 = inlined_call_operand.vmem [shape: f32[2,1,256], index: 15, kind: input, shape index: {}]
  %s16 = inlined_call_operand.hbm [shape: f32[2,256,128], index: 16, kind: input, shape index: {}]
  %s17 = inlined_call_operand.vmem [shape: f32[2,1,128], index: 17, kind: input, shape index: {}]
  %s18 = inlined_call_operand.vmem [shape: f32[2,1,128], index: 18, kind: input, shape index: {}]
  %s19 = inlined_call_operand.vmem [shape: f32[2,1,128], index: 19, kind: input, shape index: {}]
  %s20 = inlined_call_operand.hbm [shape: f32[2,8,128], index: 20, kind: output, shape index: {0}]
  %s21 = inlined_call_operand.hbm [shape: f32[2,2,8,128], index: 21, kind: output, shape index: {1}]
  %22 = xla_tuple %s20, %s21
  %s23 = sld [smem:[#allocation0]]
  $region173: #{tpu_custom_call.1} parent=0
    _
  %s25 = ssub.s32 1, %s23
  %s26 = scalar_select 0, %s25, %s23
  $region1: #{tpu_custom_call.1} parent=0
    #allocation3 [shape = 'u8[8192]{0}', space=vmem, size = 0x2000, scoped, tag = 'input window, operand 0']
    #allocation4 [shape = 's32[2]{0}', space=sflag, size = 0x8, scoped, tag = 'scoped memory for tpu_custom_call.1']
    #allocation5 [shape = 's32[2]{0}', space=sflag, size = 0x8, scoped, tag = 'scoped memory for tpu_custom_call.1']
    #allocation6 [shape = 'u8[8192]{0}', space=vmem, size = 0x2000, scoped, tag = 'input window, operand 1']
    #allocation7 [shape = 's32[2]{0}', space=sflag, size = 0x8, scoped, tag = 'scoped memory for tpu_custom_call.1']
    #allocation8 [shape = 'u8[4096]{0}', space=vmem, size = 0x1000, scoped, tag = 'input window, operand 2, single buffered']
    #allocation9 [shape = 'u8[8192]{0}', space=vmem, size = 0x2000, scoped, tag = 'input window, operand 3']
    #allocation10 [shape = 's32[2]{0}', space=sflag, size = 0x8, scoped, tag = 'scoped memory for tpu_custom_call.1']
    #allocation11 [shape = 'u8[131072]{0}', space=vmem, size = 0x20000, scoped, tag = 'input window, operand 4']
    #allocation12 [shape = 'u8[262144]{0}', space=vmem, size = 0x40000, scoped, tag = 'input window, operand 5']
    #allocation13 [shape = 's32[2]{0}', space=sflag, size = 0x8, scoped, tag = 'scoped memory for tpu_custom_call.1']
    #allocation14 [shape = 'u8[131072]{0}', space=vmem, size = 0x20000, scoped, tag = 'input window, operand 6']
    #allocation15 [shape = 'u8[131072]{0}', space=vmem, size = 0x20000, scoped, tag = 'input window, operand 9']
    #allocation16 [shape = 's32[2]{0}', space=sflag, size = 0x8, scoped, tag = 'scoped memory for tpu_custom_call.1']
    #allocation17 [shape = 'u8[262144]{0}', space=vmem, size = 0x40000, scoped, tag = 'input window, operand 10']
    #allocation18 [shape = 'u8[131072]{0}', space=vmem, size = 0x20000, scoped, tag = 'input window, operand 11']
    #allocation19 [shape = 's32[2]{0}', space=sflag, size = 0x8, scoped, tag = 'scoped memory for tpu_custom_call.1']
    #allocation20 [shape = 'u8[262144]{0}', space=vmem, size = 0x40000, scoped, tag = 'input window, operand 14']
    #allocation21 [shape = 'u8[262144]{0}', space=vmem, size = 0x40000, scoped, tag = 'input window, operand 16']
    #allocation22 [shape = 's32[2]{0}', space=sflag, size = 0x8, scoped, tag = 'scoped memory for tpu_custom_call.1']
    #allocation23 [shape = 'u8[8192]{0}', space=vmem, size = 0x2000, scoped, tag = 'output window, operand 0']
    #allocation24 [shape = 'u8[8192]{0}', space=vmem, size = 0x2000, scoped, tag = 'output window, operand 1']
    #allocation25 [shape = 's32[2]{0}', space=sflag, size = 0x8, scoped, tag = 'scoped memory for tpu_custom_call.1']
    %27 = vsyncpa [#allocation4], 0
    %s28 = scalar_lea.sflag [#allocation4], 1
    %29 = vsyncpa %s28, 0
    %30 = vsyncpa [#allocation7], 0
    %s31 = scalar_lea.sflag [#allocation7], 1
    %32 = vsyncpa %s31, 0
    %33 = vsyncpa [#allocation10], 0
    %s34 = scalar_lea.sflag [#allocation10], 1
    %35 = vsyncpa %s34, 0
    %36 = vsyncpa [#allocation13], 0
    %s37 = scalar_lea.sflag [#allocation13], 1
    %38 = vsyncpa %s37, 0
    %39 = vsyncpa [#allocation16], 0
    %s40 = scalar_lea.sflag [#allocation16], 1
    %41 = vsyncpa %s40, 0
    %42 = vsyncpa [#allocation19], 0
    %s43 = scalar_lea.sflag [#allocation19], 1
    %44 = vsyncpa %s43, 0
    %45 = vsyncpa [#allocation22], 0
    %s46 = scalar_lea.sflag [#allocation22], 1
    %47 = vsyncpa %s46, 0
    %48 = vsyncpa [#allocation5], 0
    %s49 = scalar_lea.sflag [#allocation5], 1
    %50 = vsyncpa %s49, 0
    %51 = vsyncpa [#allocation25], 0
    %s52 = scalar_lea.sflag [#allocation25], 1
    %53 = vsyncpa %s52, 0
    loop: start=0, step=1, limit=6
    $region2: #{tpu_custom_call.1} parent=1 // loop_pre_header
      _
    $region3: #{tpu_custom_call.1} parent=1 // loop_header
      %s55 = sphi 0, %s59
      %p56 = scmp.ge.s32.totalorder %s55, 6
      %s62 = sphi 0, %s74
      %s63 = sphi 0, %s70
      %s64 = sphi 0, %s62
      %s65 = sphi 0, %s63
      %s66 = sphi 0, %s64
      %s67 = sphi 0, %s65
      %s77 = sphi 0, %s79
      %s80 = sphi 0, %s77
      %s81 = sphi 0, %s80
      %s97 = sphi 0, %s81
      %s103 = sphi 0, %s105
      %s106 = sphi 0, %s103
      %s107 = sphi 0, %s106
      %s123 = sphi 0, %s107
      %s127 = sphi 0, %s127
      %s129 = sphi 0, %s127
      %s130 = sphi 0, %s129
      %s144 = sphi 0, %s130
      %s150 = sphi 0, %s152
      %s153 = sphi 0, %s150
      %s154 = sphi 0, %s153
      %s170 = sphi 0, %s154
      %s176 = sphi 0, %s178
      %s179 = sphi 0, %s176
      %s180 = sphi 0, %s179
      %s196 = sphi 0, %s180
      %s202 = sphi 0, %s204
      %s205 = sphi 0, %s202
      %s206 = sphi 0, %s205
      %s222 = sphi 0, %s206
      %s228 = sphi 0, %s230
      %s231 = sphi 0, %s228
      %s232 = sphi 0, %s231
      %s248 = sphi 0, %s232
      %s254 = sphi 0, %s256
      %s257 = sphi 0, %s254
      %s258 = sphi 0, %s257
      %s274 = sphi 0, %s258
      %s280 = sphi 0, %s282
      %s283 = sphi 0, %s280
      %s284 = sphi 0, %s283
      %s300 = sphi 0, %s284
      %s306 = sphi 0, %s308
      %s309 = sphi 0, %s306
      %s310 = sphi 0, %s309
      %s326 = sphi 0, %s310
      %s332 = sphi 0, %s334
      %s335 = sphi 0, %s332
      %s336 = sphi 0, %s335
      %s352 = sphi 0, %s336
      %s358 = sphi 0, %s360
      %s361 = sphi 0, %s358
      %s362 = sphi 0, %s361
      %s378 = sphi 0, %s362
      %s384 = sphi 0, %s386
      %s387 = sphi 0, %s384
      %s388 = sphi 0, %s387
      %s404 = sphi 0, %s388
      %s410 = sphi 0, %s412
      %s413 = sphi 0, %s410
      %s414 = sphi 0, %s413
      %s430 = sphi 0, %s414
      %s436 = sphi 0, %s438
      %s439 = sphi 0, %s436
      %s440 = sphi 0, %s439
      %s456 = sphi 0, %s440
      %s462 = sphi 0, %s464
      %s465 = sphi 0, %s462
      %s466 = sphi 0, %s465
      %s482 = sphi 0, %s466
      %s488 = sphi 0, %s490
      %s491 = sphi 0, %s488
      %s492 = sphi 0, %s491
      %s508 = sphi 0, %s492
      %s514 = sphi 0, %s516
      %s517 = sphi 0, %s514
      %s518 = sphi 0, %s517
      %s534 = sphi 0, %s518
      %s540 = sphi 0, %s542
      %s543 = sphi 0, %s540
      %s544 = sphi 0, %s543
      %s560 = sphi 0, %s544
      %s566 = sphi 0, %s568
      %s569 = sphi 0, %s566
      %s570 = sphi 0, %s569
      %s586 = sphi 0, %s570
      %s592 = sphi 0, %s594
      %s595 = sphi 0, %s592
      %s596 = sphi 0, %s595
      %s612 = sphi 0, %s596
      %s620 = sphi 0, %s622
      %s623 = sphi 0, %s620
      %s624 = sphi 0, %s623
      %s640 = sphi 0, %s624
    $region4: #{tpu_custom_call.1} parent=1 // loop_header_branch
      %58 = sbr.rel (%p56) target = $region8
    $region5: #{tpu_custom_call.1} parent=1 // loop_body
      %s60 = ssub.s32 %s55, 1
      %s61 = ssub.s32 %s55, 2
      %s68 = sadd.s32 1, %s63
      %p69 = scmp.ge.s32.totalorder %s68, 2
      %s70 = scalar_select %p69, 0, %s68
      %s71 = sadd.s32 1, %s62
      %s72 = scalar_select %p69, %s71, %s62
      %p73 = scmp.ge.s32.totalorder %s72, 2
      %s74 = scalar_select %p73, 0, %s72
      %s75 = ssub.s32 %s62, %s74
      %p76 = scmp.eq.s32.totalorder %s75, 0
      %s78 = sadd.s32 %s77, 1
      %s79 = scalar_select %p76, %s77, %s78
      %p82 = pneg %p76
      %p83 = scmp.eq.s32.totalorder %s55, 3
      %p84 = por %p82, %p83
      %p85 = scmp.ne.s32.totalorder %s77, %s80
      %p86 = scmp.eq.s32.totalorder %s55, 0
      %p87 = por %p85, %p86
      %p88 = scmp.ne.s32.totalorder %s77, %s80
      %p89 = scmp.eq.s32.totalorder %s60, 3
      %p90 = por %p88, %p89
      %p91 = scmp.ne.s32.totalorder %s80, %s81
      %p92 = scmp.eq.s32.totalorder %s60, 0
      %p93 = por %p91, %p92
      %p94 = scmp.ne.s32.totalorder %s80, %s81
      %p95 = scmp.eq.s32.totalorder %s61, 3
      %p96 = por %p94, %p95
      %p98 = scmp.ne.s32.totalorder %s81, %s97
      %p99 = scmp.eq.s32.totalorder %s61, 0
      %p100 = por %p98, %p99
      %s101 = ssub.s32 %s62, %s74
      %p102 = scmp.eq.s32.totalorder %s101, 0
      %s104 = sadd.s32 %s103, 1
      %s105 = scalar_select %p102, %s103, %s104
      %p108 = pneg %p102
      %p109 = scmp.eq.s32.totalorder %s55, 3
      %p110 = por %p108, %p109
      %p111 = scmp.ne.s32.totalorder %s103, %s106
      %p112 = scmp.eq.s32.totalorder %s55, 0
      %p113 = por %p111, %p112
      %p114 = scmp.ne.s32.totalorder %s103, %s106
      %p115 = scmp.eq.s32.totalorder %s60, 3
      %p116 = por %p114, %p115
      %p117 = scmp.ne.s32.totalorder %s106, %s107
      %p118 = scmp.eq.s32.totalorder %s60, 0
      %p119 = por %p117, %p118
      %p120 = scmp.ne.s32.totalorder %s106, %s107
      %p121 = scmp.eq.s32.totalorder %s61, 3
      %p122 = por %p120, %p121
      %p124 = scmp.ne.s32.totalorder %s107, %s123
      %p125 = scmp.eq.s32.totalorder %s61, 0
      %p126 = por %p124, %p125
      %s128 = sadd.s32 %s127, 1
      %p131 = scmp.eq.s32.totalorder %s55, 3
      %p132 = scmp.ne.s32.totalorder %s127, %s129
      %p133 = scmp.eq.s32.totalorder %s55, 0
      %p134 = por %p132, %p133
      %p135 = scmp.ne.s32.totalorder %s127, %s129
      %p136 = scmp.eq.s32.totalorder %s60, 3
      %p137 = por %p135, %p136
      %p138 = scmp.ne.s32.totalorder %s129, %s130
      %p139 = scmp.eq.s32.totalorder %s60, 0
      %p140 = por %p138, %p139
      %p141 = scmp.ne.s32.totalorder %s129, %s130
      %p142 = scmp.eq.s32.totalorder %s61, 3
      %p143 = por %p141, %p142
      %p145 = scmp.ne.s32.totalorder %s130, %s144
      %p146 = scmp.eq.s32.totalorder %s61, 0
      %p147 = por %p145, %p146
      %s148 = ssub.s32 %s62, %s74
      %p149 = scmp.eq.s32.totalorder %s148, 0
      %s151 = sadd.s32 %s150, 1
      %s152 = scalar_select %p149, %s150, %s151
      %p155 = pneg %p149
      %p156 = scmp.eq.s32.totalorder %s55, 3
      %p157 = por %p155, %p156
      %p158 = scmp.ne.s32.totalorder %s150, %s153
      %p159 = scmp.eq.s32.totalorder %s55, 0
      %p160 = por %p158, %p159
      %p161 = scmp.ne.s32.totalorder %s150, %s153
      %p162 = scmp.eq.s32.totalorder %s60, 3
      %p163 = por %p161, %p162
      %p164 = scmp.ne.s32.totalorder %s153, %s154
      %p165 = scmp.eq.s32.totalorder %s60, 0
      %p166 = por %p164, %p165
      %p167 = scmp.ne.s32.totalorder %s153, %s154
      %p168 = scmp.eq.s32.totalorder %s61, 3
      %p169 = por %p167, %p168
      %p171 = scmp.ne.s32.totalorder %s154, %s170
      %p172 = scmp.eq.s32.totalorder %s61, 0
      %p173 = por %p171, %p172
      %s174 = ssub.s32 %s63, %s70
      %p175 = scmp.eq.s32.totalorder %s174, 0
      %s177 = sadd.s32 %s176, 1
      %s178 = scalar_select %p175, %s176, %s177
      %p181 = pneg %p175
      %p182 = scmp.eq.s32.totalorder %s55, 3
      %p183 = por %p181, %p182
      %p184 = scmp.ne.s32.totalorder %s176, %s179
      %p185 = scmp.eq.s32.totalorder %s55, 0
      %p186 = por %p184, %p185
      %p187 = scmp.ne.s32.totalorder %s176, %s179
      %p188 = scmp.eq.s32.totalorder %s60, 3
      %p189 = por %p187, %p188
      %p190 = scmp.ne.s32.totalorder %s179, %s180
      %p191 = scmp.eq.s32.totalorder %s60, 0
      %p192 = por %p190, %p191
      %p193 = scmp.ne.s32.totalorder %s179, %s180
      %p194 = scmp.eq.s32.totalorder %s61, 3
      %p195 = por %p193, %p194
      %p197 = scmp.ne.s32.totalorder %s180, %s196
      %p198 = scmp.eq.s32.totalorder %s61, 0
      %p199 = por %p197, %p198
      %s200 = ssub.s32 %s63, %s70
      %p201 = scmp.eq.s32.totalorder %s200, 0
      %s203 = sadd.s32 %s202, 1
      %s204 = scalar_select %p201, %s202, %s203
      %p207 = pneg %p201
      %p208 = scmp.eq.s32.totalorder %s55, 3
      %p209 = por %p207, %p208
      %p210 = scmp.ne.s32.totalorder %s202, %s205
      %p211 = scmp.eq.s32.totalorder %s55, 0
      %p212 = por %p210, %p211
      %p213 = scmp.ne.s32.totalorder %s202, %s205
      %p214 = scmp.eq.s32.totalorder %s60, 3
      %p215 = por %p213, %p214
      %p216 = scmp.ne.s32.totalorder %s205, %s206
      %p217 = scmp.eq.s32.totalorder %s60, 0
      %p218 = por %p216, %p217
      %p219 = scmp.ne.s32.totalorder %s205, %s206
      %p220 = scmp.eq.s32.totalorder %s61, 3
      %p221 = por %p219, %p220
      %p223 = scmp.ne.s32.totalorder %s206, %s222
      %p224 = scmp.eq.s32.totalorder %s61, 0
      %p225 = por %p223, %p224
      %s226 = ssub.s32 %s63, %s70
      %p227 = scmp.eq.s32.totalorder %s226, 0
      %s229 = sadd.s32 %s228, 1
      %s230 = scalar_select %p227, %s228, %s229
      %p233 = pneg %p227
      %p234 = scmp.eq.s32.totalorder %s55, 3
      %p235 = por %p233, %p234
      %p236 = scmp.ne.s32.totalorder %s228, %s231
      %p237 = scmp.eq.s32.totalorder %s55, 0
      %p238 = por %p236, %p237
      %p239 = scmp.ne.s32.totalorder %s228, %s231
      %p240 = scmp.eq.s32.totalorder %s60, 3
      %p241 = por %p239, %p240
      %p242 = scmp.ne.s32.totalorder %s231, %s232
      %p243 = scmp.eq.s32.totalorder %s60, 0
      %p244 = por %p242, %p243
      %p245 = scmp.ne.s32.totalorder %s231, %s232
      %p246 = scmp.eq.s32.totalorder %s61, 3
      %p247 = por %p245, %p246
      %p249 = scmp.ne.s32.totalorder %s232, %s248
      %p250 = scmp.eq.s32.totalorder %s61, 0
      %p251 = por %p249, %p250
      %s252 = ssub.s32 %s63, %s70
      %p253 = scmp.eq.s32.totalorder %s252, 0
      %s255 = sadd.s32 %s254, 1
      %s256 = scalar_select %p253, %s254, %s255
      %p259 = pneg %p253
      %p260 = scmp.eq.s32.totalorder %s55, 3
      %p261 = por %p259, %p260
      %p262 = scmp.ne.s32.totalorder %s254, %s257
      %p263 = scmp.eq.s32.totalorder %s55, 0
      %p264 = por %p262, %p263
      %p265 = scmp.ne.s32.totalorder %s254, %s257
      %p266 = scmp.eq.s32.totalorder %s60, 3
      %p267 = por %p265, %p266
      %p268 = scmp.ne.s32.totalorder %s257, %s258
      %p269 = scmp.eq.s32.totalorder %s60, 0
      %p270 = por %p268, %p269
      %p271 = scmp.ne.s32.totalorder %s257, %s258
      %p272 = scmp.eq.s32.totalorder %s61, 3
      %p273 = por %p271, %p272
      %p275 = scmp.ne.s32.totalorder %s258, %s274
      %p276 = scmp.eq.s32.totalorder %s61, 0
      %p277 = por %p275, %p276
      %s278 = ssub.s32 %s63, %s70
      %p279 = scmp.eq.s32.totalorder %s278, 0
      %s281 = sadd.s32 %s280, 1
      %s282 = scalar_select %p279, %s280, %s281
      %p285 = pneg %p279
      %p286 = scmp.eq.s32.totalorder %s55, 3
      %p287 = por %p285, %p286
      %p288 = scmp.ne.s32.totalorder %s280, %s283
      %p289 = scmp.eq.s32.totalorder %s55, 0
      %p290 = por %p288, %p289
      %p291 = scmp.ne.s32.totalorder %s280, %s283
      %p292 = scmp.eq.s32.totalorder %s60, 3
      %p293 = por %p291, %p292
      %p294 = scmp.ne.s32.totalorder %s283, %s284
      %p295 = scmp.eq.s32.totalorder %s60, 0
      %p296 = por %p294, %p295
      %p297 = scmp.ne.s32.totalorder %s283, %s284
      %p298 = scmp.eq.s32.totalorder %s61, 3
      %p299 = por %p297, %p298
      %p301 = scmp.ne.s32.totalorder %s284, %s300
      %p302 = scmp.eq.s32.totalorder %s61, 0
      %p303 = por %p301, %p302
      %s304 = ssub.s32 %s63, %s70
      %p305 = scmp.eq.s32.totalorder %s304, 0
      %s307 = sadd.s32 %s306, 1
      %s308 = scalar_select %p305, %s306, %s307
      %p311 = pneg %p305
      %p312 = scmp.eq.s32.totalorder %s55, 3
      %p313 = por %p311, %p312
      %p314 = scmp.ne.s32.totalorder %s306, %s309
      %p315 = scmp.eq.s32.totalorder %s55, 0
      %p316 = por %p314, %p315
      %p317 = scmp.ne.s32.totalorder %s306, %s309
      %p318 = scmp.eq.s32.totalorder %s60, 3
      %p319 = por %p317, %p318
      %p320 = scmp.ne.s32.totalorder %s309, %s310
      %p321 = scmp.eq.s32.totalorder %s60, 0
      %p322 = por %p320, %p321
      %p323 = scmp.ne.s32.totalorder %s309, %s310
      %p324 = scmp.eq.s32.totalorder %s61, 3
      %p325 = por %p323, %p324
      %p327 = scmp.ne.s32.totalorder %s310, %s326
      %p328 = scmp.eq.s32.totalorder %s61, 0
      %p329 = por %p327, %p328
      %s330 = ssub.s32 %s63, %s70
      %p331 = scmp.eq.s32.totalorder %s330, 0
      %s333 = sadd.s32 %s332, 1
      %s334 = scalar_select %p331, %s332, %s333
      %p337 = pneg %p331
      %p338 = scmp.eq.s32.totalorder %s55, 3
      %p339 = por %p337, %p338
      %p340 = scmp.ne.s32.totalorder %s332, %s335
      %p341 = scmp.eq.s32.totalorder %s55, 0
      %p342 = por %p340, %p341
      %p343 = scmp.ne.s32.totalorder %s332, %s335
      %p344 = scmp.eq.s32.totalorder %s60, 3
      %p345 = por %p343, %p344
      %p346 = scmp.ne.s32.totalorder %s335, %s336
      %p347 = scmp.eq.s32.totalorder %s60, 0
      %p348 = por %p346, %p347
      %p349 = scmp.ne.s32.totalorder %s335, %s336
      %p350 = scmp.eq.s32.totalorder %s61, 3
      %p351 = por %p349, %p350
      %p353 = scmp.ne.s32.totalorder %s336, %s352
      %p354 = scmp.eq.s32.totalorder %s61, 0
      %p355 = por %p353, %p354
      %s356 = ssub.s32 %s63, %s70
      %p357 = scmp.eq.s32.totalorder %s356, 0
      %s359 = sadd.s32 %s358, 1
      %s360 = scalar_select %p357, %s358, %s359
      %p363 = pneg %p357
      %p364 = scmp.eq.s32.totalorder %s55, 3
      %p365 = por %p363, %p364
      %p366 = scmp.ne.s32.totalorder %s358, %s361
      %p367 = scmp.eq.s32.totalorder %s55, 0
      %p368 = por %p366, %p367
      %p369 = scmp.ne.s32.totalorder %s358, %s361
      %p370 = scmp.eq.s32.totalorder %s60, 3
      %p371 = por %p369, %p370
      %p372 = scmp.ne.s32.totalorder %s361, %s362
      %p373 = scmp.eq.s32.totalorder %s60, 0
      %p374 = por %p372, %p373
      %p375 = scmp.ne.s32.totalorder %s361, %s362
      %p376 = scmp.eq.s32.totalorder %s61, 3
      %p377 = por %p375, %p376
      %p379 = scmp.ne.s32.totalorder %s362, %s378
      %p380 = scmp.eq.s32.totalorder %s61, 0
      %p381 = por %p379, %p380
      %s382 = ssub.s32 %s63, %s70
      %p383 = scmp.eq.s32.totalorder %s382, 0
      %s385 = sadd.s32 %s384, 1
      %s386 = scalar_select %p383, %s384, %s385
      %p389 = pneg %p383
      %p390 = scmp.eq.s32.totalorder %s55, 3
      %p391 = por %p389, %p390
      %p392 = scmp.ne.s32.totalorder %s384, %s387
      %p393 = scmp.eq.s32.totalorder %s55, 0
      %p394 = por %p392, %p393
      %p395 = scmp.ne.s32.totalorder %s384, %s387
      %p396 = scmp.eq.s32.totalorder %s60, 3
      %p397 = por %p395, %p396
      %p398 = scmp.ne.s32.totalorder %s387, %s388
      %p399 = scmp.eq.s32.totalorder %s60, 0
      %p400 = por %p398, %p399
      %p401 = scmp.ne.s32.totalorder %s387, %s388
      %p402 = scmp.eq.s32.totalorder %s61, 3
      %p403 = por %p401, %p402
      %p405 = scmp.ne.s32.totalorder %s388, %s404
      %p406 = scmp.eq.s32.totalorder %s61, 0
      %p407 = por %p405, %p406
      %s408 = ssub.s32 %s63, %s70
      %p409 = scmp.eq.s32.totalorder %s408, 0
      %s411 = sadd.s32 %s410, 1
      %s412 = scalar_select %p409, %s410, %s411
      %p415 = pneg %p409
      %p416 = scmp.eq.s32.totalorder %s55, 3
      %p417 = por %p415, %p416
      %p418 = scmp.ne.s32.totalorder %s410, %s413
      %p419 = scmp.eq.s32.totalorder %s55, 0
      %p420 = por %p418, %p419
      %p421 = scmp.ne.s32.totalorder %s410, %s413
      %p422 = scmp.eq.s32.totalorder %s60, 3
      %p423 = por %p421, %p422
      %p424 = scmp.ne.s32.totalorder %s413, %s414
      %p425 = scmp.eq.s32.totalorder %s60, 0
      %p426 = por %p424, %p425
      %p427 = scmp.ne.s32.totalorder %s413, %s414
      %p428 = scmp.eq.s32.totalorder %s61, 3
      %p429 = por %p427, %p428
      %p431 = scmp.ne.s32.totalorder %s414, %s430
      %p432 = scmp.eq.s32.totalorder %s61, 0
      %p433 = por %p431, %p432
      %s434 = ssub.s32 %s63, %s70
      %p435 = scmp.eq.s32.totalorder %s434, 0
      %s437 = sadd.s32 %s436, 1
      %s438 = scalar_select %p435, %s436, %s437
      %p441 = pneg %p435
      %p442 = scmp.eq.s32.totalorder %s55, 3
      %p443 = por %p441, %p442
      %p444 = scmp.ne.s32.totalorder %s436, %s439
      %p445 = scmp.eq.s32.totalorder %s55, 0
      %p446 = por %p444, %p445
      %p447 = scmp.ne.s32.totalorder %s436, %s439
      %p448 = scmp.eq.s32.totalorder %s60, 3
      %p449 = por %p447, %p448
      %p450 = scmp.ne.s32.totalorder %s439, %s440
      %p451 = scmp.eq.s32.totalorder %s60, 0
      %p452 = por %p450, %p451
      %p453 = scmp.ne.s32.totalorder %s439, %s440
      %p454 = scmp.eq.s32.totalorder %s61, 3
      %p455 = por %p453, %p454
      %p457 = scmp.ne.s32.totalorder %s440, %s456
      %p458 = scmp.eq.s32.totalorder %s61, 0
      %p459 = por %p457, %p458
      %s460 = ssub.s32 %s63, %s70
      %p461 = scmp.eq.s32.totalorder %s460, 0
      %s463 = sadd.s32 %s462, 1
      %s464 = scalar_select %p461, %s462, %s463
      %p467 = pneg %p461
      %p468 = scmp.eq.s32.totalorder %s55, 3
      %p469 = por %p467, %p468
      %p470 = scmp.ne.s32.totalorder %s462, %s465
      %p471 = scmp.eq.s32.totalorder %s55, 0
      %p472 = por %p470, %p471
      %p473 = scmp.ne.s32.totalorder %s462, %s465
      %p474 = scmp.eq.s32.totalorder %s60, 3
      %p475 = por %p473, %p474
      %p476 = scmp.ne.s32.totalorder %s465, %s466
      %p477 = scmp.eq.s32.totalorder %s60, 0
      %p478 = por %p476, %p477
      %p479 = scmp.ne.s32.totalorder %s465, %s466
      %p480 = scmp.eq.s32.totalorder %s61, 3
      %p481 = por %p479, %p480
      %p483 = scmp.ne.s32.totalorder %s466, %s482
      %p484 = scmp.eq.s32.totalorder %s61, 0
      %p485 = por %p483, %p484
      %s486 = ssub.s32 %s63, %s70
      %p487 = scmp.eq.s32.totalorder %s486, 0
      %s489 = sadd.s32 %s488, 1
      %s490 = scalar_select %p487, %s488, %s489
      %p493 = pneg %p487
      %p494 = scmp.eq.s32.totalorder %s55, 3
      %p495 = por %p493, %p494
      %p496 = scmp.ne.s32.totalorder %s488, %s491
      %p497 = scmp.eq.s32.totalorder %s55, 0
      %p498 = por %p496, %p497
      %p499 = scmp.ne.s32.totalorder %s488, %s491
      %p500 = scmp.eq.s32.totalorder %s60, 3
      %p501 = por %p499, %p500
      %p502 = scmp.ne.s32.totalorder %s491, %s492
      %p503 = scmp.eq.s32.totalorder %s60, 0
      %p504 = por %p502, %p503
      %p505 = scmp.ne.s32.totalorder %s491, %s492
      %p506 = scmp.eq.s32.totalorder %s61, 3
      %p507 = por %p505, %p506
      %p509 = scmp.ne.s32.totalorder %s492, %s508
      %p510 = scmp.eq.s32.totalorder %s61, 0
      %p511 = por %p509, %p510
      %s512 = ssub.s32 %s63, %s70
      %p513 = scmp.eq.s32.totalorder %s512, 0
      %s515 = sadd.s32 %s514, 1
      %s516 = scalar_select %p513, %s514, %s515
      %p519 = pneg %p513
      %p520 = scmp.eq.s32.totalorder %s55, 3
      %p521 = por %p519, %p520
      %p522 = scmp.ne.s32.totalorder %s514, %s517
      %p523 = scmp.eq.s32.totalorder %s55, 0
      %p524 = por %p522, %p523
      %p525 = scmp.ne.s32.totalorder %s514, %s517
      %p526 = scmp.eq.s32.totalorder %s60, 3
      %p527 = por %p525, %p526
      %p528 = scmp.ne.s32.totalorder %s517, %s518
      %p529 = scmp.eq.s32.totalorder %s60, 0
      %p530 = por %p528, %p529
      %p531 = scmp.ne.s32.totalorder %s517, %s518
      %p532 = scmp.eq.s32.totalorder %s61, 3
      %p533 = por %p531, %p532
      %p535 = scmp.ne.s32.totalorder %s518, %s534
      %p536 = scmp.eq.s32.totalorder %s61, 0
      %p537 = por %p535, %p536
      %s538 = ssub.s32 %s63, %s70
      %p539 = scmp.eq.s32.totalorder %s538, 0
      %s541 = sadd.s32 %s540, 1
      %s542 = scalar_select %p539, %s540, %s541
      %p545 = pneg %p539
      %p546 = scmp.eq.s32.totalorder %s55, 3
      %p547 = por %p545, %p546
      %p548 = scmp.ne.s32.totalorder %s540, %s543
      %p549 = scmp.eq.s32.totalorder %s55, 0
      %p550 = por %p548, %p549
      %p551 = scmp.ne.s32.totalorder %s540, %s543
      %p552 = scmp.eq.s32.totalorder %s60, 3
      %p553 = por %p551, %p552
      %p554 = scmp.ne.s32.totalorder %s543, %s544
      %p555 = scmp.eq.s32.totalorder %s60, 0
      %p556 = por %p554, %p555
      %p557 = scmp.ne.s32.totalorder %s543, %s544
      %p558 = scmp.eq.s32.totalorder %s61, 3
      %p559 = por %p557, %p558
      %p561 = scmp.ne.s32.totalorder %s544, %s560
      %p562 = scmp.eq.s32.totalorder %s61, 0
      %p563 = por %p561, %p562
      %s564 = ssub.s32 %s63, %s70
      %p565 = scmp.eq.s32.totalorder %s564, 0
      %s567 = sadd.s32 %s566, 1
      %s568 = scalar_select %p565, %s566, %s567
      %p571 = pneg %p565
      %p572 = scmp.eq.s32.totalorder %s55, 3
      %p573 = por %p571, %p572
      %p574 = scmp.ne.s32.totalorder %s566, %s569
      %p575 = scmp.eq.s32.totalorder %s55, 0
      %p576 = por %p574, %p575
      %p577 = scmp.ne.s32.totalorder %s566, %s569
      %p578 = scmp.eq.s32.totalorder %s60, 3
      %p579 = por %p577, %p578
      %p580 = scmp.ne.s32.totalorder %s569, %s570
      %p581 = scmp.eq.s32.totalorder %s60, 0
      %p582 = por %p580, %p581
      %p583 = scmp.ne.s32.totalorder %s569, %s570
      %p584 = scmp.eq.s32.totalorder %s61, 3
      %p585 = por %p583, %p584
      %p587 = scmp.ne.s32.totalorder %s570, %s586
      %p588 = scmp.eq.s32.totalorder %s61, 0
      %p589 = por %p587, %p588
      %s590 = ssub.s32 %s62, %s74
      %p591 = scmp.eq.s32.totalorder %s590, 0
      %s593 = sadd.s32 %s592, 1
      %s594 = scalar_select %p591, %s592, %s593
      %p597 = pneg %p591
      %p598 = scmp.eq.s32.totalorder %s55, 3
      %p599 = por %p597, %p598
      %p600 = scmp.ne.s32.totalorder %s592, %s595
      %p601 = scmp.eq.s32.totalorder %s55, 0
      %p602 = por %p600, %p601
      %p603 = scmp.ne.s32.totalorder %s592, %s595
      %p604 = scmp.eq.s32.totalorder %s60, 3
      %p605 = por %p603, %p604
      %p606 = scmp.ne.s32.totalorder %s595, %s596
      %p607 = scmp.eq.s32.totalorder %s60, 0
      %p608 = por %p606, %p607
      %p609 = scmp.ne.s32.totalorder %s595, %s596
      %p610 = scmp.eq.s32.totalorder %s61, 3
      %p611 = por %p609, %p610
      %p613 = scmp.ne.s32.totalorder %s596, %s612
      %p614 = scmp.eq.s32.totalorder %s61, 0
      %p615 = por %p613, %p614
      %s616 = ssub.s32 %s62, %s74
      %s617 = ssub.s32 %s63, %s70
      %s618 = sor.u32 %s616, %s617
      %p619 = scmp.eq.s32.totalorder %s618, 0
      %s621 = sadd.s32 %s620, 1
      %s622 = scalar_select %p619, %s620, %s621
      %p625 = pneg %p619
      %p626 = scmp.eq.s32.totalorder %s55, 3
      %p627 = por %p625, %p626
      %p628 = scmp.ne.s32.totalorder %s620, %s623
      %p629 = scmp.eq.s32.totalorder %s55, 0
      %p630 = por %p628, %p629
      %p631 = scmp.ne.s32.totalorder %s620, %s623
      %p632 = scmp.eq.s32.totalorder %s60, 3
      %p633 = por %p631, %p632
      %p634 = scmp.ne.s32.totalorder %s623, %s624
      %p635 = scmp.eq.s32.totalorder %s60, 0
      %p636 = por %p634, %p635
      %p637 = scmp.ne.s32.totalorder %s623, %s624
      %p638 = scmp.eq.s32.totalorder %s61, 3
      %p639 = por %p637, %p638
      %p641 = scmp.ne.s32.totalorder %s624, %s640
      %p642 = scmp.eq.s32.totalorder %s61, 0
      %p643 = por %p641, %p642
      %p644 = scmp.le.s32.totalorder 1, %s55
      %p645 = scmp.lt.s32.totalorder %s55, 5
      %p646 = pnand %p644, %p645
      %p647 = pneg %p646
      // Predicated region
      $region9: #{tpu_custom_call.1} parent=5 // pred_check
        _
      $region10: #{tpu_custom_call.1} parent=5 // pred_check_branch
        %649 = sbr.rel (%p646) target = $region12
      $region11: #{tpu_custom_call.1} parent=5 // pred_region
        %s650 = ssub.s32 %s55, 1
        // Predicated region
        $region13: #{tpu_custom_call.1} parent=11 // pred_check
          %p651 = pneg %p140
        $region14: #{tpu_custom_call.1} parent=11 // pred_check_branch
          %653 = sbr.rel (%p651) target = $region16
        $region15: #{tpu_custom_call.1} parent=11 // pred_region
          %s655 = ssub.s32 128, 128
          %656 = vsyncadd [#allocation7], %s655
          %s658 = sshll.u32 [#allocation8], 4
          %s659 = int_to_ptr.vmem [resolvable:$true] %s658
          %661 = dma.hbm_to_vmem [thread:$0]  %s2, 128, %s659, [#allocation7]
        $region16: #{tpu_custom_call.1} parent=11 // pred_fallthru
          _
      $region12: #{tpu_custom_call.1} parent=5 // pred_fallthru
        _
      %p662 = scmp.lt.s32.totalorder %s55, 4
      // Predicated region
      $region17: #{tpu_custom_call.1} parent=5 // pred_check
        %p663 = pneg %p662
      $region18: #{tpu_custom_call.1} parent=5 // pred_check_branch
        %665 = sbr.rel (%p663) target = $region20
      $region19: #{tpu_custom_call.1} parent=5 // pred_region
        // Predicated region
        $region21: #{tpu_custom_call.1} parent=19 // pred_check
          %p666 = pneg %p87
        $region22: #{tpu_custom_call.1} parent=19 // pred_check_branch
          %668 = sbr.rel (%p666) target = $region24
        $region23: #{tpu_custom_call.1} parent=19 // pred_region
          %s669 = sand.u32 %s77, 1
          %s670 = scalar_lea.sflag [#allocation4], %s669
          %s671 = sand.u32 %s77, 1
          %s672 = smul.addr %s671, 8
          %s673 = scalar_lea.vmem [#allocation3], %s672
          %s675 = ssub.s32 128, 128
          %676 = vsyncadd %s670, %s675
          %s677 = smul.addr %s62, 128
          %s678 = scalar_lea.hbm %s0, %s677
          %s680 = sshll.u32 %s673, 4
          %s681 = int_to_ptr.vmem [resolvable:$true] %s680
          %683 = dma.hbm_to_vmem [thread:$0]  %s678, 128, %s681, %s670
        $region24: #{tpu_custom_call.1} parent=19 // pred_fallthru
          _
        // Predicated region
        $region25: #{tpu_custom_call.1} parent=19 // pred_check
          %p684 = pneg %p113
        $region26: #{tpu_custom_call.1} parent=19 // pred_check_branch
          %686 = sbr.rel (%p684) target = $region28
        $region27: #{tpu_custom_call.1} parent=19 // pred_region
          %s687 = sand.u32 %s55, 1
          %s688 = scalar_lea.sflag [#allocation7], %s687
          %s689 = sand.u32 %s103, 1
          %s690 = smul.addr %s689, 8
          %s691 = scalar_lea.vmem [#allocation6], %s690
          %s693 = ssub.s32 128, 128
          %694 = vsyncadd %s688, %s693
          %s695 = smul.addr %s62, 128
          %s696 = scalar_lea.hbm %s1, %s695
          %s698 = sshll.u32 %s691, 4
          %s699 = int_to_ptr.vmem [resolvable:$true] %s698
          %701 = dma.hbm_to_vmem [thread:$0]  %s696, 128, %s699, %s688
        $region28: #{tpu_custom_call.1} parent=19 // pred_fallthru
          _
        // Predicated region
        $region29: #{tpu_custom_call.1} parent=19 // pred_check
          %p702 = pneg %p160
        $region30: #{tpu_custom_call.1} parent=19 // pred_check_branch
          %704 = sbr.rel (%p702) target = $region32
        $region31: #{tpu_custom_call.1} parent=19 // pred_region
          %s705 = sand.u32 %s55, 1
          %s706 = scalar_lea.sflag [#allocation10], %s705
          %s707 = sand.u32 %s150, 1
          %s708 = smul.addr %s707, 8
          %s709 = scalar_lea.vmem [#allocation9], %s708
          %s711 = ssub.s32 128, 128
          %712 = vsyncadd %s706, %s711
          %s713 = smul.addr %s62, 128
          %s714 = scalar_lea.hbm %s3, %s713
          %s716 = sshll.u32 %s709, 4
          %s717 = int_to_ptr.vmem [resolvable:$true] %s716
          %719 = dma.hbm_to_vmem [thread:$0]  %s714, 128, %s717, %s706
        $region32: #{tpu_custom_call.1} parent=19 // pred_fallthru
          _
        // Predicated region
        $region33: #{tpu_custom_call.1} parent=19 // pred_check
          %p720 = pneg %p186
        $region34: #{tpu_custom_call.1} parent=19 // pred_check_branch
          %722 = sbr.rel (%p720) target = $region36
        $region35: #{tpu_custom_call.1} parent=19 // pred_region
          %s723 = sand.u32 %s55, 1
          %s724 = scalar_lea.sflag [#allocation10], %s723
          %s725 = sand.u32 %s176, 1
          %s726 = smul.addr %s725, 128
          %s727 = scalar_lea.vmem [#allocation11], %s726
          %s729 = ssub.s32 2048, 2048
          %730 = vsyncadd %s724, %s729
          %s731 = smul.addr %s63, 16
          %s732 = smul.addr %s731, 128
          %s733 = scalar_lea.hbm %s4, %s732
          %s734 = sshll.u32 %s727, 4
          %s735 = int_to_ptr.vmem [resolvable:$true] %s734
          %740 = dma.hbm_to_vmem [thread:$0]  %s733, 2048, %s735, %s724, 128, 128, 8
        $region36: #{tpu_custom_call.1} parent=19 // pred_fallthru
          _
        // Predicated region
        $region37: #{tpu_custom_call.1} parent=19 // pred_check
          %p741 = pneg %p212
        $region38: #{tpu_custom_call.1} parent=19 // pred_check_branch
          %743 = sbr.rel (%p741) target = $region40
        $region39: #{tpu_custom_call.1} parent=19 // pred_region
          %s744 = sand.u32 %s55, 1
          %s745 = scalar_lea.sflag [#allocation13], %s744
          %s746 = sand.u32 %s202, 1
          %s747 = smul.addr %s746, 256
          %s748 = scalar_lea.vmem [#allocation12], %s747
          %s750 = ssub.s32 4096, 4096
          %751 = vsyncadd %s745, %s750
          %s752 = smul.addr %s63, 32
          %s753 = smul.addr %s752, 128
          %s754 = scalar_lea.hbm %s5, %s753
          %s755 = sshll.u32 %s748, 4
          %s756 = int_to_ptr.vmem [resolvable:$true] %s755
          %761 = dma.hbm_to_vmem [thread:$0]  %s754, 4096, %s756, %s745, 256, 256, 16
        $region40: #{tpu_custom_call.1} parent=19 // pred_fallthru
          _
        // Predicated region
        $region41: #{tpu_custom_call.1} parent=19 // pred_check
          %p762 = pneg %p238
        $region42: #{tpu_custom_call.1} parent=19 // pred_check_branch
          %764 = sbr.rel (%p762) target = $region44
        $region43: #{tpu_custom_call.1} parent=19 // pred_region
          %s765 = sand.u32 %s55, 1
          %s766 = scalar_lea.sflag [#allocation13], %s765
          %s767 = sand.u32 %s228, 1
          %s768 = smul.addr %s767, 128
          %s769 = scalar_lea.vmem [#allocation14], %s768
          %s771 = ssub.s32 2048, 2048
          %772 = vsyncadd %s766, %s771
          %s773 = smul.addr %s63, 16
          %s774 = smul.addr %s773, 128
          %s775 = scalar_lea.hbm %s6, %s774
          %s776 = sshll.u32 %s769, 4
          %s777 = int_to_ptr.vmem [resolvable:$true] %s776
          %782 = dma.hbm_to_vmem [thread:$0]  %s775, 2048, %s777, %s766, 128, 128, 8
        $region44: #{tpu_custom_call.1} parent=19 // pred_fallthru
          _
        // Predicated region
        $region45: #{tpu_custom_call.1} parent=19 // pred_check
          %p783 = pneg %p264
        $region46: #{tpu_custom_call.1} parent=19 // pred_check_branch
          %785 = sbr.rel (%p783) target = $region48
        $region47: #{tpu_custom_call.1} parent=19 // pred_region
          %p786 = scmp.lt.s32.totalorder %s63, 1
          %s787 = scalar_select %p786, %s63, 1
          %s788 = scalar_lea.vmem %s7, %s787
        $region48: #{tpu_custom_call.1} parent=19 // pred_fallthru
          _
        // Predicated region
        $region49: #{tpu_custom_call.1} parent=19 // pred_check
          %p789 = pneg %p290
        $region50: #{tpu_custom_call.1} parent=19 // pred_check_branch
          %791 = sbr.rel (%p789) target = $region52
        $region51: #{tpu_custom_call.1} parent=19 // pred_region
          %p792 = scmp.lt.s32.totalorder %s63, 1
          %s793 = scalar_select %p792, %s63, 1
          %s794 = scalar_lea.vmem %s8, %s793
        $region52: #{tpu_custom_call.1} parent=19 // pred_fallthru
          _
        // Predicated region
        $region53: #{tpu_custom_call.1} parent=19 // pred_check
          %p795 = pneg %p316
        $region54: #{tpu_custom_call.1} parent=19 // pred_check_branch
          %797 = sbr.rel (%p795) target = $region56
        $region55: #{tpu_custom_call.1} parent=19 // pred_region
          %s798 = sand.u32 %s55, 1
          %s799 = scalar_lea.sflag [#allocation16], %s798
          %s800 = sand.u32 %s306, 1
          %s801 = smul.addr %s800, 128
          %s802 = scalar_lea.vmem [#allocation15], %s801
          %s804 = ssub.s32 2048, 2048
          %805 = vsyncadd %s799, %s804
          %s806 = smul.addr %s63, 16
          %s807 = smul.addr %s806, 128
          %s808 = scalar_lea.hbm %s9, %s807
          %s809 = sshll.u32 %s802, 4
          %s810 = int_to_ptr.vmem [resolvable:$true] %s809
          %815 = dma.hbm_to_vmem [thread:$0]  %s808, 2048, %s810, %s799, 128, 128, 8
        $region56: #{tpu_custom_call.1} parent=19 // pred_fallthru
          _
        // Predicated region
        $region57: #{tpu_custom_call.1} parent=19 // pred_check
          %p816 = pneg %p342
        $region58: #{tpu_custom_call.1} parent=19 // pred_check_branch
          %818 = sbr.rel (%p816) target = $region60
        $region59: #{tpu_custom_call.1} parent=19 // pred_region
          %s819 = sand.u32 %s55, 1
          %s820 = scalar_lea.sflag [#allocation16], %s819
          %s821 = sand.u32 %s332, 1
          %s822 = smul.addr %s821, 256
          %s823 = scalar_lea.vmem [#allocation17], %s822
          %s825 = ssub.s32 4096, 4096
          %826 = vsyncadd %s820, %s825
          %s827 = smul.addr %s63, 32
          %s828 = smul.addr %s827, 128
          %s829 = scalar_lea.hbm %s10, %s828
          %s830 = sshll.u32 %s823, 4
          %s831 = int_to_ptr.vmem [resolvable:$true] %s830
          %836 = dma.hbm_to_vmem [thread:$0]  %s829, 4096, %s831, %s820, 256, 256, 16
        $region60: #{tpu_custom_call.1} parent=19 // pred_fallthru
          _
        // Predicated region
        $region61: #{tpu_custom_call.1} parent=19 // pred_check
          %p837 = pneg %p368
        $region62: #{tpu_custom_call.1} parent=19 // pred_check_branch
          %839 = sbr.rel (%p837) target = $region64
        $region63: #{tpu_custom_call.1} parent=19 // pred_region
          %s840 = sand.u32 %s55, 1
          %s841 = scalar_lea.sflag [#allocation19], %s840
          %s842 = sand.u32 %s358, 1
          %s843 = smul.addr %s842, 128
          %s844 = scalar_lea.vmem [#allocation18], %s843
          %s846 = ssub.s32 2048, 2048
          %847 = vsyncadd %s841, %s846
          %s848 = smul.addr %s63, 16
          %s849 = smul.addr %s848, 128
          %s850 = scalar_lea.hbm %s11, %s849
          %s851 = sshll.u32 %s844, 4
          %s852 = int_to_ptr.vmem [resolvable:$true] %s851
          %857 = dma.hbm_to_vmem [thread:$0]  %s850, 2048, %s852, %s841, 128, 128, 8
        $region64: #{tpu_custom_call.1} parent=19 // pred_fallthru
          _
        // Predicated region
        $region65: #{tpu_custom_call.1} parent=19 // pred_check
          %p858 = pneg %p394
        $region66: #{tpu_custom_call.1} parent=19 // pred_check_branch
          %860 = sbr.rel (%p858) target = $region68
        $region67: #{tpu_custom_call.1} parent=19 // pred_region
          %p861 = scmp.lt.s32.totalorder %s63, 1
          %s862 = scalar_select %p861, %s63, 1
          %s863 = scalar_lea.vmem %s12, %s862
        $region68: #{tpu_custom_call.1} parent=19 // pred_fallthru
          _
        // Predicated region
        $region69: #{tpu_custom_call.1} parent=19 // pred_check
          %p864 = pneg %p420
        $region70: #{tpu_custom_call.1} parent=19 // pred_check_branch
          %866 = sbr.rel (%p864) target = $region72
        $region71: #{tpu_custom_call.1} parent=19 // pred_region
          %p867 = scmp.lt.s32.totalorder %s63, 1
          %s868 = scalar_select %p867, %s63, 1
          %s869 = scalar_lea.vmem %s13, %s868
        $region72: #{tpu_custom_call.1} parent=19 // pred_fallthru
          _
        // Predicated region
        $region73: #{tpu_custom_call.1} parent=19 // pred_check
          %p870 = pneg %p446
        $region74: #{tpu_custom_call.1} parent=19 // pred_check_branch
          %872 = sbr.rel (%p870) target = $region76
        $region75: #{tpu_custom_call.1} parent=19 // pred_region
          %s873 = sand.u32 %s55, 1
          %s874 = scalar_lea.sflag [#allocation19], %s873
          %s875 = sand.u32 %s436, 1
          %s876 = smul.addr %s875, 256
          %s877 = scalar_lea.vmem [#allocation20], %s876
          %s879 = ssub.s32 4096, 4096
          %880 = vsyncadd %s874, %s879
          %s881 = smul.addr %s63, 32
          %s882 = smul.addr %s881, 128
          %s883 = scalar_lea.hbm %s14, %s882
          %s884 = sshll.u32 %s877, 4
          %s885 = int_to_ptr.vmem [resolvable:$true] %s884
          %890 = dma.hbm_to_vmem [thread:$0]  %s883, 4096, %s885, %s874, 256, 256, 16
        $region76: #{tpu_custom_call.1} parent=19 // pred_fallthru
          _
        // Predicated region
        $region77: #{tpu_custom_call.1} parent=19 // pred_check
          %p891 = pneg %p472
        $region78: #{tpu_custom_call.1} parent=19 // pred_check_branch
          %893 = sbr.rel (%p891) target = $region80
        $region79: #{tpu_custom_call.1} parent=19 // pred_region
          %p894 = scmp.lt.s32.totalorder %s63, 1
          %s895 = scalar_select %p894, %s63, 1
          %s896 = smul.addr %s895, 2
          %s897 = scalar_lea.vmem %s15, %s896
        $region80: #{tpu_custom_call.1} parent=19 // pred_fallthru
          _
        // Predicated region
        $region81: #{tpu_custom_call.1} parent=19 // pred_check
          %p898 = pneg %p498
        $region82: #{tpu_custom_call.1} parent=19 // pred_check_branch
          %900 = sbr.rel (%p898) target = $region84
        $region83: #{tpu_custom_call.1} parent=19 // pred_region
          %s901 = sand.u32 %s488, 1
          %s902 = scalar_lea.sflag [#allocation22], %s901
          %s903 = sand.u32 %s488, 1
          %s904 = smul.addr %s903, 256
          %s905 = scalar_lea.vmem [#allocation21], %s904
          %s907 = ssub.s32 4096, 4096
          %908 = vsyncadd %s902, %s907
          %s909 = smul.addr %s63, 32
          %s910 = smul.addr %s909, 128
          %s911 = scalar_lea.hbm %s16, %s910
          %s912 = sshll.u32 %s905, 4
          %s913 = int_to_ptr.vmem [resolvable:$true] %s912
          %918 = dma.hbm_to_vmem [thread:$0]  %s911, 4096, %s913, %s902, 128, 128, 8
        $region84: #{tpu_custom_call.1} parent=19 // pred_fallthru
          _
        // Predicated region
        $region85: #{tpu_custom_call.1} parent=19 // pred_check
          %p919 = pneg %p524
        $region86: #{tpu_custom_call.1} parent=19 // pred_check_branch
          %921 = sbr.rel (%p919) target = $region88
        $region87: #{tpu_custom_call.1} parent=19 // pred_region
          %p922 = scmp.lt.s32.totalorder %s63, 1
          %s923 = scalar_select %p922, %s63, 1
          %s924 = scalar_lea.vmem %s17, %s923
        $region88: #{tpu_custom_call.1} parent=19 // pred_fallthru
          _
        // Predicated region
        $region89: #{tpu_custom_call.1} parent=19 // pred_check
          %p925 = pneg %p550
        $region90: #{tpu_custom_call.1} parent=19 // pred_check_branch
          %927 = sbr.rel (%p925) target = $region92
        $region91: #{tpu_custom_call.1} parent=19 // pred_region
          %p928 = scmp.lt.s32.totalorder %s63, 1
          %s929 = scalar_select %p928, %s63, 1
          %s930 = scalar_lea.vmem %s18, %s929
        $region92: #{tpu_custom_call.1} parent=19 // pred_fallthru
          _
        // Predicated region
        $region93: #{tpu_custom_call.1} parent=19 // pred_check
          %p931 = pneg %p576
        $region94: #{tpu_custom_call.1} parent=19 // pred_check_branch
          %933 = sbr.rel (%p931) target = $region96
        $region95: #{tpu_custom_call.1} parent=19 // pred_region
          %p934 = scmp.lt.s32.totalorder %s63, 1
          %s935 = scalar_select %p934, %s63, 1
          %s936 = scalar_lea.vmem %s19, %s935
        $region96: #{tpu_custom_call.1} parent=19 // pred_fallthru
          _
      $region20: #{tpu_custom_call.1} parent=5 // pred_fallthru
        _
      %p937 = scmp.le.s32.totalorder 1, %s55
      %p938 = scmp.lt.s32.totalorder %s55, 5
      %p939 = pnand %p937, %p938
      %p940 = pneg %p939
      // Predicated region
      $region97: #{tpu_custom_call.1} parent=5 // pred_check
        _
      $region98: #{tpu_custom_call.1} parent=5 // pred_check_branch
        %942 = sbr.rel (%p939) target = $region100
      $region99: #{tpu_custom_call.1} parent=5 // pred_region
        %s943 = ssub.s32 %s55, 1
        %s944 = sand.u32 %s80, 1
        %s945 = scalar_lea.sflag [#allocation4], %s944
        %s946 = sand.u32 %s80, 1
        %s947 = smul.addr %s946, 8
        %s948 = scalar_lea.vmem [#allocation3], %s947
        // Predicated region
        $region101: #{tpu_custom_call.1} parent=99 // pred_check
          %p949 = pneg %p93
        $region102: #{tpu_custom_call.1} parent=99 // pred_check_branch
          %951 = sbr.rel (%p949) target = $region104
        $region103: #{tpu_custom_call.1} parent=99 // pred_region
          %952 = dma.done %s945, 128
        $region104: #{tpu_custom_call.1} parent=99 // pred_fallthru
          _
        %s953 = sand.u32 %s60, 1
        %s954 = scalar_lea.sflag [#allocation7], %s953
        %s955 = sand.u32 %s106, 1
        %s956 = smul.addr %s955, 8
        %s957 = scalar_lea.vmem [#allocation6], %s956
        // Predicated region
        $region105: #{tpu_custom_call.1} parent=99 // pred_check
          %p958 = pneg %p119
        $region106: #{tpu_custom_call.1} parent=99 // pred_check_branch
          %960 = sbr.rel (%p958) target = $region108
        $region107: #{tpu_custom_call.1} parent=99 // pred_region
          %961 = dma.done %s954, 128
        $region108: #{tpu_custom_call.1} parent=99 // pred_fallthru
          _
        // Predicated region
        $region109: #{tpu_custom_call.1} parent=99 // pred_check
          %p962 = pneg %p140
        $region110: #{tpu_custom_call.1} parent=99 // pred_check_branch
          %964 = sbr.rel (%p962) target = $region112
        $region111: #{tpu_custom_call.1} parent=99 // pred_region
          %965 = dma.done [#allocation7], 128
        $region112: #{tpu_custom_call.1} parent=99 // pred_fallthru
          _
        %s966 = sand.u32 %s60, 1
        %s967 = scalar_lea.sflag [#allocation10], %s966
        %s968 = sand.u32 %s153, 1
        %s969 = smul.addr %s968, 8
        %s970 = scalar_lea.vmem [#allocation9], %s969
        // Predicated region
        $region113: #{tpu_custom_call.1} parent=99 // pred_check
          %p971 = pneg %p166
        $region114: #{tpu_custom_call.1} parent=99 // pred_check_branch
          %973 = sbr.rel (%p971) target = $region116
        $region115: #{tpu_custom_call.1} parent=99 // pred_region
          %974 = dma.done %s967, 128
        $region116: #{tpu_custom_call.1} parent=99 // pred_fallthru
          _
        %s975 = sand.u32 %s60, 1
        %s976 = scalar_lea.sflag [#allocation10], %s975
        %s977 = sand.u32 %s179, 1
        %s978 = smul.addr %s977, 128
        %s979 = scalar_lea.vmem [#allocation11], %s978
        // Predicated region
        $region117: #{tpu_custom_call.1} parent=99 // pred_check
          %p980 = pneg %p192
        $region118: #{tpu_custom_call.1} parent=99 // pred_check_branch
          %982 = sbr.rel (%p980) target = $region120
        $region119: #{tpu_custom_call.1} parent=99 // pred_region
          %983 = dma.done %s976, 2048
        $region120: #{tpu_custom_call.1} parent=99 // pred_fallthru
          _
        %s984 = sand.u32 %s60, 1
        %s985 = scalar_lea.sflag [#allocation13], %s984
        %s986 = sand.u32 %s205, 1
        %s987 = smul.addr %s986, 256
        %s988 = scalar_lea.vmem [#allocation12], %s987
        // Predicated region
        $region121: #{tpu_custom_call.1} parent=99 // pred_check
          %p989 = pneg %p218
        $region122: #{tpu_custom_call.1} parent=99 // pred_check_branch
          %991 = sbr.rel (%p989) target = $region124
        $region123: #{tpu_custom_call.1} parent=99 // pred_region
          %992 = dma.done %s985, 4096
        $region124: #{tpu_custom_call.1} parent=99 // pred_fallthru
          _
        %s993 = sand.u32 %s60, 1
        %s994 = scalar_lea.sflag [#allocation13], %s993
        %s995 = sand.u32 %s231, 1
        %s996 = smul.addr %s995, 128
        %s997 = scalar_lea.vmem [#allocation14], %s996
        // Predicated region
        $region125: #{tpu_custom_call.1} parent=99 // pred_check
          %p998 = pneg %p244
        $region126: #{tpu_custom_call.1} parent=99 // pred_check_branch
          %1000 = sbr.rel (%p998) target = $region128
        $region127: #{tpu_custom_call.1} parent=99 // pred_region
          %1001 = dma.done %s994, 2048
        $region128: #{tpu_custom_call.1} parent=99 // pred_fallthru
          _
        %s1002 = sand.u32 %s60, 1
        %s1003 = scalar_lea.sflag [#allocation16], %s1002
        %s1004 = sand.u32 %s309, 1
        %s1005 = smul.addr %s1004, 128
        %s1006 = scalar_lea.vmem [#allocation15], %s1005
        // Predicated region
        $region129: #{tpu_custom_call.1} parent=99 // pred_check
          %p1007 = pneg %p322
        $region130: #{tpu_custom_call.1} parent=99 // pred_check_branch
          %1009 = sbr.rel (%p1007) target = $region132
        $region131: #{tpu_custom_call.1} parent=99 // pred_region
          %1010 = dma.done %s1003, 2048
        $region132: #{tpu_custom_call.1} parent=99 // pred_fallthru
          _
        %s1011 = sand.u32 %s60, 1
        %s1012 = scalar_lea.sflag [#allocation16], %s1011
        %s1013 = sand.u32 %s335, 1
        %s1014 = smul.addr %s1013, 256
        %s1015 = scalar_lea.vmem [#allocation17], %s1014
        // Predicated region
        $region133: #{tpu_custom_call.1} parent=99 // pred_check
          %p1016 = pneg %p348
        $region134: #{tpu_custom_call.1} parent=99 // pred_check_branch
          %1018 = sbr.rel (%p1016) target = $region136
        $region135: #{tpu_custom_call.1} parent=99 // pred_region
          %1019 = dma.done %s1012, 4096
        $region136: #{tpu_custom_call.1} parent=99 // pred_fallthru
          _
        %s1020 = sand.u32 %s60, 1
        %s1021 = scalar_lea.sflag [#allocation19], %s1020
        %s1022 = sand.u32 %s361, 1
        %s1023 = smul.addr %s1022, 128
        %s1024 = scalar_lea.vmem [#allocation18], %s1023
        // Predicated region
        $region137: #{tpu_custom_call.1} parent=99 // pred_check
          %p1025 = pneg %p374
        $region138: #{tpu_custom_call.1} parent=99 // pred_check_branch
          %1027 = sbr.rel (%p1025) target = $region140
        $region139: #{tpu_custom_call.1} parent=99 // pred_region
          %1028 = dma.done %s1021, 2048
        $region140: #{tpu_custom_call.1} parent=99 // pred_fallthru
          _
        %s1029 = sand.u32 %s60, 1
        %s1030 = scalar_lea.sflag [#allocation19], %s1029
        %s1031 = sand.u32 %s439, 1
        %s1032 = smul.addr %s1031, 256
        %s1033 = scalar_lea.vmem [#allocation20], %s1032
        // Predicated region
        $region141: #{tpu_custom_call.1} parent=99 // pred_check
          %p1034 = pneg %p452
        $region142: #{tpu_custom_call.1} parent=99 // pred_check_branch
          %1036 = sbr.rel (%p1034) target = $region144
        $region143: #{tpu_custom_call.1} parent=99 // pred_region
          %1037 = dma.done %s1030, 4096
        $region144: #{tpu_custom_call.1} parent=99 // pred_fallthru
          _
        %s1038 = sand.u32 %s491, 1
        %s1039 = scalar_lea.sflag [#allocation22], %s1038
        %s1040 = sand.u32 %s491, 1
        %s1041 = smul.addr %s1040, 256
        %s1042 = scalar_lea.vmem [#allocation21], %s1041
        // Predicated region
        $region145: #{tpu_custom_call.1} parent=99 // pred_check
          %p1043 = pneg %p504
        $region146: #{tpu_custom_call.1} parent=99 // pred_check_branch
          %1045 = sbr.rel (%p1043) target = $region148
        $region147: #{tpu_custom_call.1} parent=99 // pred_region
          %1046 = dma.done %s1039, 4096
        $region148: #{tpu_custom_call.1} parent=99 // pred_fallthru
          _
        %s1047 = sand.u32 %s80, 1
        %s1048 = scalar_lea.sflag [#allocation4], %s1047
        %s1049 = sand.u32 %s80, 1
        %s1050 = smul.addr %s1049, 8
        %s1051 = scalar_lea.vmem [#allocation3], %s1050
        %p1052 = pneg %p93
        %p1053 = pneg %p90
        %s1054 = sand.u32 %s60, 1
        %s1055 = scalar_lea.sflag [#allocation7], %s1054
        %s1056 = sand.u32 %s106, 1
        %s1057 = smul.addr %s1056, 8
        %s1058 = scalar_lea.vmem [#allocation6], %s1057
        %p1059 = pneg %p119
        %p1060 = pneg %p116
        %p1061 = pneg %p140
        %p1062 = pneg %p137
        %s1063 = sand.u32 %s60, 1
        %s1064 = scalar_lea.sflag [#allocation10], %s1063
        %s1065 = sand.u32 %s153, 1
        %s1066 = smul.addr %s1065, 8
        %s1067 = scalar_lea.vmem [#allocation9], %s1066
        %p1068 = pneg %p166
        %p1069 = pneg %p163
        %s1070 = sand.u32 %s60, 1
        %s1071 = scalar_lea.sflag [#allocation10], %s1070
        %s1072 = sand.u32 %s179, 1
        %s1073 = smul.addr %s1072, 128
        %s1074 = scalar_lea.vmem [#allocation11], %s1073
        %p1075 = pneg %p192
        %p1076 = pneg %p189
        %s1077 = sand.u32 %s60, 1
        %s1078 = scalar_lea.sflag [#allocation13], %s1077
        %s1079 = sand.u32 %s205, 1
        %s1080 = smul.addr %s1079, 256
        %s1081 = scalar_lea.vmem [#allocation12], %s1080
        %p1082 = pneg %p218
        %p1083 = pneg %p215
        %s1084 = sand.u32 %s60, 1
        %s1085 = scalar_lea.sflag [#allocation13], %s1084
        %s1086 = sand.u32 %s231, 1
        %s1087 = smul.addr %s1086, 128
        %s1088 = scalar_lea.vmem [#allocation14], %s1087
        %p1089 = pneg %p244
        %p1090 = pneg %p241
        %p1091 = scmp.lt.s32.totalorder %s65, 1
        %s1092 = scalar_select %p1091, %s65, 1
        %s1093 = scalar_lea.vmem %s7, %s1092
        %p1094 = pneg %p270
        %p1095 = pneg %p267
        %p1096 = scmp.lt.s32.totalorder %s65, 1
        %s1097 = scalar_select %p1096, %s65, 1
        %s1098 = scalar_lea.vmem %s8, %s1097
        %p1099 = pneg %p296
        %p1100 = pneg %p293
        %s1101 = sand.u32 %s60, 1
        %s1102 = scalar_lea.sflag [#allocation16], %s1101
        %s1103 = sand.u32 %s309, 1
        %s1104 = smul.addr %s1103, 128
        %s1105 = scalar_lea.vmem [#allocation15], %s1104
        %p1106 = pneg %p322
        %p1107 = pneg %p319
        %s1108 = sand.u32 %s60, 1
        %s1109 = scalar_lea.sflag [#allocation16], %s1108
        %s1110 = sand.u32 %s335, 1
        %s1111 = smul.addr %s1110, 256
        %s1112 = scalar_lea.vmem [#allocation17], %s1111
        %p1113 = pneg %p348
        %p1114 = pneg %p345
        %s1115 = sand.u32 %s60, 1
        %s1116 = scalar_lea.sflag [#allocation19], %s1115
        %s1117 = sand.u32 %s361, 1
        %s1118 = smul.addr %s1117, 128
        %s1119 = scalar_lea.vmem [#allocation18], %s1118
        %p1120 = pneg %p374
        %p1121 = pneg %p371
        %p1122 = scmp.lt.s32.totalorder %s65, 1
        %s1123 = scalar_select %p1122, %s65, 1
        %s1124 = scalar_lea.vmem %s12, %s1123
        %p1125 = pneg %p400
        %p1126 = pneg %p397
        %p1127 = scmp.lt.s32.totalorder %s65, 1
        %s1128 = scalar_select %p1127, %s65, 1
        %s1129 = scalar_lea.vmem %s13, %s1128
        %p1130 = pneg %p426
        %p1131 = pneg %p423
        %s1132 = sand.u32 %s60, 1
        %s1133 = scalar_lea.sflag [#allocation19], %s1132
        %s1134 = sand.u32 %s439, 1
        %s1135 = smul.addr %s1134, 256
        %s1136 = scalar_lea.vmem [#allocation20], %s1135
        %p1137 = pneg %p452
        %p1138 = pneg %p449
        %p1139 = scmp.lt.s32.totalorder %s65, 1
        %s1140 = scalar_select %p1139, %s65, 1
        %s1141 = smul.addr %s1140, 2
        %s1142 = scalar_lea.vmem %s15, %s1141
        %p1143 = pneg %p478
        %p1144 = pneg %p475
        %s1145 = sand.u32 %s491, 1
        %s1146 = scalar_lea.sflag [#allocation22], %s1145
        %s1147 = sand.u32 %s491, 1
        %s1148 = smul.addr %s1147, 256
        %s1149 = scalar_lea.vmem [#allocation21], %s1148
        %p1150 = pneg %p504
        %p1151 = pneg %p501
        %p1152 = scmp.lt.s32.totalorder %s65, 1
        %s1153 = scalar_select %p1152, %s65, 1
        %s1154 = scalar_lea.vmem %s17, %s1153
        %p1155 = pneg %p530
        %p1156 = pneg %p527
        %p1157 = scmp.lt.s32.totalorder %s65, 1
        %s1158 = scalar_select %p1157, %s65, 1
        %s1159 = scalar_lea.vmem %s18, %s1158
        %p1160 = pneg %p556
        %p1161 = pneg %p553
        %p1162 = scmp.lt.s32.totalorder %s65, 1
        %s1163 = scalar_select %p1162, %s65, 1
        %s1164 = scalar_lea.vmem %s19, %s1163
        %p1165 = pneg %p582
        %p1166 = pneg %p579
        %p1167 = pneg %p608
        %p1168 = pneg %p605
        %s1169 = sand.u32 %s595, 1
        %s1170 = scalar_lea.sflag [#allocation5], %s1169
        %s1171 = sand.u32 %s595, 1
        %s1172 = smul.addr %s1171, 8
        %s1173 = scalar_lea.vmem [#allocation23], %s1172
        %p1174 = pneg %p636
        %p1175 = pneg %p633
        %s1176 = sand.u32 %s623, 1
        %s1177 = scalar_lea.sflag [#allocation25], %s1176
        %s1178 = sand.u32 %s623, 1
        %s1179 = smul.addr %s1178, 8
        %s1180 = scalar_lea.vmem [#allocation24], %s1179
        %p1181 = scmp.lt.s32.totalorder %s65, 1
        %s1182 = scalar_select %p1181, %s65, 1
        %s1183 = scalar_lea.vmem %s7, %s1182
        %p1184 = scmp.lt.s32.totalorder %s65, 1
        %s1185 = scalar_select %p1184, %s65, 1
        %s1186 = scalar_lea.vmem %s8, %s1185
        %p1187 = scmp.lt.s32.totalorder %s65, 1
        %s1188 = scalar_select %p1187, %s65, 1
        %s1189 = scalar_lea.vmem %s12, %s1188
        %p1190 = scmp.lt.s32.totalorder %s65, 1
        %s1191 = scalar_select %p1190, %s65, 1
        %s1192 = scalar_lea.vmem %s13, %s1191
        %p1193 = scmp.lt.s32.totalorder %s65, 1
        %s1194 = scalar_select %p1193, %s65, 1
        %s1195 = smul.addr %s1194, 2
        %s1196 = scalar_lea.vmem %s15, %s1195
        %p1197 = scmp.lt.s32.totalorder %s65, 1
        %s1198 = scalar_select %p1197, %s65, 1
        %s1199 = scalar_lea.vmem %s17, %s1198
        %p1200 = scmp.lt.s32.totalorder %s65, 1
        %s1201 = scalar_select %p1200, %s65, 1
        %s1202 = scalar_lea.vmem %s18, %s1201
        %p1203 = scmp.lt.s32.totalorder %s65, 1
        %s1204 = scalar_select %p1203, %s65, 1
        %s1205 = scalar_lea.vmem %s19, %s1204
        %p1206 = scmp.eq.s32.totalorder %s65, 0
        // Predicated region
        $region149: #{tpu_custom_call.1} parent=99 // pred_check
          %p1207 = pneg %p1206
        $region150: #{tpu_custom_call.1} parent=99 // pred_check_branch
          %1209 = sbr.rel (%p1207) target = $region152
        $region151: #{tpu_custom_call.1} parent=99 // pred_region
          %v1210 = vld [vmem:[%s948] sm:$0xff]
          %1211 = vst [vmem:[#allocation2] sm:$0xff] %v1210
        $region152: #{tpu_custom_call.1} parent=99 // pred_fallthru
          _
        %v1212 = vld [vmem:[#allocation2] sm:$0xff]
        %1213 = vst [vmem:[%s1180] sm:$0xff] %v1212
        %v1214 = vld [vmem:[#allocation8] sm:$0xff]
        %v1215 = vld [vmem:[%s979] sm:$0xff]
        %v1216 = vld [vmem:[%s979 + $0x8] sm:$0xff]
        %v1217 = vld [vmem:[%s979 + $0x10] sm:$0xff]
        %v1218 = vld [vmem:[%s979 + $0x18] sm:$0xff]
        %v1219 = vld [vmem:[%s979 + $0x20] sm:$0xff]
        %v1220 = vld [vmem:[%s979 + $0x28] sm:$0xff]
        %v1221 = vld [vmem:[%s979 + $0x30] sm:$0xff]
        %v1222 = vld [vmem:[%s979 + $0x38] sm:$0xff]
        %v1223 = vld [vmem:[%s979 + $0x40] sm:$0xff]
        %v1224 = vld [vmem:[%s979 + $0x48] sm:$0xff]
        %v1225 = vld [vmem:[%s979 + $0x50] sm:$0xff]
        %v1226 = vld [vmem:[%s979 + $0x58] sm:$0xff]
        %v1227 = vld [vmem:[%s979 + $0x60] sm:$0xff]
        %v1228 = vld [vmem:[%s979 + $0x68] sm:$0xff]
        %v1229 = vld [vmem:[%s979 + $0x70] sm:$0xff]
        %v1230 = vld [vmem:[%s979 + $0x78] sm:$0xff]
        %v1231 = vld [vmem:[%s988] sm:$0xff]
        %v1232 = vld [vmem:[%s988 + $0x8] sm:$0xff]
        %v1233 = vld [vmem:[%s988 + $0x10] sm:$0xff]
        %v1234 = vld [vmem:[%s988 + $0x18] sm:$0xff]
        %v1235 = vld [vmem:[%s988 + $0x20] sm:$0xff]
        %v1236 = vld [vmem:[%s988 + $0x28] sm:$0xff]
        %v1237 = vld [vmem:[%s988 + $0x30] sm:$0xff]
        %v1238 = vld [vmem:[%s988 + $0x38] sm:$0xff]
        %v1239 = vld [vmem:[%s988 + $0x40] sm:$0xff]
        %v1240 = vld [vmem:[%s988 + $0x48] sm:$0xff]
        %v1241 = vld [vmem:[%s988 + $0x50] sm:$0xff]
        %v1242 = vld [vmem:[%s988 + $0x58] sm:$0xff]
        %v1243 = vld [vmem:[%s988 + $0x60] sm:$0xff]
        %v1244 = vld [vmem:[%s988 + $0x68] sm:$0xff]
        %v1245 = vld [vmem:[%s988 + $0x70] sm:$0xff]
        %v1246 = vld [vmem:[%s988 + $0x78] sm:$0xff]
        %v1247 = vld [vmem:[%s988 + $0x80] sm:$0xff]
        %v1248 = vld [vmem:[%s988 + $0x88] sm:$0xff]
        %v1249 = vld [vmem:[%s988 + $0x90] sm:$0xff]
        %v1250 = vld [vmem:[%s988 + $0x98] sm:$0xff]
        %v1251 = vld [vmem:[%s988 + $0xa0] sm:$0xff]
        %v1252 = vld [vmem:[%s988 + $0xa8] sm:$0xff]
        %v1253 = vld [vmem:[%s988 + $0xb0] sm:$0xff]
        %v1254 = vld [vmem:[%s988 + $0xb8] sm:$0xff]
        %v1255 = vld [vmem:[%s988 + $0xc0] sm:$0xff]
        %v1256 = vld [vmem:[%s988 + $0xc8] sm:$0xff]
        %v1257 = vld [vmem:[%s988 + $0xd0] sm:$0xff]
        %v1258 = vld [vmem:[%s988 + $0xd8] sm:$0xff]
        %v1259 = vld [vmem:[%s988 + $0xe0] sm:$0xff]
        %v1260 = vld [vmem:[%s988 + $0xe8] sm:$0xff]
        %v1261 = vld [vmem:[%s988 + $0xf0] sm:$0xff]
        %v1262 = vld [vmem:[%s988 + $0xf8] sm:$0xff]
        %v1263 = vld [vmem:[%s997] sm:$0xff]
        %v1264 = vld [vmem:[%s997 + $0x8] sm:$0xff]
        %v1265 = vld [vmem:[%s997 + $0x10] sm:$0xff]
        %v1266 = vld [vmem:[%s997 + $0x18] sm:$0xff]
        %v1267 = vld [vmem:[%s997 + $0x20] sm:$0xff]
        %v1268 = vld [vmem:[%s997 + $0x28] sm:$0xff]
        %v1269 = vld [vmem:[%s997 + $0x30] sm:$0xff]
        %v1270 = vld [vmem:[%s997 + $0x38] sm:$0xff]
        %v1271 = vld [vmem:[%s997 + $0x40] sm:$0xff]
        %v1272 = vld [vmem:[%s997 + $0x48] sm:$0xff]
        %v1273 = vld [vmem:[%s997 + $0x50] sm:$0xff]
        %v1274 = vld [vmem:[%s997 + $0x58] sm:$0xff]
        %v1275 = vld [vmem:[%s997 + $0x60] sm:$0xff]
        %v1276 = vld [vmem:[%s997 + $0x68] sm:$0xff]
        %v1277 = vld [vmem:[%s997 + $0x70] sm:$0xff]
        %v1278 = vld [vmem:[%s997 + $0x78] sm:$0xff]
        %1279 = vmatprep.subr.mxu0 0.0
        %1280 = vmatpush1.msra.mxu0 %v1230
        %1281 = vmatprep.subr.mxu0 0.0
        %1282 = vmatpush1.msra.mxu0 %v1229
        %1283 = vmatprep.subr.mxu0 0.0
        %1284 = vmatpush1.msra.mxu0 %v1228
        %1285 = vmatprep.subr.mxu0 0.0
        %1286 = vmatpush1.msra.mxu0 %v1227
        %1287 = vmatprep.subr.mxu0 0.0
        %1288 = vmatpush1.msra.mxu0 %v1226
        %1289 = vmatprep.subr.mxu0 0.0
        %1290 = vmatpush1.msra.mxu0 %v1225
        %1291 = vmatprep.subr.mxu0 0.0
        %1292 = vmatpush1.msra.mxu0 %v1224
        %1293 = vmatprep.subr.mxu0 0.0
        %1294 = vmatpush1.msra.mxu0 %v1223
        %1295 = vmatprep.subr.mxu0 0.0
        %1296 = vmatpush1.msra.mxu0 %v1222
        %1297 = vmatprep.subr.mxu0 0.0
        %1298 = vmatpush1.msra.mxu0 %v1221
        %1299 = vmatprep.subr.mxu0 0.0
        %1300 = vmatpush1.msra.mxu0 %v1220
        %1301 = vmatprep.subr.mxu0 0.0
        %1302 = vmatpush1.msra.mxu0 %v1219
        %1303 = vmatprep.subr.mxu0 0.0
        %1304 = vmatpush1.msra.mxu0 %v1218
        %1305 = vmatprep.subr.mxu0 0.0
        %1306 = vmatpush1.msra.mxu0 %v1217
        %1307 = vmatprep.subr.mxu0 0.0
        %1308 = vmatpush1.msra.mxu0 %v1216
        %1309 = vmatprep.subr.mxu0 0.0
        %1310 = vmatpush1.msra.mxu0 %v1215
        %1311 = vmatprep.subr.mxu0 0.0
        %1312 = vmatpush2.msra.mxu0 0.0
        %1313 = vmatprep.subr.mxu0 0.0
        %1314 = vmatpush2.msra.mxu0 0.0
        %1315 = vmatprep.subr.mxu0 0.0
        %1316 = vmatpush2.msra.mxu0 0.0
        %1317 = vmatprep.subr.mxu0 0.0
        %1318 = vmatpush2.msra.mxu0 0.0
        %1319 = vmatprep.subr.mxu0 0.0
        %1320 = vmatpush2.msra.mxu0 0.0
        %1321 = vmatprep.subr.mxu0 0.0
        %1322 = vmatpush2.msra.mxu0 0.0
        %1323 = vmatprep.subr.mxu0 0.0
        %1324 = vmatpush2.msra.mxu0 0.0
        %1325 = vmatprep.subr.mxu0 0.0
        %1326 = vmatpush2.msra.mxu0 0.0
        %1327 = vmatprep.subr.mxu0 0.0
        %1328 = vmatpush2.msra.mxu0 0.0
        %1329 = vmatprep.subr.mxu0 0.0
        %1330 = vmatpush2.msra.mxu0 0.0
        %1331 = vmatprep.subr.mxu0 0.0
        %1332 = vmatpush2.msra.mxu0 0.0
        %1333 = vmatprep.subr.mxu0 0.0
        %1334 = vmatpush2.msra.mxu0 0.0
        %1335 = vmatprep.subr.mxu0 0.0
        %1336 = vmatpush2.msra.mxu0 0.0
        %1337 = vmatprep.subr.mxu0 0.0
        %1338 = vmatpush2.msra.mxu0 0.0
        %1339 = vmatprep.subr.mxu0 0.0
        %1340 = vmatpush2.msra.mxu0 0.0
        %1341 = vmatprep.subr.mxu0 0.0
        %1342 = vmatpush2.msra.mxu0 0.0
        %1343 = vmatprep.mubr.f32.mxu0 0.0
        %1344 = vmatmul.mubr.f32.gmra.mxu0 %v1212
        %v1345 = vpop.f32.mrf.mxu0
        %v1346 = vadd.f32 0.0, %v1345
        %v1347 = vpop.f32.mrf.mxu0
        %1348 = vdwg.mxu0
        %1349 = vmatprep.subr.mxu0 %v1262
        %1350 = vmatpush1.msra.mxu0 %v1261
        %1351 = vmatprep.subr.mxu0 %v1260
        %1352 = vmatpush1.msra.mxu0 %v1259
        %1353 = vmatprep.subr.mxu0 %v1258
        %1354 = vmatpush1.msra.mxu0 %v1257
        %1355 = vmatprep.subr.mxu0 %v1256
        %1356 = vmatpush1.msra.mxu0 %v1255
        %1357 = vmatprep.subr.mxu0 %v1254
        %1358 = vmatpush1.msra.mxu0 %v1253
        %1359 = vmatprep.subr.mxu0 %v1252
        %1360 = vmatpush1.msra.mxu0 %v1251
        %1361 = vmatprep.subr.mxu0 %v1250
        %1362 = vmatpush1.msra.mxu0 %v1249
        %1363 = vmatprep.subr.mxu0 %v1248
        %1364 = vmatpush1.msra.mxu0 %v1247
        %1365 = vmatprep.subr.mxu0 %v1246
        %1366 = vmatpush1.msra.mxu0 %v1245
        %1367 = vmatprep.subr.mxu0 %v1244
        %1368 = vmatpush1.msra.mxu0 %v1243
        %1369 = vmatprep.subr.mxu0 %v1242
        %1370 = vmatpush1.msra.mxu0 %v1241
        %1371 = vmatprep.subr.mxu0 %v1240
        %1372 = vmatpush1.msra.mxu0 %v1239
        %1373 = vmatprep.subr.mxu0 %v1238
        %1374 = vmatpush1.msra.mxu0 %v1237
        %1375 = vmatprep.subr.mxu0 %v1236
        %1376 = vmatpush1.msra.mxu0 %v1235
        %1377 = vmatprep.subr.mxu0 %v1234
        %1378 = vmatpush1.msra.mxu0 %v1233
        %1379 = vmatprep.subr.mxu0 %v1232
        %1380 = vmatpush1.msra.mxu0 %v1231
        %1381 = vmatprep.subr.mxu0 0.0
        %1382 = vmatpush2.msra.mxu0 0.0
        %1383 = vmatprep.subr.mxu0 0.0
        %1384 = vmatpush2.msra.mxu0 0.0
        %1385 = vmatprep.subr.mxu0 0.0
        %1386 = vmatpush2.msra.mxu0 0.0
        %1387 = vmatprep.subr.mxu0 0.0
        %1388 = vmatpush2.msra.mxu0 0.0
        %1389 = vmatprep.subr.mxu0 0.0
        %1390 = vmatpush2.msra.mxu0 0.0
        %1391 = vmatprep.subr.mxu0 0.0
        %1392 = vmatpush2.msra.mxu0 0.0
        %1393 = vmatprep.subr.mxu0 0.0
        %1394 = vmatpush2.msra.mxu0 0.0
        %1395 = vmatprep.subr.mxu0 0.0
        %1396 = vmatpush2.msra.mxu0 0.0
        %1397 = vmatprep.subr.mxu0 0.0
        %1398 = vmatpush2.msra.mxu0 0.0
        %1399 = vmatprep.subr.mxu0 0.0
        %1400 = vmatpush2.msra.mxu0 0.0
        %1401 = vmatprep.subr.mxu0 0.0
        %1402 = vmatpush2.msra.mxu0 0.0
        %1403 = vmatprep.subr.mxu0 0.0
        %1404 = vmatpush2.msra.mxu0 0.0
        %1405 = vmatprep.subr.mxu0 0.0
        %1406 = vmatpush2.msra.mxu0 0.0
        %1407 = vmatprep.subr.mxu0 0.0
        %1408 = vmatpush2.msra.mxu0 0.0
        %1409 = vmatprep.subr.mxu0 0.0
        %1410 = vmatpush2.msra.mxu0 0.0
        %1411 = vmatprep.subr.mxu0 0.0
        %1412 = vmatpush2.msra.mxu0 0.0
        %1413 = vmatprep.mubr.f32.mxu0 0.0
        %1414 = vmatmul.mubr.f32.gmra.mxu0 %v1212
        %v1415 = vpop.f32.mrf.mxu0
        %v1416 = vadd.f32 0.0, %v1415
        %v1417 = vpop.f32.mrf.mxu0
        %v1418 = vadd.f32 0.0, %v1417
        %1419 = vdwg.mxu0
        %vm1420 = vcmask 261120
        %v1422 = vsel %vm1420, %v1346, 0
        %v1425 = vsel %vm1420, %v1416, 0
        %1427 = vmatprep.subr.mxu0 0.0
        %1428 = vmatpush1.xpose.msra.mxu0 0.0
        %1429 = vmatprep.subr.mxu0 0.0
        %1430 = vmatpush1.xpose.msra.mxu0 0.0
        %1431 = vmatprep.subr.mxu0 0.0
        %1432 = vmatpush1.xpose.msra.mxu0 0.0
        %1433 = vmatprep.subr.mxu0 0.0
        %1434 = vmatpush1.xpose.msra.mxu0 0.0
        %1435 = vmatprep.subr.mxu0 0.0
        %1436 = vmatpush1.xpose.msra.mxu0 0.0
        %1437 = vmatprep.subr.mxu0 0.0
        %1438 = vmatpush1.xpose.msra.mxu0 0.0
        %1439 = vmatprep.subr.mxu0 0.0
        %1440 = vmatpush1.xpose.msra.mxu0 0.0
        %1441 = vmatprep.subr.mxu0 0.0
        %1442 = vmatpush1.xpose.msra.mxu0 0.0
        %1443 = vmatprep.subr.mxu0 0.0
        %1444 = vmatpush1.xpose.msra.mxu0 0.0
        %1445 = vmatprep.subr.mxu0 0.0
        %1446 = vmatpush1.xpose.msra.mxu0 0.0
        %1447 = vmatprep.subr.mxu0 0.0
        %1448 = vmatpush1.xpose.msra.mxu0 0.0
        %1449 = vmatprep.subr.mxu0 0.0
        %1450 = vmatpush1.xpose.msra.mxu0 0.0
        %1451 = vmatprep.subr.mxu0 0.0
        %1452 = vmatpush1.xpose.msra.mxu0 0.0
        %1453 = vmatprep.subr.mxu0 0.0
        %1454 = vmatpush1.xpose.msra.mxu0 0.0
        %1455 = vmatprep.subr.mxu0 0.0
        %1456 = vmatpush1.xpose.msra.mxu0 0.0
        %1457 = vmatprep.subr.mxu0 0.0
        %1458 = vmatpush1.xpose.msra.mxu0 %v1425
        %1459 = vmatprep.subr.mxu0 0.0
        %1460 = vmatpush2.xpose.msra.mxu0 0.0
        %1461 = vmatprep.subr.mxu0 0.0
        %1462 = vmatpush2.xpose.msra.mxu0 0.0
        %1463 = vmatprep.subr.mxu0 0.0
        %1464 = vmatpush2.xpose.msra.mxu0 0.0
        %1465 = vmatprep.subr.mxu0 0.0
        %1466 = vmatpush2.xpose.msra.mxu0 0.0
        %1467 = vmatprep.subr.mxu0 0.0
        %1468 = vmatpush2.xpose.msra.mxu0 0.0
        %1469 = vmatprep.subr.mxu0 0.0
        %1470 = vmatpush2.xpose.msra.mxu0 0.0
        %1471 = vmatprep.subr.mxu0 0.0
        %1472 = vmatpush2.xpose.msra.mxu0 0.0
        %1473 = vmatprep.subr.mxu0 0.0
        %1474 = vmatpush2.xpose.msra.mxu0 0.0
        %1475 = vmatprep.subr.mxu0 0.0
        %1476 = vmatpush2.xpose.msra.mxu0 0.0
        %1477 = vmatprep.subr.mxu0 0.0
        %1478 = vmatpush2.xpose.msra.mxu0 0.0
        %1479 = vmatprep.subr.mxu0 0.0
        %1480 = vmatpush2.xpose.msra.mxu0 0.0
        %1481 = vmatprep.subr.mxu0 0.0
        %1482 = vmatpush2.xpose.msra.mxu0 0.0
        %1483 = vmatprep.subr.mxu0 0.0
        %1484 = vmatpush2.xpose.msra.mxu0 0.0
        %1485 = vmatprep.subr.mxu0 0.0
        %1486 = vmatpush2.xpose.msra.mxu0 0.0
        %1487 = vmatprep.subr.mxu0 0.0
        %1488 = vmatpush2.xpose.msra.mxu0 0.0
        %1489 = vmatprep.subr.mxu0 0.0
        %1490 = vmatpush2.xpose.msra.mxu0 0.0
        %1491 = vmatprep.mubr.f32.mxu0 0.0
        %1492 = vmatmul.mubr.f32.gmra.mxu0 %v1422
        %v1493 = vpop.f32.mrf.mxu0
        %v1494 = vadd.f32 0.0, %v1493
        %v1495 = vpop.f32.mrf.mxu0
        %1496 = vdwg.mxu0
        %v1497 = vmul.f32 %v1494, 0.17677669
        %vm1498 = vcmp.gt.f32.partialorder %v1214, 0.5
        %v1499 = vsel %vm1498, %v1497, -1000000.0
        %vm1500 = vcmask 64512
        %v1501 = vsel %vm1500, %v1499, -inf
        %1502 = vmax.xlane.f32.xlu0 %v1501
        %v1503 = vpop.xlane.xlu0 %1502
        %v1504 = vsub.f32 %v1499, %v1503
        %v1505 = vmul.f32 %v1504, 1.442695
        %v1506 = vpow.pop %v1505
        %v1507 = vsel %vm1500, %v1506, 0.0
        %1508 = vadd.xlane.f32.xlu0 %v1507
        %v1509 = vpop.xlane.xlu0 %1508
        %v1510 = vrcp.pop %v1509
        %v1511 = vmul.f32 %v1506, %v1510
        %v1513 = vsel %vm1500, %v1511, 0
        %1515 = vmatprep.subr.mxu0 0.0
        %1516 = vmatpush1.msra.mxu0 0.0
        %1517 = vmatprep.subr.mxu0 0.0
        %1518 = vmatpush1.msra.mxu0 0.0
        %1519 = vmatprep.subr.mxu0 0.0
        %1520 = vmatpush1.msra.mxu0 0.0
        %1521 = vmatprep.subr.mxu0 0.0
        %1522 = vmatpush1.msra.mxu0 0.0
        %1523 = vmatprep.subr.mxu0 0.0
        %1524 = vmatpush1.msra.mxu0 0.0
        %1525 = vmatprep.subr.mxu0 0.0
        %1526 = vmatpush1.msra.mxu0 0.0
        %1527 = vmatprep.subr.mxu0 0.0
        %1528 = vmatpush1.msra.mxu0 0.0
        %1529 = vmatprep.subr.mxu0 0.0
        %1530 = vmatpush1.msra.mxu0 0.0
        %1531 = vmatprep.subr.mxu0 0.0
        %1532 = vmatpush1.msra.mxu0 0.0
        %1533 = vmatprep.subr.mxu0 0.0
        %1534 = vmatpush1.msra.mxu0 0.0
        %1535 = vmatprep.subr.mxu0 0.0
        %1536 = vmatpush1.msra.mxu0 0.0
        %1537 = vmatprep.subr.mxu0 0.0
        %1538 = vmatpush1.msra.mxu0 0.0
        %1539 = vmatprep.subr.mxu0 0.0
        %1540 = vmatpush1.msra.mxu0 0.0
        %1541 = vmatprep.subr.mxu0 0.0
        %1542 = vmatpush1.msra.mxu0 0.0
        %1543 = vmatprep.subr.mxu0 0.0
        %1544 = vmatpush1.msra.mxu0 0.0
        %1545 = vmatprep.subr.mxu0 0.0
        %1546 = vmatpush1.msra.mxu0 %v1418
        %1547 = vmatprep.subr.mxu0 0.0
        %1548 = vmatpush2.msra.mxu0 0.0
        %1549 = vmatprep.subr.mxu0 0.0
        %1550 = vmatpush2.msra.mxu0 0.0
        %1551 = vmatprep.subr.mxu0 0.0
        %1552 = vmatpush2.msra.mxu0 0.0
        %1553 = vmatprep.subr.mxu0 0.0
        %1554 = vmatpush2.msra.mxu0 0.0
        %1555 = vmatprep.subr.mxu0 0.0
        %1556 = vmatpush2.msra.mxu0 0.0
        %1557 = vmatprep.subr.mxu0 0.0
        %1558 = vmatpush2.msra.mxu0 0.0
        %1559 = vmatprep.subr.mxu0 0.0
        %1560 = vmatpush2.msra.mxu0 0.0
        %1561 = vmatprep.subr.mxu0 0.0
        %1562 = vmatpush2.msra.mxu0 0.0
        %1563 = vmatprep.subr.mxu0 0.0
        %1564 = vmatpush2.msra.mxu0 0.0
        %1565 = vmatprep.subr.mxu0 0.0
        %1566 = vmatpush2.msra.mxu0 0.0
        %1567 = vmatprep.subr.mxu0 0.0
        %1568 = vmatpush2.msra.mxu0 0.0
        %1569 = vmatprep.subr.mxu0 0.0
        %1570 = vmatpush2.msra.mxu0 0.0
        %1571 = vmatprep.subr.mxu0 0.0
        %1572 = vmatpush2.msra.mxu0 0.0
        %1573 = vmatprep.subr.mxu0 0.0
        %1574 = vmatpush2.msra.mxu0 0.0
        %1575 = vmatprep.subr.mxu0 0.0
        %1576 = vmatpush2.msra.mxu0 0.0
        %1577 = vmatprep.subr.mxu0 0.0
        %1578 = vmatpush2.msra.mxu0 0.0
        %1579 = vmatprep.mubr.f32.mxu0 0.0
        %1580 = vmatmul.mubr.f32.gmra.mxu0 %v1513
        %v1581 = vpop.f32.mrf.mxu0
        %v1582 = vadd.f32 0.0, %v1581
        %v1583 = vpop.f32.mrf.mxu0
        %1584 = vdwg.mxu0
        %1585 = vrot.lane.b32.xlu0 %v1346, 96
        %v1586 = vpop.permute.xlu0 %1585
        %1587 = vrot.lane.b32.xlu0 %v1416, 96
        %v1588 = vpop.permute.xlu0 %1587
        %v1589 = vsel %vm1420, %v1586, 0
        %v1591 = vsel %vm1420, %v1588, 0
        %1593 = vmatprep.subr.mxu0 0.0
        %1594 = vmatpush1.xpose.msra.mxu0 0.0
        %1595 = vmatprep.subr.mxu0 0.0
        %1596 = vmatpush1.xpose.msra.mxu0 0.0
        %1597 = vmatprep.subr.mxu0 0.0
        %1598 = vmatpush1.xpose.msra.mxu0 0.0
        %1599 = vmatprep.subr.mxu0 0.0
        %1600 = vmatpush1.xpose.msra.mxu0 0.0
        %1601 = vmatprep.subr.mxu0 0.0
        %1602 = vmatpush1.xpose.msra.mxu0 0.0
        %1603 = vmatprep.subr.mxu0 0.0
        %1604 = vmatpush1.xpose.msra.mxu0 0.0
        %1605 = vmatprep.subr.mxu0 0.0
        %1606 = vmatpush1.xpose.msra.mxu0 0.0
        %1607 = vmatprep.subr.mxu0 0.0
        %1608 = vmatpush1.xpose.msra.mxu0 0.0
        %1609 = vmatprep.subr.mxu0 0.0
        %1610 = vmatpush1.xpose.msra.mxu0 0.0
        %1611 = vmatprep.subr.mxu0 0.0
        %1612 = vmatpush1.xpose.msra.mxu0 0.0
        %1613 = vmatprep.subr.mxu0 0.0
        %1614 = vmatpush1.xpose.msra.mxu0 0.0
        %1615 = vmatprep.subr.mxu0 0.0
        %1616 = vmatpush1.xpose.msra.mxu0 0.0
        %1617 = vmatprep.subr.mxu0 0.0
        %1618 = vmatpush1.xpose.msra.mxu0 0.0
        %1619 = vmatprep.subr.mxu0 0.0
        %1620 = vmatpush1.xpose.msra.mxu0 0.0
        %1621 = vmatprep.subr.mxu0 0.0
        %1622 = vmatpush1.xpose.msra.mxu0 0.0
        %1623 = vmatprep.subr.mxu0 0.0
        %1624 = vmatpush1.xpose.msra.mxu0 %v1591
        %1625 = vmatprep.subr.mxu0 0.0
        %1626 = vmatpush2.xpose.msra.mxu0 0.0
        %1627 = vmatprep.subr.mxu0 0.0
        %1628 = vmatpush2.xpose.msra.mxu0 0.0
        %1629 = vmatprep.subr.mxu0 0.0
        %1630 = vmatpush2.xpose.msra.mxu0 0.0
        %1631 = vmatprep.subr.mxu0 0.0
        %1632 = vmatpush2.xpose.msra.mxu0 0.0
        %1633 = vmatprep.subr.mxu0 0.0
        %1634 = vmatpush2.xpose.msra.mxu0 0.0
        %1635 = vmatprep.subr.mxu0 0.0
        %1636 = vmatpush2.xpose.msra.mxu0 0.0
        %1637 = vmatprep.subr.mxu0 0.0
        %1638 = vmatpush2.xpose.msra.mxu0 0.0
        %1639 = vmatprep.subr.mxu0 0.0
        %1640 = vmatpush2.xpose.msra.mxu0 0.0
        %1641 = vmatprep.subr.mxu0 0.0
        %1642 = vmatpush2.xpose.msra.mxu0 0.0
        %1643 = vmatprep.subr.mxu0 0.0
        %1644 = vmatpush2.xpose.msra.mxu0 0.0
        %1645 = vmatprep.subr.mxu0 0.0
        %1646 = vmatpush2.xpose.msra.mxu0 0.0
        %1647 = vmatprep.subr.mxu0 0.0
        %1648 = vmatpush2.xpose.msra.mxu0 0.0
        %1649 = vmatprep.subr.mxu0 0.0
        %1650 = vmatpush2.xpose.msra.mxu0 0.0
        %1651 = vmatprep.subr.mxu0 0.0
        %1652 = vmatpush2.xpose.msra.mxu0 0.0
        %1653 = vmatprep.subr.mxu0 0.0
        %1654 = vmatpush2.xpose.msra.mxu0 0.0
        %1655 = vmatprep.subr.mxu0 0.0
        %1656 = vmatpush2.xpose.msra.mxu0 0.0
        %1657 = vmatprep.mubr.f32.mxu0 0.0
        %1658 = vmatmul.mubr.f32.gmra.mxu0 %v1589
        %v1659 = vpop.f32.mrf.mxu0
        %v1660 = vadd.f32 0.0, %v1659
        %v1661 = vpop.f32.mrf.mxu0
        %1662 = vdwg.mxu0
        %v1663 = vmul.f32 %v1660, 0.17677669
        %v1664 = vsel %vm1498, %v1663, -1000000.0
        %v1665 = vsel %vm1500, %v1664, -inf
        %1666 = vmax.xlane.f32.xlu0 %v1665
        %v1667 = vpop.xlane.xlu0 %1666
        %v1668 = vsub.f32 %v1664, %v1667
        %v1669 = vmul.f32 %v1668, 1.442695
        %v1670 = vpow.pop %v1669
        %v1671 = vsel %vm1500, %v1670, 0.0
        %1672 = vadd.xlane.f32.xlu0 %v1671
        %v1673 = vpop.xlane.xlu0 %1672
        %v1674 = vrcp.pop %v1673
        %v1675 = vmul.f32 %v1670, %v1674
        %1677 = vrot.lane.b32.xlu0 %v1418, 96
        %v1678 = vpop.permute.xlu0 %1677
        %v1681 = vsel %vm1500, %v1675, 0
        %1683 = vmatprep.subr.mxu0 0.0
        %1684 = vmatpush1.msra.mxu0 0.0
        %1685 = vmatprep.subr.mxu0 0.0
        %1686 = vmatpush1.msra.mxu0 0.0
        %1687 = vmatprep.subr.mxu0 0.0
        %1688 = vmatpush1.msra.mxu0 0.0
        %1689 = vmatprep.subr.mxu0 0.0
        %1690 = vmatpush1.msra.mxu0 0.0
        %1691 = vmatprep.subr.mxu0 0.0
        %1692 = vmatpush1.msra.mxu0 0.0
        %1693 = vmatprep.subr.mxu0 0.0
        %1694 = vmatpush1.msra.mxu0 0.0
        %1695 = vmatprep.subr.mxu0 0.0
        %1696 = vmatpush1.msra.mxu0 0.0
        %1697 = vmatprep.subr.mxu0 0.0
        %1698 = vmatpush1.msra.mxu0 0.0
        %1699 = vmatprep.subr.mxu0 0.0
        %1700 = vmatpush1.msra.mxu0 0.0
        %1701 = vmatprep.subr.mxu0 0.0
        %1702 = vmatpush1.msra.mxu0 0.0
        %1703 = vmatprep.subr.mxu0 0.0
        %1704 = vmatpush1.msra.mxu0 0.0
        %1705 = vmatprep.subr.mxu0 0.0
        %1706 = vmatpush1.msra.mxu0 0.0
        %1707 = vmatprep.subr.mxu0 0.0
        %1708 = vmatpush1.msra.mxu0 0.0
        %1709 = vmatprep.subr.mxu0 0.0
        %1710 = vmatpush1.msra.mxu0 0.0
        %1711 = vmatprep.subr.mxu0 0.0
        %1712 = vmatpush1.msra.mxu0 0.0
        %1713 = vmatprep.subr.mxu0 0.0
        %1714 = vmatpush1.msra.mxu0 %v1678
        %1715 = vmatprep.subr.mxu0 0.0
        %1716 = vmatpush2.msra.mxu0 0.0
        %1717 = vmatprep.subr.mxu0 0.0
        %1718 = vmatpush2.msra.mxu0 0.0
        %1719 = vmatprep.subr.mxu0 0.0
        %1720 = vmatpush2.msra.mxu0 0.0
        %1721 = vmatprep.subr.mxu0 0.0
        %1722 = vmatpush2.msra.mxu0 0.0
        %1723 = vmatprep.subr.mxu0 0.0
        %1724 = vmatpush2.msra.mxu0 0.0
        %1725 = vmatprep.subr.mxu0 0.0
        %1726 = vmatpush2.msra.mxu0 0.0
        %1727 = vmatprep.subr.mxu0 0.0
        %1728 = vmatpush2.msra.mxu0 0.0
        %1729 = vmatprep.subr.mxu0 0.0
        %1730 = vmatpush2.msra.mxu0 0.0
        %1731 = vmatprep.subr.mxu0 0.0
        %1732 = vmatpush2.msra.mxu0 0.0
        %1733 = vmatprep.subr.mxu0 0.0
        %1734 = vmatpush2.msra.mxu0 0.0
        %1735 = vmatprep.subr.mxu0 0.0
        %1736 = vmatpush2.msra.mxu0 0.0
        %1737 = vmatprep.subr.mxu0 0.0
        %1738 = vmatpush2.msra.mxu0 0.0
        %1739 = vmatprep.subr.mxu0 0.0
        %1740 = vmatpush2.msra.mxu0 0.0
        %1741 = vmatprep.subr.mxu0 0.0
        %1742 = vmatpush2.msra.mxu0 0.0
        %1743 = vmatprep.subr.mxu0 0.0
        %1744 = vmatpush2.msra.mxu0 0.0
        %1745 = vmatprep.subr.mxu0 0.0
        %1746 = vmatpush2.msra.mxu0 0.0
        %1747 = vmatprep.mubr.f32.mxu0 0.0
        %1748 = vmatmul.mubr.f32.gmra.mxu0 %v1681
        %v1749 = vpop.f32.mrf.mxu0
        %v1750 = vadd.f32 0.0, %v1749
        %v1751 = vpop.f32.mrf.mxu0
        %1752 = vdwg.mxu0
        %v1754 = vsel %vm1420, %v1750, 0
        %1756 = vmatprep.subr.mxu0 0.0
        %1757 = vmatpush1.msra.mxu0 0.0
        %1758 = vmatprep.subr.mxu0 0.0
        %1759 = vmatpush1.msra.mxu0 0.0
        %1760 = vmatprep.subr.mxu0 0.0
        %1761 = vmatpush1.msra.mxu0 0.0
        %1762 = vmatprep.subr.mxu0 0.0
        %1763 = vmatpush1.msra.mxu0 0.0
        %1764 = vmatprep.subr.mxu0 0.0
        %1765 = vmatpush1.msra.mxu0 0.0
        %1766 = vmatprep.subr.mxu0 0.0
        %1767 = vmatpush1.msra.mxu0 0.0
        %1768 = vmatprep.subr.mxu0 0.0
        %1769 = vmatpush1.msra.mxu0 0.0
        %1770 = vmatprep.subr.mxu0 0.0
        %1771 = vmatpush1.msra.mxu0 0.0
        %1772 = vmatprep.subr.mxu0 0.0
        %1773 = vmatpush1.msra.mxu0 0.0
        %1774 = vmatprep.subr.mxu0 0.0
        %1775 = vmatpush1.msra.mxu0 0.0
        %1776 = vmatprep.subr.mxu0 0.0
        %1777 = vmatpush1.msra.mxu0 0.0
        %1778 = vmatprep.subr.mxu0 0.0
        %1779 = vmatpush1.msra.mxu0 0.0
        %1780 = vmatprep.subr.mxu0 0.0
        %1781 = vmatpush1.msra.mxu0 %v1270
        %1782 = vmatprep.subr.mxu0 0.0
        %1783 = vmatpush1.msra.mxu0 %v1269
        %1784 = vmatprep.subr.mxu0 0.0
        %1785 = vmatpush1.msra.mxu0 %v1268
        %1786 = vmatprep.subr.mxu0 0.0
        %1787 = vmatpush1.msra.mxu0 %v1267
        %1788 = vmatprep.subr.mxu0 0.0
        %1789 = vmatpush2.msra.mxu0 0.0
        %1790 = vmatprep.subr.mxu0 0.0
        %1791 = vmatpush2.msra.mxu0 0.0
        %1792 = vmatprep.subr.mxu0 0.0
        %1793 = vmatpush2.msra.mxu0 0.0
        %1794 = vmatprep.subr.mxu0 0.0
        %1795 = vmatpush2.msra.mxu0 0.0
        %1796 = vmatprep.subr.mxu0 0.0
        %1797 = vmatpush2.msra.mxu0 0.0
        %1798 = vmatprep.subr.mxu0 0.0
        %1799 = vmatpush2.msra.mxu0 0.0
        %1800 = vmatprep.subr.mxu0 0.0
        %1801 = vmatpush2.msra.mxu0 0.0
        %1802 = vmatprep.subr.mxu0 0.0
        %1803 = vmatpush2.msra.mxu0 0.0
        %1804 = vmatprep.subr.mxu0 0.0
        %1805 = vmatpush2.msra.mxu0 0.0
        %1806 = vmatprep.subr.mxu0 0.0
        %1807 = vmatpush2.msra.mxu0 0.0
        %1808 = vmatprep.subr.mxu0 0.0
        %1809 = vmatpush2.msra.mxu0 0.0
        %1810 = vmatprep.subr.mxu0 0.0
        %1811 = vmatpush2.msra.mxu0 0.0
        %1812 = vmatprep.subr.mxu0 0.0
        %1813 = vmatpush2.msra.mxu0 0.0
        %1814 = vmatprep.subr.mxu0 0.0
        %1815 = vmatpush2.msra.mxu0 0.0
        %1816 = vmatprep.subr.mxu0 0.0
        %1817 = vmatpush2.msra.mxu0 0.0
        %1818 = vmatprep.subr.mxu0 0.0
        %1819 = vmatpush2.msra.mxu0 0.0
        %1820 = vmatprep.mubr.f32.mxu0 0.0
        %1821 = vmatmul.mubr.f32.gmra.mxu0 %v1754
        %v1822 = vpop.f32.mrf.mxu0
        %v1823 = vadd.f32 0.0, %v1822
        %v1824 = vpop.f32.mrf.mxu0
        %1825 = vdwg.mxu0
        %v1827 = vsel %vm1420, %v1582, 0
        %1829 = vmatprep.subr.mxu0 0.0
        %1830 = vmatpush1.msra.mxu0 0.0
        %1831 = vmatprep.subr.mxu0 0.0
        %1832 = vmatpush1.msra.mxu0 0.0
        %1833 = vmatprep.subr.mxu0 0.0
        %1834 = vmatpush1.msra.mxu0 0.0
        %1835 = vmatprep.subr.mxu0 0.0
        %1836 = vmatpush1.msra.mxu0 0.0
        %1837 = vmatprep.subr.mxu0 0.0
        %1838 = vmatpush1.msra.mxu0 0.0
        %1839 = vmatprep.subr.mxu0 0.0
        %1840 = vmatpush1.msra.mxu0 0.0
        %1841 = vmatprep.subr.mxu0 0.0
        %1842 = vmatpush1.msra.mxu0 0.0
        %1843 = vmatprep.subr.mxu0 0.0
        %1844 = vmatpush1.msra.mxu0 0.0
        %1845 = vmatprep.subr.mxu0 0.0
        %1846 = vmatpush1.msra.mxu0 0.0
        %1847 = vmatprep.subr.mxu0 0.0
        %1848 = vmatpush1.msra.mxu0 0.0
        %1849 = vmatprep.subr.mxu0 0.0
        %1850 = vmatpush1.msra.mxu0 0.0
        %1851 = vmatprep.subr.mxu0 0.0
        %1852 = vmatpush1.msra.mxu0 0.0
        %1853 = vmatprep.subr.mxu0 0.0
        %1854 = vmatpush1.msra.mxu0 %v1266
        %1855 = vmatprep.subr.mxu0 0.0
        %1856 = vmatpush1.msra.mxu0 %v1265
        %1857 = vmatprep.subr.mxu0 0.0
        %1858 = vmatpush1.msra.mxu0 %v1264
        %1859 = vmatprep.subr.mxu0 0.0
        %1860 = vmatpush1.msra.mxu0 %v1263
        %1861 = vmatprep.subr.mxu0 0.0
        %1862 = vmatpush2.msra.mxu0 0.0
        %1863 = vmatprep.subr.mxu0 0.0
        %1864 = vmatpush2.msra.mxu0 0.0
        %1865 = vmatprep.subr.mxu0 0.0
        %1866 = vmatpush2.msra.mxu0 0.0
        %1867 = vmatprep.subr.mxu0 0.0
        %1868 = vmatpush2.msra.mxu0 0.0
        %1869 = vmatprep.subr.mxu0 0.0
        %1870 = vmatpush2.msra.mxu0 0.0
        %1871 = vmatprep.subr.mxu0 0.0
        %1872 = vmatpush2.msra.mxu0 0.0
        %1873 = vmatprep.subr.mxu0 0.0
        %1874 = vmatpush2.msra.mxu0 0.0
        %1875 = vmatprep.subr.mxu0 0.0
        %1876 = vmatpush2.msra.mxu0 0.0
        %1877 = vmatprep.subr.mxu0 0.0
        %1878 = vmatpush2.msra.mxu0 0.0
        %1879 = vmatprep.subr.mxu0 0.0
        %1880 = vmatpush2.msra.mxu0 0.0
        %1881 = vmatprep.subr.mxu0 0.0
        %1882 = vmatpush2.msra.mxu0 0.0
        %1883 = vmatprep.subr.mxu0 0.0
        %1884 = vmatpush2.msra.mxu0 0.0
        %1885 = vmatprep.subr.mxu0 0.0
        %1886 = vmatpush2.msra.mxu0 0.0
        %1887 = vmatprep.subr.mxu0 0.0
        %1888 = vmatpush2.msra.mxu0 0.0
        %1889 = vmatprep.subr.mxu0 0.0
        %1890 = vmatpush2.msra.mxu0 0.0
        %1891 = vmatprep.subr.mxu0 0.0
        %1892 = vmatpush2.msra.mxu0 0.0
        %1893 = vmatprep.mubr.f32.mxu0 0.0
        %1894 = vmatmul.mubr.f32.gmra.mxu0 %v1827
        %v1895 = vpop.f32.mrf.mxu0
        %v1896 = vadd.f32 %v1823, %v1895
        %v1897 = vpop.f32.mrf.mxu0
        %1898 = vdwg.mxu0
        %1899 = vrot.lane.b32.xlu0 %v1346, 64
        %v1900 = vpop.permute.xlu0 %1899
        %1901 = vrot.lane.b32.xlu0 %v1416, 64
        %v1902 = vpop.permute.xlu0 %1901
        %v1903 = vsel %vm1420, %v1900, 0
        %v1905 = vsel %vm1420, %v1902, 0
        %1907 = vmatprep.subr.mxu0 0.0
        %1908 = vmatpush1.xpose.msra.mxu0 0.0
        %1909 = vmatprep.subr.mxu0 0.0
        %1910 = vmatpush1.xpose.msra.mxu0 0.0
        %1911 = vmatprep.subr.mxu0 0.0
        %1912 = vmatpush1.xpose.msra.mxu0 0.0
        %1913 = vmatprep.subr.mxu0 0.0
        %1914 = vmatpush1.xpose.msra.mxu0 0.0
        %1915 = vmatprep.subr.mxu0 0.0
        %1916 = vmatpush1.xpose.msra.mxu0 0.0
        %1917 = vmatprep.subr.mxu0 0.0
        %1918 = vmatpush1.xpose.msra.mxu0 0.0
        %1919 = vmatprep.subr.mxu0 0.0
        %1920 = vmatpush1.xpose.msra.mxu0 0.0
        %1921 = vmatprep.subr.mxu0 0.0
        %1922 = vmatpush1.xpose.msra.mxu0 0.0
        %1923 = vmatprep.subr.mxu0 0.0
        %1924 = vmatpush1.xpose.msra.mxu0 0.0
        %1925 = vmatprep.subr.mxu0 0.0
        %1926 = vmatpush1.xpose.msra.mxu0 0.0
        %1927 = vmatprep.subr.mxu0 0.0
        %1928 = vmatpush1.xpose.msra.mxu0 0.0
        %1929 = vmatprep.subr.mxu0 0.0
        %1930 = vmatpush1.xpose.msra.mxu0 0.0
        %1931 = vmatprep.subr.mxu0 0.0
        %1932 = vmatpush1.xpose.msra.mxu0 0.0
        %1933 = vmatprep.subr.mxu0 0.0
        %1934 = vmatpush1.xpose.msra.mxu0 0.0
        %1935 = vmatprep.subr.mxu0 0.0
        %1936 = vmatpush1.xpose.msra.mxu0 0.0
        %1937 = vmatprep.subr.mxu0 0.0
        %1938 = vmatpush1.xpose.msra.mxu0 %v1905
        %1939 = vmatprep.subr.mxu0 0.0
        %1940 = vmatpush2.xpose.msra.mxu0 0.0
        %1941 = vmatprep.subr.mxu0 0.0
        %1942 = vmatpush2.xpose.msra.mxu0 0.0
        %1943 = vmatprep.subr.mxu0 0.0
        %1944 = vmatpush2.xpose.msra.mxu0 0.0
        %1945 = vmatprep.subr.mxu0 0.0
        %1946 = vmatpush2.xpose.msra.mxu0 0.0
        %1947 = vmatprep.subr.mxu0 0.0
        %1948 = vmatpush2.xpose.msra.mxu0 0.0
        %1949 = vmatprep.subr.mxu0 0.0
        %1950 = vmatpush2.xpose.msra.mxu0 0.0
        %1951 = vmatprep.subr.mxu0 0.0
        %1952 = vmatpush2.xpose.msra.mxu0 0.0
        %1953 = vmatprep.subr.mxu0 0.0
        %1954 = vmatpush2.xpose.msra.mxu0 0.0
        %1955 = vmatprep.subr.mxu0 0.0
        %1956 = vmatpush2.xpose.msra.mxu0 0.0
        %1957 = vmatprep.subr.mxu0 0.0
        %1958 = vmatpush2.xpose.msra.mxu0 0.0
        %1959 = vmatprep.subr.mxu0 0.0
        %1960 = vmatpush2.xpose.msra.mxu0 0.0
        %1961 = vmatprep.subr.mxu0 0.0
        %1962 = vmatpush2.xpose.msra.mxu0 0.0
        %1963 = vmatprep.subr.mxu0 0.0
        %1964 = vmatpush2.xpose.msra.mxu0 0.0
        %1965 = vmatprep.subr.mxu0 0.0
        %1966 = vmatpush2.xpose.msra.mxu0 0.0
        %1967 = vmatprep.subr.mxu0 0.0
        %1968 = vmatpush2.xpose.msra.mxu0 0.0
        %1969 = vmatprep.subr.mxu0 0.0
        %1970 = vmatpush2.xpose.msra.mxu0 0.0
        %1971 = vmatprep.mubr.f32.mxu0 0.0
        %1972 = vmatmul.mubr.f32.gmra.mxu0 %v1903
        %v1973 = vpop.f32.mrf.mxu0
        %v1974 = vadd.f32 0.0, %v1973
        %v1975 = vpop.f32.mrf.mxu0
        %1976 = vdwg.mxu0
        %v1977 = vmul.f32 %v1974, 0.17677669
        %v1978 = vsel %vm1498, %v1977, -1000000.0
        %v1979 = vsel %vm1500, %v1978, -inf
        %1980 = vmax.xlane.f32.xlu0 %v1979
        %v1981 = vpop.xlane.xlu0 %1980
        %v1982 = vsub.f32 %v1978, %v1981
        %v1983 = vmul.f32 %v1982, 1.442695
        %v1984 = vpow.pop %v1983
        %v1985 = vsel %vm1500, %v1984, 0.0
        %1986 = vadd.xlane.f32.xlu0 %v1985
        %v1987 = vpop.xlane.xlu0 %1986
        %v1988 = vrcp.pop %v1987
        %v1989 = vmul.f32 %v1984, %v1988
        %1990 = vrot.lane.b32.xlu0 %v1418, 64
        %v1991 = vpop.permute.xlu0 %1990
        %v1994 = vsel %vm1500, %v1989, 0
        %1996 = vmatprep.subr.mxu0 0.0
        %1997 = vmatpush1.msra.mxu0 0.0
        %1998 = vmatprep.subr.mxu0 0.0
        %1999 = vmatpush1.msra.mxu0 0.0
        %2000 = vmatprep.subr.mxu0 0.0
        %2001 = vmatpush1.msra.mxu0 0.0
        %2002 = vmatprep.subr.mxu0 0.0
        %2003 = vmatpush1.msra.mxu0 0.0
        %2004 = vmatprep.subr.mxu0 0.0
        %2005 = vmatpush1.msra.mxu0 0.0
        %2006 = vmatprep.subr.mxu0 0.0
        %2007 = vmatpush1.msra.mxu0 0.0
        %2008 = vmatprep.subr.mxu0 0.0
        %2009 = vmatpush1.msra.mxu0 0.0
        %2010 = vmatprep.subr.mxu0 0.0
        %2011 = vmatpush1.msra.mxu0 0.0
        %2012 = vmatprep.subr.mxu0 0.0
        %2013 = vmatpush1.msra.mxu0 0.0
        %2014 = vmatprep.subr.mxu0 0.0
        %2015 = vmatpush1.msra.mxu0 0.0
        %2016 = vmatprep.subr.mxu0 0.0
        %2017 = vmatpush1.msra.mxu0 0.0
        %2018 = vmatprep.subr.mxu0 0.0
        %2019 = vmatpush1.msra.mxu0 0.0
        %2020 = vmatprep.subr.mxu0 0.0
        %2021 = vmatpush1.msra.mxu0 0.0
        %2022 = vmatprep.subr.mxu0 0.0
        %2023 = vmatpush1.msra.mxu0 0.0
        %2024 = vmatprep.subr.mxu0 0.0
        %2025 = vmatpush1.msra.mxu0 0.0
        %2026 = vmatprep.subr.mxu0 0.0
        %2027 = vmatpush1.msra.mxu0 %v1991
        %2028 = vmatprep.subr.mxu0 0.0
        %2029 = vmatpush2.msra.mxu0 0.0
        %2030 = vmatprep.subr.mxu0 0.0
        %2031 = vmatpush2.msra.mxu0 0.0
        %2032 = vmatprep.subr.mxu0 0.0
        %2033 = vmatpush2.msra.mxu0 0.0
        %2034 = vmatprep.subr.mxu0 0.0
        %2035 = vmatpush2.msra.mxu0 0.0
        %2036 = vmatprep.subr.mxu0 0.0
        %2037 = vmatpush2.msra.mxu0 0.0
        %2038 = vmatprep.subr.mxu0 0.0
        %2039 = vmatpush2.msra.mxu0 0.0
        %2040 = vmatprep.subr.mxu0 0.0
        %2041 = vmatpush2.msra.mxu0 0.0
        %2042 = vmatprep.subr.mxu0 0.0
        %2043 = vmatpush2.msra.mxu0 0.0
        %2044 = vmatprep.subr.mxu0 0.0
        %2045 = vmatpush2.msra.mxu0 0.0
        %2046 = vmatprep.subr.mxu0 0.0
        %2047 = vmatpush2.msra.mxu0 0.0
        %2048 = vmatprep.subr.mxu0 0.0
        %2049 = vmatpush2.msra.mxu0 0.0
        %2050 = vmatprep.subr.mxu0 0.0
        %2051 = vmatpush2.msra.mxu0 0.0
        %2052 = vmatprep.subr.mxu0 0.0
        %2053 = vmatpush2.msra.mxu0 0.0
        %2054 = vmatprep.subr.mxu0 0.0
        %2055 = vmatpush2.msra.mxu0 0.0
        %2056 = vmatprep.subr.mxu0 0.0
        %2057 = vmatpush2.msra.mxu0 0.0
        %2058 = vmatprep.subr.mxu0 0.0
        %2059 = vmatpush2.msra.mxu0 0.0
        %2060 = vmatprep.mubr.f32.mxu0 0.0
        %2061 = vmatmul.mubr.f32.gmra.mxu0 %v1994
        %v2062 = vpop.f32.mrf.mxu0
        %v2063 = vadd.f32 0.0, %v2062
        %v2064 = vpop.f32.mrf.mxu0
        %2065 = vdwg.mxu0
        %v2067 = vsel %vm1420, %v2063, 0
        %2069 = vmatprep.subr.mxu0 0.0
        %2070 = vmatpush1.msra.mxu0 0.0
        %2071 = vmatprep.subr.mxu0 0.0
        %2072 = vmatpush1.msra.mxu0 0.0
        %2073 = vmatprep.subr.mxu0 0.0
        %2074 = vmatpush1.msra.mxu0 0.0
        %2075 = vmatprep.subr.mxu0 0.0
        %2076 = vmatpush1.msra.mxu0 0.0
        %2077 = vmatprep.subr.mxu0 0.0
        %2078 = vmatpush1.msra.mxu0 0.0
        %2079 = vmatprep.subr.mxu0 0.0
        %2080 = vmatpush1.msra.mxu0 0.0
        %2081 = vmatprep.subr.mxu0 0.0
        %2082 = vmatpush1.msra.mxu0 0.0
        %2083 = vmatprep.subr.mxu0 0.0
        %2084 = vmatpush1.msra.mxu0 0.0
        %2085 = vmatprep.subr.mxu0 0.0
        %2086 = vmatpush1.msra.mxu0 0.0
        %2087 = vmatprep.subr.mxu0 0.0
        %2088 = vmatpush1.msra.mxu0 0.0
        %2089 = vmatprep.subr.mxu0 0.0
        %2090 = vmatpush1.msra.mxu0 0.0
        %2091 = vmatprep.subr.mxu0 0.0
        %2092 = vmatpush1.msra.mxu0 0.0
        %2093 = vmatprep.subr.mxu0 0.0
        %2094 = vmatpush1.msra.mxu0 %v1274
        %2095 = vmatprep.subr.mxu0 0.0
        %2096 = vmatpush1.msra.mxu0 %v1273
        %2097 = vmatprep.subr.mxu0 0.0
        %2098 = vmatpush1.msra.mxu0 %v1272
        %2099 = vmatprep.subr.mxu0 0.0
        %2100 = vmatpush1.msra.mxu0 %v1271
        %2101 = vmatprep.subr.mxu0 0.0
        %2102 = vmatpush2.msra.mxu0 0.0
        %2103 = vmatprep.subr.mxu0 0.0
        %2104 = vmatpush2.msra.mxu0 0.0
        %2105 = vmatprep.subr.mxu0 0.0
        %2106 = vmatpush2.msra.mxu0 0.0
        %2107 = vmatprep.subr.mxu0 0.0
        %2108 = vmatpush2.msra.mxu0 0.0
        %2109 = vmatprep.subr.mxu0 0.0
        %2110 = vmatpush2.msra.mxu0 0.0
        %2111 = vmatprep.subr.mxu0 0.0
        %2112 = vmatpush2.msra.mxu0 0.0
        %2113 = vmatprep.subr.mxu0 0.0
        %2114 = vmatpush2.msra.mxu0 0.0
        %2115 = vmatprep.subr.mxu0 0.0
        %2116 = vmatpush2.msra.mxu0 0.0
        %2117 = vmatprep.subr.mxu0 0.0
        %2118 = vmatpush2.msra.mxu0 0.0
        %2119 = vmatprep.subr.mxu0 0.0
        %2120 = vmatpush2.msra.mxu0 0.0
        %2121 = vmatprep.subr.mxu0 0.0
        %2122 = vmatpush2.msra.mxu0 0.0
        %2123 = vmatprep.subr.mxu0 0.0
        %2124 = vmatpush2.msra.mxu0 0.0
        %2125 = vmatprep.subr.mxu0 0.0
        %2126 = vmatpush2.msra.mxu0 0.0
        %2127 = vmatprep.subr.mxu0 0.0
        %2128 = vmatpush2.msra.mxu0 0.0
        %2129 = vmatprep.subr.mxu0 0.0
        %2130 = vmatpush2.msra.mxu0 0.0
        %2131 = vmatprep.subr.mxu0 0.0
        %2132 = vmatpush2.msra.mxu0 0.0
        %2133 = vmatprep.mubr.f32.mxu0 0.0
        %2134 = vmatmul.mubr.f32.gmra.mxu0 %v2067
        %v2135 = vpop.f32.mrf.mxu0
        %v2136 = vadd.f32 0.0, %v2135
        %v2137 = vpop.f32.mrf.mxu0
        %2138 = vdwg.mxu0
        %v2139 = vadd.f32 %v1896, %v2136
        %2140 = vrot.lane.b32.xlu0 %v1346, 32
        %v2141 = vpop.permute.xlu0 %2140
        %2142 = vrot.lane.b32.xlu0 %v1416, 32
        %v2143 = vpop.permute.xlu0 %2142
        %v2144 = vsel %vm1420, %v2141, 0
        %v2146 = vsel %vm1420, %v2143, 0
        %2148 = vmatprep.subr.mxu0 0.0
        %2149 = vmatpush1.xpose.msra.mxu0 0.0
        %2150 = vmatprep.subr.mxu0 0.0
        %2151 = vmatpush1.xpose.msra.mxu0 0.0
        %2152 = vmatprep.subr.mxu0 0.0
        %2153 = vmatpush1.xpose.msra.mxu0 0.0
        %2154 = vmatprep.subr.mxu0 0.0
        %2155 = vmatpush1.xpose.msra.mxu0 0.0
        %2156 = vmatprep.subr.mxu0 0.0
        %2157 = vmatpush1.xpose.msra.mxu0 0.0
        %2158 = vmatprep.subr.mxu0 0.0
        %2159 = vmatpush1.xpose.msra.mxu0 0.0
        %2160 = vmatprep.subr.mxu0 0.0
        %2161 = vmatpush1.xpose.msra.mxu0 0.0
        %2162 = vmatprep.subr.mxu0 0.0
        %2163 = vmatpush1.xpose.msra.mxu0 0.0
        %2164 = vmatprep.subr.mxu0 0.0
        %2165 = vmatpush1.xpose.msra.mxu0 0.0
        %2166 = vmatprep.subr.mxu0 0.0
        %2167 = vmatpush1.xpose.msra.mxu0 0.0
        %2168 = vmatprep.subr.mxu0 0.0
        %2169 = vmatpush1.xpose.msra.mxu0 0.0
        %2170 = vmatprep.subr.mxu0 0.0
        %2171 = vmatpush1.xpose.msra.mxu0 0.0
        %2172 = vmatprep.subr.mxu0 0.0
        %2173 = vmatpush1.xpose.msra.mxu0 0.0
        %2174 = vmatprep.subr.mxu0 0.0
        %2175 = vmatpush1.xpose.msra.mxu0 0.0
        %2176 = vmatprep.subr.mxu0 0.0
        %2177 = vmatpush1.xpose.msra.mxu0 0.0
        %2178 = vmatprep.subr.mxu0 0.0
        %2179 = vmatpush1.xpose.msra.mxu0 %v2146
        %2180 = vmatprep.subr.mxu0 0.0
        %2181 = vmatpush2.xpose.msra.mxu0 0.0
        %2182 = vmatprep.subr.mxu0 0.0
        %2183 = vmatpush2.xpose.msra.mxu0 0.0
        %2184 = vmatprep.subr.mxu0 0.0
        %2185 = vmatpush2.xpose.msra.mxu0 0.0
        %2186 = vmatprep.subr.mxu0 0.0
        %2187 = vmatpush2.xpose.msra.mxu0 0.0
        %2188 = vmatprep.subr.mxu0 0.0
        %2189 = vmatpush2.xpose.msra.mxu0 0.0
        %2190 = vmatprep.subr.mxu0 0.0
        %2191 = vmatpush2.xpose.msra.mxu0 0.0
        %2192 = vmatprep.subr.mxu0 0.0
        %2193 = vmatpush2.xpose.msra.mxu0 0.0
        %2194 = vmatprep.subr.mxu0 0.0
        %2195 = vmatpush2.xpose.msra.mxu0 0.0
        %2196 = vmatprep.subr.mxu0 0.0
        %2197 = vmatpush2.xpose.msra.mxu0 0.0
        %2198 = vmatprep.subr.mxu0 0.0
        %2199 = vmatpush2.xpose.msra.mxu0 0.0
        %2200 = vmatprep.subr.mxu0 0.0
        %2201 = vmatpush2.xpose.msra.mxu0 0.0
        %2202 = vmatprep.subr.mxu0 0.0
        %2203 = vmatpush2.xpose.msra.mxu0 0.0
        %2204 = vmatprep.subr.mxu0 0.0
        %2205 = vmatpush2.xpose.msra.mxu0 0.0
        %2206 = vmatprep.subr.mxu0 0.0
        %2207 = vmatpush2.xpose.msra.mxu0 0.0
        %2208 = vmatprep.subr.mxu0 0.0
        %2209 = vmatpush2.xpose.msra.mxu0 0.0
        %2210 = vmatprep.subr.mxu0 0.0
        %2211 = vmatpush2.xpose.msra.mxu0 0.0
        %2212 = vmatprep.mubr.f32.mxu0 0.0
        %2213 = vmatmul.mubr.f32.gmra.mxu0 %v2144
        %v2214 = vpop.f32.mrf.mxu0
        %v2215 = vadd.f32 0.0, %v2214
        %v2216 = vpop.f32.mrf.mxu0
        %2217 = vdwg.mxu0
        %v2218 = vmul.f32 %v2215, 0.17677669
        %v2219 = vsel %vm1498, %v2218, -1000000.0
        %v2220 = vsel %vm1500, %v2219, -inf
        %2221 = vmax.xlane.f32.xlu0 %v2220
        %v2222 = vpop.xlane.xlu0 %2221
        %v2223 = vsub.f32 %v2219, %v2222
        %v2224 = vmul.f32 %v2223, 1.442695
        %v2225 = vpow.pop %v2224
        %v2226 = vsel %vm1500, %v2225, 0.0
        %2227 = vadd.xlane.f32.xlu0 %v2226
        %v2228 = vpop.xlane.xlu0 %2227
        %v2229 = vrcp.pop %v2228
        %v2230 = vmul.f32 %v2225, %v2229
        %2231 = vrot.lane.b32.xlu0 %v1418, 32
        %v2232 = vpop.permute.xlu0 %2231
        %v2235 = vsel %vm1500, %v2230, 0
        %2237 = vmatprep.subr.mxu0 0.0
        %2238 = vmatpush1.msra.mxu0 0.0
        %2239 = vmatprep.subr.mxu0 0.0
        %2240 = vmatpush1.msra.mxu0 0.0
        %2241 = vmatprep.subr.mxu0 0.0
        %2242 = vmatpush1.msra.mxu0 0.0
        %2243 = vmatprep.subr.mxu0 0.0
        %2244 = vmatpush1.msra.mxu0 0.0
        %2245 = vmatprep.subr.mxu0 0.0
        %2246 = vmatpush1.msra.mxu0 0.0
        %2247 = vmatprep.subr.mxu0 0.0
        %2248 = vmatpush1.msra.mxu0 0.0
        %2249 = vmatprep.subr.mxu0 0.0
        %2250 = vmatpush1.msra.mxu0 0.0
        %2251 = vmatprep.subr.mxu0 0.0
        %2252 = vmatpush1.msra.mxu0 0.0
        %2253 = vmatprep.subr.mxu0 0.0
        %2254 = vmatpush1.msra.mxu0 0.0
        %2255 = vmatprep.subr.mxu0 0.0
        %2256 = vmatpush1.msra.mxu0 0.0
        %2257 = vmatprep.subr.mxu0 0.0
        %2258 = vmatpush1.msra.mxu0 0.0
        %2259 = vmatprep.subr.mxu0 0.0
        %2260 = vmatpush1.msra.mxu0 0.0
        %2261 = vmatprep.subr.mxu0 0.0
        %2262 = vmatpush1.msra.mxu0 0.0
        %2263 = vmatprep.subr.mxu0 0.0
        %2264 = vmatpush1.msra.mxu0 0.0
        %2265 = vmatprep.subr.mxu0 0.0
        %2266 = vmatpush1.msra.mxu0 0.0
        %2267 = vmatprep.subr.mxu0 0.0
        %2268 = vmatpush1.msra.mxu0 %v2232
        %2269 = vmatprep.subr.mxu0 0.0
        %2270 = vmatpush2.msra.mxu0 0.0
        %2271 = vmatprep.subr.mxu0 0.0
        %2272 = vmatpush2.msra.mxu0 0.0
        %2273 = vmatprep.subr.mxu0 0.0
        %2274 = vmatpush2.msra.mxu0 0.0
        %2275 = vmatprep.subr.mxu0 0.0
        %2276 = vmatpush2.msra.mxu0 0.0
        %2277 = vmatprep.subr.mxu0 0.0
        %2278 = vmatpush2.msra.mxu0 0.0
        %2279 = vmatprep.subr.mxu0 0.0
        %2280 = vmatpush2.msra.mxu0 0.0
        %2281 = vmatprep.subr.mxu0 0.0
        %2282 = vmatpush2.msra.mxu0 0.0
        %2283 = vmatprep.subr.mxu0 0.0
        %2284 = vmatpush2.msra.mxu0 0.0
        %2285 = vmatprep.subr.mxu0 0.0
        %2286 = vmatpush2.msra.mxu0 0.0
        %2287 = vmatprep.subr.mxu0 0.0
        %2288 = vmatpush2.msra.mxu0 0.0
        %2289 = vmatprep.subr.mxu0 0.0
        %2290 = vmatpush2.msra.mxu0 0.0
        %2291 = vmatprep.subr.mxu0 0.0
        %2292 = vmatpush2.msra.mxu0 0.0
        %2293 = vmatprep.subr.mxu0 0.0
        %2294 = vmatpush2.msra.mxu0 0.0
        %2295 = vmatprep.subr.mxu0 0.0
        %2296 = vmatpush2.msra.mxu0 0.0
        %2297 = vmatprep.subr.mxu0 0.0
        %2298 = vmatpush2.msra.mxu0 0.0
        %2299 = vmatprep.subr.mxu0 0.0
        %2300 = vmatpush2.msra.mxu0 0.0
        %2301 = vmatprep.mubr.f32.mxu0 0.0
        %2302 = vmatmul.mubr.f32.gmra.mxu0 %v2235
        %v2303 = vpop.f32.mrf.mxu0
        %v2304 = vadd.f32 0.0, %v2303
        %v2305 = vpop.f32.mrf.mxu0
        %2306 = vdwg.mxu0
        %v2308 = vsel %vm1420, %v2304, 0
        %2310 = vmatprep.subr.mxu0 0.0
        %2311 = vmatpush1.msra.mxu0 0.0
        %2312 = vmatprep.subr.mxu0 0.0
        %2313 = vmatpush1.msra.mxu0 0.0
        %2314 = vmatprep.subr.mxu0 0.0
        %2315 = vmatpush1.msra.mxu0 0.0
        %2316 = vmatprep.subr.mxu0 0.0
        %2317 = vmatpush1.msra.mxu0 0.0
        %2318 = vmatprep.subr.mxu0 0.0
        %2319 = vmatpush1.msra.mxu0 0.0
        %2320 = vmatprep.subr.mxu0 0.0
        %2321 = vmatpush1.msra.mxu0 0.0
        %2322 = vmatprep.subr.mxu0 0.0
        %2323 = vmatpush1.msra.mxu0 0.0
        %2324 = vmatprep.subr.mxu0 0.0
        %2325 = vmatpush1.msra.mxu0 0.0
        %2326 = vmatprep.subr.mxu0 0.0
        %2327 = vmatpush1.msra.mxu0 0.0
        %2328 = vmatprep.subr.mxu0 0.0
        %2329 = vmatpush1.msra.mxu0 0.0
        %2330 = vmatprep.subr.mxu0 0.0
        %2331 = vmatpush1.msra.mxu0 0.0
        %2332 = vmatprep.subr.mxu0 0.0
        %2333 = vmatpush1.msra.mxu0 0.0
        %2334 = vmatprep.subr.mxu0 0.0
        %2335 = vmatpush1.msra.mxu0 %v1278
        %2336 = vmatprep.subr.mxu0 0.0
        %2337 = vmatpush1.msra.mxu0 %v1277
        %2338 = vmatprep.subr.mxu0 0.0
        %2339 = vmatpush1.msra.mxu0 %v1276
        %2340 = vmatprep.subr.mxu0 0.0
        %2341 = vmatpush1.msra.mxu0 %v1275
        %2342 = vmatprep.subr.mxu0 0.0
        %2343 = vmatpush2.msra.mxu0 0.0
        %2344 = vmatprep.subr.mxu0 0.0
        %2345 = vmatpush2.msra.mxu0 0.0
        %2346 = vmatprep.subr.mxu0 0.0
        %2347 = vmatpush2.msra.mxu0 0.0
        %2348 = vmatprep.subr.mxu0 0.0
        %2349 = vmatpush2.msra.mxu0 0.0
        %2350 = vmatprep.subr.mxu0 0.0
        %2351 = vmatpush2.msra.mxu0 0.0
        %2352 = vmatprep.subr.mxu0 0.0
        %2353 = vmatpush2.msra.mxu0 0.0
        %2354 = vmatprep.subr.mxu0 0.0
        %2355 = vmatpush2.msra.mxu0 0.0
        %2356 = vmatprep.subr.mxu0 0.0
        %2357 = vmatpush2.msra.mxu0 0.0
        %2358 = vmatprep.subr.mxu0 0.0
        %2359 = vmatpush2.msra.mxu0 0.0
        %2360 = vmatprep.subr.mxu0 0.0
        %2361 = vmatpush2.msra.mxu0 0.0
        %2362 = vmatprep.subr.mxu0 0.0
        %2363 = vmatpush2.msra.mxu0 0.0
        %2364 = vmatprep.subr.mxu0 0.0
        %2365 = vmatpush2.msra.mxu0 0.0
        %2366 = vmatprep.subr.mxu0 0.0
        %2367 = vmatpush2.msra.mxu0 0.0
        %2368 = vmatprep.subr.mxu0 0.0
        %2369 = vmatpush2.msra.mxu0 0.0
        %2370 = vmatprep.subr.mxu0 0.0
        %2371 = vmatpush2.msra.mxu0 0.0
        %2372 = vmatprep.subr.mxu0 0.0
        %2373 = vmatpush2.msra.mxu0 0.0
        %2374 = vmatprep.mubr.f32.mxu0 0.0
        %2375 = vmatmul.mubr.f32.gmra.mxu0 %v2308
        %v2376 = vpop.f32.mrf.mxu0
        %v2377 = vadd.f32 0.0, %v2376
        %v2378 = vpop.f32.mrf.mxu0
        %2379 = vdwg.mxu0
        %v2380 = vadd.f32 %v2139, %v2377
        %v2381 = vadd.f32 %v1212, %v2380
        %v2382 = vld [vmem:[%s1183] sm:$0x1]
        %v2383 = vld [vmem:[%s1186] sm:$0x1]
        %2384 = vadd.xlane.f32.xlu0 %v2381
        %v2385 = vpop.xlane.xlu0 %2384
        %v2386 = vrcp.pop 128.0
        %v2387 = vmul.f32 %v2385, %v2386
        %v2388 = vsub.f32 %v2381, %v2387
        %v2389 = vmul.f32 %v2388, %v2388
        %2390 = vadd.xlane.f32.xlu0 %v2389
        %v2391 = vpop.xlane.xlu0 %2390
        %v2392 = vmul.f32 %v2391, %v2386
        %v2393 = vadd.f32 %v2392, 1e-05
        %v2394 = vrsqrt.pop %v2393
        %v2395 = vmul.f32 %v2388, %v2394
        %v2397 = vlaneseq
        %v2398 = vshrl.u32 %v2397, 7
        %v2399 = vsub.s32 0, %v2398
        %v2400 = vrot.slane %v2382, %v2399
        %v2402 = vmul.f32 %v2395, %v2400
        %v2404 = vlaneseq
        %v2405 = vshrl.u32 %v2404, 7
        %v2406 = vsub.s32 0, %v2405
        %v2407 = vrot.slane %v2383, %v2406
        %v2409 = vadd.f32 %v2402, %v2407
        %v2410 = vld [vmem:[%s957] sm:$0xff]
        %v2411 = vld [vmem:[%s970] sm:$0xff]
        %v2412 = vld [vmem:[%s1006] sm:$0xff]
        %v2413 = vld [vmem:[%s1006 + $0x8] sm:$0xff]
        %v2414 = vld [vmem:[%s1006 + $0x10] sm:$0xff]
        %v2415 = vld [vmem:[%s1006 + $0x18] sm:$0xff]
        %v2416 = vld [vmem:[%s1006 + $0x20] sm:$0xff]
        %v2417 = vld [vmem:[%s1006 + $0x28] sm:$0xff]
        %v2418 = vld [vmem:[%s1006 + $0x30] sm:$0xff]
        %v2419 = vld [vmem:[%s1006 + $0x38] sm:$0xff]
        %v2420 = vld [vmem:[%s1006 + $0x40] sm:$0xff]
        %v2421 = vld [vmem:[%s1006 + $0x48] sm:$0xff]
        %v2422 = vld [vmem:[%s1006 + $0x50] sm:$0xff]
        %v2423 = vld [vmem:[%s1006 + $0x58] sm:$0xff]
        %v2424 = vld [vmem:[%s1006 + $0x60] sm:$0xff]
        %v2425 = vld [vmem:[%s1006 + $0x68] sm:$0xff]
        %v2426 = vld [vmem:[%s1006 + $0x70] sm:$0xff]
        %v2427 = vld [vmem:[%s1006 + $0x78] sm:$0xff]
        %v2428 = vld [vmem:[%s1015] sm:$0xff]
        %v2429 = vld [vmem:[%s1015 + $0x8] sm:$0xff]
        %v2430 = vld [vmem:[%s1015 + $0x10] sm:$0xff]
        %v2431 = vld [vmem:[%s1015 + $0x18] sm:$0xff]
        %v2432 = vld [vmem:[%s1015 + $0x20] sm:$0xff]
        %v2433 = vld [vmem:[%s1015 + $0x28] sm:$0xff]
        %v2434 = vld [vmem:[%s1015 + $0x30] sm:$0xff]
        %v2435 = vld [vmem:[%s1015 + $0x38] sm:$0xff]
        %v2436 = vld [vmem:[%s1015 + $0x40] sm:$0xff]
        %v2437 = vld [vmem:[%s1015 + $0x48] sm:$0xff]
        %v2438 = vld [vmem:[%s1015 + $0x50] sm:$0xff]
        %v2439 = vld [vmem:[%s1015 + $0x58] sm:$0xff]
        %v2440 = vld [vmem:[%s1015 + $0x60] sm:$0xff]
        %v2441 = vld [vmem:[%s1015 + $0x68] sm:$0xff]
        %v2442 = vld [vmem:[%s1015 + $0x70] sm:$0xff]
        %v2443 = vld [vmem:[%s1015 + $0x78] sm:$0xff]
        %v2444 = vld [vmem:[%s1015 + $0x80] sm:$0xff]
        %v2445 = vld [vmem:[%s1015 + $0x88] sm:$0xff]
        %v2446 = vld [vmem:[%s1015 + $0x90] sm:$0xff]
        %v2447 = vld [vmem:[%s1015 + $0x98] sm:$0xff]
        %v2448 = vld [vmem:[%s1015 + $0xa0] sm:$0xff]
        %v2449 = vld [vmem:[%s1015 + $0xa8] sm:$0xff]
        %v2450 = vld [vmem:[%s1015 + $0xb0] sm:$0xff]
        %v2451 = vld [vmem:[%s1015 + $0xb8] sm:$0xff]
        %v2452 = vld [vmem:[%s1015 + $0xc0] sm:$0xff]
        %v2453 = vld [vmem:[%s1015 + $0xc8] sm:$0xff]
        %v2454 = vld [vmem:[%s1015 + $0xd0] sm:$0xff]
        %v2455 = vld [vmem:[%s1015 + $0xd8] sm:$0xff]
        %v2456 = vld [vmem:[%s1015 + $0xe0] sm:$0xff]
        %v2457 = vld [vmem:[%s1015 + $0xe8] sm:$0xff]
        %v2458 = vld [vmem:[%s1015 + $0xf0] sm:$0xff]
        %v2459 = vld [vmem:[%s1015 + $0xf8] sm:$0xff]
        %v2460 = vld [vmem:[%s1024] sm:$0xff]
        %v2461 = vld [vmem:[%s1024 + $0x8] sm:$0xff]
        %v2462 = vld [vmem:[%s1024 + $0x10] sm:$0xff]
        %v2463 = vld [vmem:[%s1024 + $0x18] sm:$0xff]
        %v2464 = vld [vmem:[%s1024 + $0x20] sm:$0xff]
        %v2465 = vld [vmem:[%s1024 + $0x28] sm:$0xff]
        %v2466 = vld [vmem:[%s1024 + $0x30] sm:$0xff]
        %v2467 = vld [vmem:[%s1024 + $0x38] sm:$0xff]
        %v2468 = vld [vmem:[%s1024 + $0x40] sm:$0xff]
        %v2469 = vld [vmem:[%s1024 + $0x48] sm:$0xff]
        %v2470 = vld [vmem:[%s1024 + $0x50] sm:$0xff]
        %v2471 = vld [vmem:[%s1024 + $0x58] sm:$0xff]
        %v2472 = vld [vmem:[%s1024 + $0x60] sm:$0xff]
        %v2473 = vld [vmem:[%s1024 + $0x68] sm:$0xff]
        %v2474 = vld [vmem:[%s1024 + $0x70] sm:$0xff]
        %v2475 = vld [vmem:[%s1024 + $0x78] sm:$0xff]
        %2476 = vmatprep.subr.mxu0 0.0
        %2477 = vmatpush1.msra.mxu0 %v2427
        %2478 = vmatprep.subr.mxu0 0.0
        %2479 = vmatpush1.msra.mxu0 %v2426
        %2480 = vmatprep.subr.mxu0 0.0
        %2481 = vmatpush1.msra.mxu0 %v2425
        %2482 = vmatprep.subr.mxu0 0.0
        %2483 = vmatpush1.msra.mxu0 %v2424
        %2484 = vmatprep.subr.mxu0 0.0
        %2485 = vmatpush1.msra.mxu0 %v2423
        %2486 = vmatprep.subr.mxu0 0.0
        %2487 = vmatpush1.msra.mxu0 %v2422
        %2488 = vmatprep.subr.mxu0 0.0
        %2489 = vmatpush1.msra.mxu0 %v2421
        %2490 = vmatprep.subr.mxu0 0.0
        %2491 = vmatpush1.msra.mxu0 %v2420
        %2492 = vmatprep.subr.mxu0 0.0
        %2493 = vmatpush1.msra.mxu0 %v2419
        %2494 = vmatprep.subr.mxu0 0.0
        %2495 = vmatpush1.msra.mxu0 %v2418
        %2496 = vmatprep.subr.mxu0 0.0
        %2497 = vmatpush1.msra.mxu0 %v2417
        %2498 = vmatprep.subr.mxu0 0.0
        %2499 = vmatpush1.msra.mxu0 %v2416
        %2500 = vmatprep.subr.mxu0 0.0
        %2501 = vmatpush1.msra.mxu0 %v2415
        %2502 = vmatprep.subr.mxu0 0.0
        %2503 = vmatpush1.msra.mxu0 %v2414
        %2504 = vmatprep.subr.mxu0 0.0
        %2505 = vmatpush1.msra.mxu0 %v2413
        %2506 = vmatprep.subr.mxu0 0.0
        %2507 = vmatpush1.msra.mxu0 %v2412
        %2508 = vmatprep.subr.mxu0 0.0
        %2509 = vmatpush2.msra.mxu0 0.0
        %2510 = vmatprep.subr.mxu0 0.0
        %2511 = vmatpush2.msra.mxu0 0.0
        %2512 = vmatprep.subr.mxu0 0.0
        %2513 = vmatpush2.msra.mxu0 0.0
        %2514 = vmatprep.subr.mxu0 0.0
        %2515 = vmatpush2.msra.mxu0 0.0
        %2516 = vmatprep.subr.mxu0 0.0
        %2517 = vmatpush2.msra.mxu0 0.0
        %2518 = vmatprep.subr.mxu0 0.0
        %2519 = vmatpush2.msra.mxu0 0.0
        %2520 = vmatprep.subr.mxu0 0.0
        %2521 = vmatpush2.msra.mxu0 0.0
        %2522 = vmatprep.subr.mxu0 0.0
        %2523 = vmatpush2.msra.mxu0 0.0
        %2524 = vmatprep.subr.mxu0 0.0
        %2525 = vmatpush2.msra.mxu0 0.0
        %2526 = vmatprep.subr.mxu0 0.0
        %2527 = vmatpush2.msra.mxu0 0.0
        %2528 = vmatprep.subr.mxu0 0.0
        %2529 = vmatpush2.msra.mxu0 0.0
        %2530 = vmatprep.subr.mxu0 0.0
        %2531 = vmatpush2.msra.mxu0 0.0
        %2532 = vmatprep.subr.mxu0 0.0
        %2533 = vmatpush2.msra.mxu0 0.0
        %2534 = vmatprep.subr.mxu0 0.0
        %2535 = vmatpush2.msra.mxu0 0.0
        %2536 = vmatprep.subr.mxu0 0.0
        %2537 = vmatpush2.msra.mxu0 0.0
        %2538 = vmatprep.subr.mxu0 0.0
        %2539 = vmatpush2.msra.mxu0 0.0
        %2540 = vmatprep.mubr.f32.mxu0 0.0
        %2541 = vmatmul.mubr.f32.gmra.mxu0 %v2409
        %v2542 = vpop.f32.mrf.mxu0
        %v2543 = vadd.f32 0.0, %v2542
        %v2544 = vpop.f32.mrf.mxu0
        %2545 = vdwg.mxu0
        %2546 = vmatprep.subr.mxu0 %v2459
        %2547 = vmatpush1.msra.mxu0 %v2458
        %2548 = vmatprep.subr.mxu0 %v2457
        %2549 = vmatpush1.msra.mxu0 %v2456
        %2550 = vmatprep.subr.mxu0 %v2455
        %2551 = vmatpush1.msra.mxu0 %v2454
        %2552 = vmatprep.subr.mxu0 %v2453
        %2553 = vmatpush1.msra.mxu0 %v2452
        %2554 = vmatprep.subr.mxu0 %v2451
        %2555 = vmatpush1.msra.mxu0 %v2450
        %2556 = vmatprep.subr.mxu0 %v2449
        %2557 = vmatpush1.msra.mxu0 %v2448
        %2558 = vmatprep.subr.mxu0 %v2447
        %2559 = vmatpush1.msra.mxu0 %v2446
        %2560 = vmatprep.subr.mxu0 %v2445
        %2561 = vmatpush1.msra.mxu0 %v2444
        %2562 = vmatprep.subr.mxu0 %v2443
        %2563 = vmatpush1.msra.mxu0 %v2442
        %2564 = vmatprep.subr.mxu0 %v2441
        %2565 = vmatpush1.msra.mxu0 %v2440
        %2566 = vmatprep.subr.mxu0 %v2439
        %2567 = vmatpush1.msra.mxu0 %v2438
        %2568 = vmatprep.subr.mxu0 %v2437
        %2569 = vmatpush1.msra.mxu0 %v2436
        %2570 = vmatprep.subr.mxu0 %v2435
        %2571 = vmatpush1.msra.mxu0 %v2434
        %2572 = vmatprep.subr.mxu0 %v2433
        %2573 = vmatpush1.msra.mxu0 %v2432
        %2574 = vmatprep.subr.mxu0 %v2431
        %2575 = vmatpush1.msra.mxu0 %v2430
        %2576 = vmatprep.subr.mxu0 %v2429
        %2577 = vmatpush1.msra.mxu0 %v2428
        %2578 = vmatprep.subr.mxu0 0.0
        %2579 = vmatpush2.msra.mxu0 0.0
        %2580 = vmatprep.subr.mxu0 0.0
        %2581 = vmatpush2.msra.mxu0 0.0
        %2582 = vmatprep.subr.mxu0 0.0
        %2583 = vmatpush2.msra.mxu0 0.0
        %2584 = vmatprep.subr.mxu0 0.0
        %2585 = vmatpush2.msra.mxu0 0.0
        %2586 = vmatprep.subr.mxu0 0.0
        %2587 = vmatpush2.msra.mxu0 0.0
        %2588 = vmatprep.subr.mxu0 0.0
        %2589 = vmatpush2.msra.mxu0 0.0
        %2590 = vmatprep.subr.mxu0 0.0
        %2591 = vmatpush2.msra.mxu0 0.0
        %2592 = vmatprep.subr.mxu0 0.0
        %2593 = vmatpush2.msra.mxu0 0.0
        %2594 = vmatprep.subr.mxu0 0.0
        %2595 = vmatpush2.msra.mxu0 0.0
        %2596 = vmatprep.subr.mxu0 0.0
        %2597 = vmatpush2.msra.mxu0 0.0
        %2598 = vmatprep.subr.mxu0 0.0
        %2599 = vmatpush2.msra.mxu0 0.0
        %2600 = vmatprep.subr.mxu0 0.0
        %2601 = vmatpush2.msra.mxu0 0.0
        %2602 = vmatprep.subr.mxu0 0.0
        %2603 = vmatpush2.msra.mxu0 0.0
        %2604 = vmatprep.subr.mxu0 0.0
        %2605 = vmatpush2.msra.mxu0 0.0
        %2606 = vmatprep.subr.mxu0 0.0
        %2607 = vmatpush2.msra.mxu0 0.0
        %2608 = vmatprep.subr.mxu0 0.0
        %2609 = vmatpush2.msra.mxu0 0.0
        %2610 = vmatprep.mubr.f32.mxu0 0.0
        %2611 = vmatmul.mubr.f32.gmra.mxu0 %v2410
        %v2612 = vpop.f32.mrf.mxu0
        %v2613 = vadd.f32 0.0, %v2612
        %v2614 = vpop.f32.mrf.mxu0
        %v2615 = vadd.f32 0.0, %v2614
        %2616 = vdwg.mxu0
        %v2618 = vsel %vm1420, %v2543, 0
        %v2621 = vsel %vm1420, %v2613, 0
        %2623 = vmatprep.subr.mxu0 0.0
        %2624 = vmatpush1.xpose.msra.mxu0 0.0
        %2625 = vmatprep.subr.mxu0 0.0
        %2626 = vmatpush1.xpose.msra.mxu0 0.0
        %2627 = vmatprep.subr.mxu0 0.0
        %2628 = vmatpush1.xpose.msra.mxu0 0.0
        %2629 = vmatprep.subr.mxu0 0.0
        %2630 = vmatpush1.xpose.msra.mxu0 0.0
        %2631 = vmatprep.subr.mxu0 0.0
        %2632 = vmatpush1.xpose.msra.mxu0 0.0
        %2633 = vmatprep.subr.mxu0 0.0
        %2634 = vmatpush1.xpose.msra.mxu0 0.0
        %2635 = vmatprep.subr.mxu0 0.0
        %2636 = vmatpush1.xpose.msra.mxu0 0.0
        %2637 = vmatprep.subr.mxu0 0.0
        %2638 = vmatpush1.xpose.msra.mxu0 0.0
        %2639 = vmatprep.subr.mxu0 0.0
        %2640 = vmatpush1.xpose.msra.mxu0 0.0
        %2641 = vmatprep.subr.mxu0 0.0
        %2642 = vmatpush1.xpose.msra.mxu0 0.0
        %2643 = vmatprep.subr.mxu0 0.0
        %2644 = vmatpush1.xpose.msra.mxu0 0.0
        %2645 = vmatprep.subr.mxu0 0.0
        %2646 = vmatpush1.xpose.msra.mxu0 0.0
        %2647 = vmatprep.subr.mxu0 0.0
        %2648 = vmatpush1.xpose.msra.mxu0 0.0
        %2649 = vmatprep.subr.mxu0 0.0
        %2650 = vmatpush1.xpose.msra.mxu0 0.0
        %2651 = vmatprep.subr.mxu0 0.0
        %2652 = vmatpush1.xpose.msra.mxu0 0.0
        %2653 = vmatprep.subr.mxu0 0.0
        %2654 = vmatpush1.xpose.msra.mxu0 %v2621
        %2655 = vmatprep.subr.mxu0 0.0
        %2656 = vmatpush2.xpose.msra.mxu0 0.0
        %2657 = vmatprep.subr.mxu0 0.0
        %2658 = vmatpush2.xpose.msra.mxu0 0.0
        %2659 = vmatprep.subr.mxu0 0.0
        %2660 = vmatpush2.xpose.msra.mxu0 0.0
        %2661 = vmatprep.subr.mxu0 0.0
        %2662 = vmatpush2.xpose.msra.mxu0 0.0
        %2663 = vmatprep.subr.mxu0 0.0
        %2664 = vmatpush2.xpose.msra.mxu0 0.0
        %2665 = vmatprep.subr.mxu0 0.0
        %2666 = vmatpush2.xpose.msra.mxu0 0.0
        %2667 = vmatprep.subr.mxu0 0.0
        %2668 = vmatpush2.xpose.msra.mxu0 0.0
        %2669 = vmatprep.subr.mxu0 0.0
        %2670 = vmatpush2.xpose.msra.mxu0 0.0
        %2671 = vmatprep.subr.mxu0 0.0
        %2672 = vmatpush2.xpose.msra.mxu0 0.0
        %2673 = vmatprep.subr.mxu0 0.0
        %2674 = vmatpush2.xpose.msra.mxu0 0.0
        %2675 = vmatprep.subr.mxu0 0.0
        %2676 = vmatpush2.xpose.msra.mxu0 0.0
        %2677 = vmatprep.subr.mxu0 0.0
        %2678 = vmatpush2.xpose.msra.mxu0 0.0
        %2679 = vmatprep.subr.mxu0 0.0
        %2680 = vmatpush2.xpose.msra.mxu0 0.0
        %2681 = vmatprep.subr.mxu0 0.0
        %2682 = vmatpush2.xpose.msra.mxu0 0.0
        %2683 = vmatprep.subr.mxu0 0.0
        %2684 = vmatpush2.xpose.msra.mxu0 0.0
        %2685 = vmatprep.subr.mxu0 0.0
        %2686 = vmatpush2.xpose.msra.mxu0 0.0
        %2687 = vmatprep.mubr.f32.mxu0 0.0
        %2688 = vmatmul.mubr.f32.gmra.mxu0 %v2618
        %v2689 = vpop.f32.mrf.mxu0
        %v2690 = vadd.f32 0.0, %v2689
        %v2691 = vpop.f32.mrf.mxu0
        %2692 = vdwg.mxu0
        %v2693 = vmul.f32 %v2690, 0.17677669
        %vm2694 = vcmp.gt.f32.partialorder %v2411, 0.5
        %v2695 = vsel %vm2694, %v2693, -1000000.0
        %v2696 = vsel %vm1500, %v2695, -inf
        %2697 = vmax.xlane.f32.xlu0 %v2696
        %v2698 = vpop.xlane.xlu0 %2697
        %v2699 = vsub.f32 %v2695, %v2698
        %v2700 = vmul.f32 %v2699, 1.442695
        %v2701 = vpow.pop %v2700
        %v2702 = vsel %vm1500, %v2701, 0.0
        %2703 = vadd.xlane.f32.xlu0 %v2702
        %v2704 = vpop.xlane.xlu0 %2703
        %v2705 = vrcp.pop %v2704
        %v2706 = vmul.f32 %v2701, %v2705
        %v2708 = vsel %vm1500, %v2706, 0
        %2710 = vmatprep.subr.mxu0 0.0
        %2711 = vmatpush1.msra.mxu0 0.0
        %2712 = vmatprep.subr.mxu0 0.0
        %2713 = vmatpush1.msra.mxu0 0.0
        %2714 = vmatprep.subr.mxu0 0.0
        %2715 = vmatpush1.msra.mxu0 0.0
        %2716 = vmatprep.subr.mxu0 0.0
        %2717 = vmatpush1.msra.mxu0 0.0
        %2718 = vmatprep.subr.mxu0 0.0
        %2719 = vmatpush1.msra.mxu0 0.0
        %2720 = vmatprep.subr.mxu0 0.0
        %2721 = vmatpush1.msra.mxu0 0.0
        %2722 = vmatprep.subr.mxu0 0.0
        %2723 = vmatpush1.msra.mxu0 0.0
        %2724 = vmatprep.subr.mxu0 0.0
        %2725 = vmatpush1.msra.mxu0 0.0
        %2726 = vmatprep.subr.mxu0 0.0
        %2727 = vmatpush1.msra.mxu0 0.0
        %2728 = vmatprep.subr.mxu0 0.0
        %2729 = vmatpush1.msra.mxu0 0.0
        %2730 = vmatprep.subr.mxu0 0.0
        %2731 = vmatpush1.msra.mxu0 0.0
        %2732 = vmatprep.subr.mxu0 0.0
        %2733 = vmatpush1.msra.mxu0 0.0
        %2734 = vmatprep.subr.mxu0 0.0
        %2735 = vmatpush1.msra.mxu0 0.0
        %2736 = vmatprep.subr.mxu0 0.0
        %2737 = vmatpush1.msra.mxu0 0.0
        %2738 = vmatprep.subr.mxu0 0.0
        %2739 = vmatpush1.msra.mxu0 0.0
        %2740 = vmatprep.subr.mxu0 0.0
        %2741 = vmatpush1.msra.mxu0 %v2615
        %2742 = vmatprep.subr.mxu0 0.0
        %2743 = vmatpush2.msra.mxu0 0.0
        %2744 = vmatprep.subr.mxu0 0.0
        %2745 = vmatpush2.msra.mxu0 0.0
        %2746 = vmatprep.subr.mxu0 0.0
        %2747 = vmatpush2.msra.mxu0 0.0
        %2748 = vmatprep.subr.mxu0 0.0
        %2749 = vmatpush2.msra.mxu0 0.0
        %2750 = vmatprep.subr.mxu0 0.0
        %2751 = vmatpush2.msra.mxu0 0.0
        %2752 = vmatprep.subr.mxu0 0.0
        %2753 = vmatpush2.msra.mxu0 0.0
        %2754 = vmatprep.subr.mxu0 0.0
        %2755 = vmatpush2.msra.mxu0 0.0
        %2756 = vmatprep.subr.mxu0 0.0
        %2757 = vmatpush2.msra.mxu0 0.0
        %2758 = vmatprep.subr.mxu0 0.0
        %2759 = vmatpush2.msra.mxu0 0.0
        %2760 = vmatprep.subr.mxu0 0.0
        %2761 = vmatpush2.msra.mxu0 0.0
        %2762 = vmatprep.subr.mxu0 0.0
        %2763 = vmatpush2.msra.mxu0 0.0
        %2764 = vmatprep.subr.mxu0 0.0
        %2765 = vmatpush2.msra.mxu0 0.0
        %2766 = vmatprep.subr.mxu0 0.0
        %2767 = vmatpush2.msra.mxu0 0.0
        %2768 = vmatprep.subr.mxu0 0.0
        %2769 = vmatpush2.msra.mxu0 0.0
        %2770 = vmatprep.subr.mxu0 0.0
        %2771 = vmatpush2.msra.mxu0 0.0
        %2772 = vmatprep.subr.mxu0 0.0
        %2773 = vmatpush2.msra.mxu0 0.0
        %2774 = vmatprep.mubr.f32.mxu0 0.0
        %2775 = vmatmul.mubr.f32.gmra.mxu0 %v2708
        %v2776 = vpop.f32.mrf.mxu0
        %v2777 = vadd.f32 0.0, %v2776
        %v2778 = vpop.f32.mrf.mxu0
        %2779 = vdwg.mxu0
        %2780 = vrot.lane.b32.xlu0 %v2543, 96
        %v2781 = vpop.permute.xlu0 %2780
        %2782 = vrot.lane.b32.xlu0 %v2613, 96
        %v2783 = vpop.permute.xlu0 %2782
        %v2784 = vsel %vm1420, %v2781, 0
        %v2786 = vsel %vm1420, %v2783, 0
        %2788 = vmatprep.subr.mxu0 0.0
        %2789 = vmatpush1.xpose.msra.mxu0 0.0
        %2790 = vmatprep.subr.mxu0 0.0
        %2791 = vmatpush1.xpose.msra.mxu0 0.0
        %2792 = vmatprep.subr.mxu0 0.0
        %2793 = vmatpush1.xpose.msra.mxu0 0.0
        %2794 = vmatprep.subr.mxu0 0.0
        %2795 = vmatpush1.xpose.msra.mxu0 0.0
        %2796 = vmatprep.subr.mxu0 0.0
        %2797 = vmatpush1.xpose.msra.mxu0 0.0
        %2798 = vmatprep.subr.mxu0 0.0
        %2799 = vmatpush1.xpose.msra.mxu0 0.0
        %2800 = vmatprep.subr.mxu0 0.0
        %2801 = vmatpush1.xpose.msra.mxu0 0.0
        %2802 = vmatprep.subr.mxu0 0.0
        %2803 = vmatpush1.xpose.msra.mxu0 0.0
        %2804 = vmatprep.subr.mxu0 0.0
        %2805 = vmatpush1.xpose.msra.mxu0 0.0
        %2806 = vmatprep.subr.mxu0 0.0
        %2807 = vmatpush1.xpose.msra.mxu0 0.0
        %2808 = vmatprep.subr.mxu0 0.0
        %2809 = vmatpush1.xpose.msra.mxu0 0.0
        %2810 = vmatprep.subr.mxu0 0.0
        %2811 = vmatpush1.xpose.msra.mxu0 0.0
        %2812 = vmatprep.subr.mxu0 0.0
        %2813 = vmatpush1.xpose.msra.mxu0 0.0
        %2814 = vmatprep.subr.mxu0 0.0
        %2815 = vmatpush1.xpose.msra.mxu0 0.0
        %2816 = vmatprep.subr.mxu0 0.0
        %2817 = vmatpush1.xpose.msra.mxu0 0.0
        %2818 = vmatprep.subr.mxu0 0.0
        %2819 = vmatpush1.xpose.msra.mxu0 %v2786
        %2820 = vmatprep.subr.mxu0 0.0
        %2821 = vmatpush2.xpose.msra.mxu0 0.0
        %2822 = vmatprep.subr.mxu0 0.0
        %2823 = vmatpush2.xpose.msra.mxu0 0.0
        %2824 = vmatprep.subr.mxu0 0.0
        %2825 = vmatpush2.xpose.msra.mxu0 0.0
        %2826 = vmatprep.subr.mxu0 0.0
        %2827 = vmatpush2.xpose.msra.mxu0 0.0
        %2828 = vmatprep.subr.mxu0 0.0
        %2829 = vmatpush2.xpose.msra.mxu0 0.0
        %2830 = vmatprep.subr.mxu0 0.0
        %2831 = vmatpush2.xpose.msra.mxu0 0.0
        %2832 = vmatprep.subr.mxu0 0.0
        %2833 = vmatpush2.xpose.msra.mxu0 0.0
        %2834 = vmatprep.subr.mxu0 0.0
        %2835 = vmatpush2.xpose.msra.mxu0 0.0
        %2836 = vmatprep.subr.mxu0 0.0
        %2837 = vmatpush2.xpose.msra.mxu0 0.0
        %2838 = vmatprep.subr.mxu0 0.0
        %2839 = vmatpush2.xpose.msra.mxu0 0.0
        %2840 = vmatprep.subr.mxu0 0.0
        %2841 = vmatpush2.xpose.msra.mxu0 0.0
        %2842 = vmatprep.subr.mxu0 0.0
        %2843 = vmatpush2.xpose.msra.mxu0 0.0
        %2844 = vmatprep.subr.mxu0 0.0
        %2845 = vmatpush2.xpose.msra.mxu0 0.0
        %2846 = vmatprep.subr.mxu0 0.0
        %2847 = vmatpush2.xpose.msra.mxu0 0.0
        %2848 = vmatprep.subr.mxu0 0.0
        %2849 = vmatpush2.xpose.msra.mxu0 0.0
        %2850 = vmatprep.subr.mxu0 0.0
        %2851 = vmatpush2.xpose.msra.mxu0 0.0
        %2852 = vmatprep.mubr.f32.mxu0 0.0
        %2853 = vmatmul.mubr.f32.gmra.mxu0 %v2784
        %v2854 = vpop.f32.mrf.mxu0
        %v2855 = vadd.f32 0.0, %v2854
        %v2856 = vpop.f32.mrf.mxu0
        %2857 = vdwg.mxu0
        %v2858 = vmul.f32 %v2855, 0.17677669
        %v2859 = vsel %vm2694, %v2858, -1000000.0
        %v2860 = vsel %vm1500, %v2859, -inf
        %2861 = vmax.xlane.f32.xlu0 %v2860
        %v2862 = vpop.xlane.xlu0 %2861
        %v2863 = vsub.f32 %v2859, %v2862
        %v2864 = vmul.f32 %v2863, 1.442695
        %v2865 = vpow.pop %v2864
        %v2866 = vsel %vm1500, %v2865, 0.0
        %2867 = vadd.xlane.f32.xlu0 %v2866
        %v2868 = vpop.xlane.xlu0 %2867
        %v2869 = vrcp.pop %v2868
        %v2870 = vmul.f32 %v2865, %v2869
        %2872 = vrot.lane.b32.xlu0 %v2615, 96
        %v2873 = vpop.permute.xlu0 %2872
        %v2876 = vsel %vm1500, %v2870, 0
        %2878 = vmatprep.subr.mxu0 0.0
        %2879 = vmatpush1.msra.mxu0 0.0
        %2880 = vmatprep.subr.mxu0 0.0
        %2881 = vmatpush1.msra.mxu0 0.0
        %2882 = vmatprep.subr.mxu0 0.0
        %2883 = vmatpush1.msra.mxu0 0.0
        %2884 = vmatprep.subr.mxu0 0.0
        %2885 = vmatpush1.msra.mxu0 0.0
        %2886 = vmatprep.subr.mxu0 0.0
        %2887 = vmatpush1.msra.mxu0 0.0
        %2888 = vmatprep.subr.mxu0 0.0
        %2889 = vmatpush1.msra.mxu0 0.0
        %2890 = vmatprep.subr.mxu0 0.0
        %2891 = vmatpush1.msra.mxu0 0.0
        %2892 = vmatprep.subr.mxu0 0.0
        %2893 = vmatpush1.msra.mxu0 0.0
        %2894 = vmatprep.subr.mxu0 0.0
        %2895 = vmatpush1.msra.mxu0 0.0
        %2896 = vmatprep.subr.mxu0 0.0
        %2897 = vmatpush1.msra.mxu0 0.0
        %2898 = vmatprep.subr.mxu0 0.0
        %2899 = vmatpush1.msra.mxu0 0.0
        %2900 = vmatprep.subr.mxu0 0.0
        %2901 = vmatpush1.msra.mxu0 0.0
        %2902 = vmatprep.subr.mxu0 0.0
        %2903 = vmatpush1.msra.mxu0 0.0
        %2904 = vmatprep.subr.mxu0 0.0
        %2905 = vmatpush1.msra.mxu0 0.0
        %2906 = vmatprep.subr.mxu0 0.0
        %2907 = vmatpush1.msra.mxu0 0.0
        %2908 = vmatprep.subr.mxu0 0.0
        %2909 = vmatpush1.msra.mxu0 %v2873
        %2910 = vmatprep.subr.mxu0 0.0
        %2911 = vmatpush2.msra.mxu0 0.0
        %2912 = vmatprep.subr.mxu0 0.0
        %2913 = vmatpush2.msra.mxu0 0.0
        %2914 = vmatprep.subr.mxu0 0.0
        %2915 = vmatpush2.msra.mxu0 0.0
        %2916 = vmatprep.subr.mxu0 0.0
        %2917 = vmatpush2.msra.mxu0 0.0
        %2918 = vmatprep.subr.mxu0 0.0
        %2919 = vmatpush2.msra.mxu0 0.0
        %2920 = vmatprep.subr.mxu0 0.0
        %2921 = vmatpush2.msra.mxu0 0.0
        %2922 = vmatprep.subr.mxu0 0.0
        %2923 = vmatpush2.msra.mxu0 0.0
        %2924 = vmatprep.subr.mxu0 0.0
        %2925 = vmatpush2.msra.mxu0 0.0
        %2926 = vmatprep.subr.mxu0 0.0
        %2927 = vmatpush2.msra.mxu0 0.0
        %2928 = vmatprep.subr.mxu0 0.0
        %2929 = vmatpush2.msra.mxu0 0.0
        %2930 = vmatprep.subr.mxu0 0.0
        %2931 = vmatpush2.msra.mxu0 0.0
        %2932 = vmatprep.subr.mxu0 0.0
        %2933 = vmatpush2.msra.mxu0 0.0
        %2934 = vmatprep.subr.mxu0 0.0
        %2935 = vmatpush2.msra.mxu0 0.0
        %2936 = vmatprep.subr.mxu0 0.0
        %2937 = vmatpush2.msra.mxu0 0.0
        %2938 = vmatprep.subr.mxu0 0.0
        %2939 = vmatpush2.msra.mxu0 0.0
        %2940 = vmatprep.subr.mxu0 0.0
        %2941 = vmatpush2.msra.mxu0 0.0
        %2942 = vmatprep.mubr.f32.mxu0 0.0
        %2943 = vmatmul.mubr.f32.gmra.mxu0 %v2876
        %v2944 = vpop.f32.mrf.mxu0
        %v2945 = vadd.f32 0.0, %v2944
        %v2946 = vpop.f32.mrf.mxu0
        %2947 = vdwg.mxu0
        %v2949 = vsel %vm1420, %v2945, 0
        %2951 = vmatprep.subr.mxu0 0.0
        %2952 = vmatpush1.msra.mxu0 0.0
        %2953 = vmatprep.subr.mxu0 0.0
        %2954 = vmatpush1.msra.mxu0 0.0
        %2955 = vmatprep.subr.mxu0 0.0
        %2956 = vmatpush1.msra.mxu0 0.0
        %2957 = vmatprep.subr.mxu0 0.0
        %2958 = vmatpush1.msra.mxu0 0.0
        %2959 = vmatprep.subr.mxu0 0.0
        %2960 = vmatpush1.msra.mxu0 0.0
        %2961 = vmatprep.subr.mxu0 0.0
        %2962 = vmatpush1.msra.mxu0 0.0
        %2963 = vmatprep.subr.mxu0 0.0
        %2964 = vmatpush1.msra.mxu0 0.0
        %2965 = vmatprep.subr.mxu0 0.0
        %2966 = vmatpush1.msra.mxu0 0.0
        %2967 = vmatprep.subr.mxu0 0.0
        %2968 = vmatpush1.msra.mxu0 0.0
        %2969 = vmatprep.subr.mxu0 0.0
        %2970 = vmatpush1.msra.mxu0 0.0
        %2971 = vmatprep.subr.mxu0 0.0
        %2972 = vmatpush1.msra.mxu0 0.0
        %2973 = vmatprep.subr.mxu0 0.0
        %2974 = vmatpush1.msra.mxu0 0.0
        %2975 = vmatprep.subr.mxu0 0.0
        %2976 = vmatpush1.msra.mxu0 %v2467
        %2977 = vmatprep.subr.mxu0 0.0
        %2978 = vmatpush1.msra.mxu0 %v2466
        %2979 = vmatprep.subr.mxu0 0.0
        %2980 = vmatpush1.msra.mxu0 %v2465
        %2981 = vmatprep.subr.mxu0 0.0
        %2982 = vmatpush1.msra.mxu0 %v2464
        %2983 = vmatprep.subr.mxu0 0.0
        %2984 = vmatpush2.msra.mxu0 0.0
        %2985 = vmatprep.subr.mxu0 0.0
        %2986 = vmatpush2.msra.mxu0 0.0
        %2987 = vmatprep.subr.mxu0 0.0
        %2988 = vmatpush2.msra.mxu0 0.0
        %2989 = vmatprep.subr.mxu0 0.0
        %2990 = vmatpush2.msra.mxu0 0.0
        %2991 = vmatprep.subr.mxu0 0.0
        %2992 = vmatpush2.msra.mxu0 0.0
        %2993 = vmatprep.subr.mxu0 0.0
        %2994 = vmatpush2.msra.mxu0 0.0
        %2995 = vmatprep.subr.mxu0 0.0
        %2996 = vmatpush2.msra.mxu0 0.0
        %2997 = vmatprep.subr.mxu0 0.0
        %2998 = vmatpush2.msra.mxu0 0.0
        %2999 = vmatprep.subr.mxu0 0.0
        %3000 = vmatpush2.msra.mxu0 0.0
        %3001 = vmatprep.subr.mxu0 0.0
        %3002 = vmatpush2.msra.mxu0 0.0
        %3003 = vmatprep.subr.mxu0 0.0
        %3004 = vmatpush2.msra.mxu0 0.0
        %3005 = vmatprep.subr.mxu0 0.0
        %3006 = vmatpush2.msra.mxu0 0.0
        %3007 = vmatprep.subr.mxu0 0.0
        %3008 = vmatpush2.msra.mxu0 0.0
        %3009 = vmatprep.subr.mxu0 0.0
        %3010 = vmatpush2.msra.mxu0 0.0
        %3011 = vmatprep.subr.mxu0 0.0
        %3012 = vmatpush2.msra.mxu0 0.0
        %3013 = vmatprep.subr.mxu0 0.0
        %3014 = vmatpush2.msra.mxu0 0.0
        %3015 = vmatprep.mubr.f32.mxu0 0.0
        %3016 = vmatmul.mubr.f32.gmra.mxu0 %v2949
        %v3017 = vpop.f32.mrf.mxu0
        %v3018 = vadd.f32 0.0, %v3017
        %v3019 = vpop.f32.mrf.mxu0
        %3020 = vdwg.mxu0
        %v3022 = vsel %vm1420, %v2777, 0
        %3024 = vmatprep.subr.mxu0 0.0
        %3025 = vmatpush1.msra.mxu0 0.0
        %3026 = vmatprep.subr.mxu0 0.0
        %3027 = vmatpush1.msra.mxu0 0.0
        %3028 = vmatprep.subr.mxu0 0.0
        %3029 = vmatpush1.msra.mxu0 0.0
        %3030 = vmatprep.subr.mxu0 0.0
        %3031 = vmatpush1.msra.mxu0 0.0
        %3032 = vmatprep.subr.mxu0 0.0
        %3033 = vmatpush1.msra.mxu0 0.0
        %3034 = vmatprep.subr.mxu0 0.0
        %3035 = vmatpush1.msra.mxu0 0.0
        %3036 = vmatprep.subr.mxu0 0.0
        %3037 = vmatpush1.msra.mxu0 0.0
        %3038 = vmatprep.subr.mxu0 0.0
        %3039 = vmatpush1.msra.mxu0 0.0
        %3040 = vmatprep.subr.mxu0 0.0
        %3041 = vmatpush1.msra.mxu0 0.0
        %3042 = vmatprep.subr.mxu0 0.0
        %3043 = vmatpush1.msra.mxu0 0.0
        %3044 = vmatprep.subr.mxu0 0.0
        %3045 = vmatpush1.msra.mxu0 0.0
        %3046 = vmatprep.subr.mxu0 0.0
        %3047 = vmatpush1.msra.mxu0 0.0
        %3048 = vmatprep.subr.mxu0 0.0
        %3049 = vmatpush1.msra.mxu0 %v2463
        %3050 = vmatprep.subr.mxu0 0.0
        %3051 = vmatpush1.msra.mxu0 %v2462
        %3052 = vmatprep.subr.mxu0 0.0
        %3053 = vmatpush1.msra.mxu0 %v2461
        %3054 = vmatprep.subr.mxu0 0.0
        %3055 = vmatpush1.msra.mxu0 %v2460
        %3056 = vmatprep.subr.mxu0 0.0
        %3057 = vmatpush2.msra.mxu0 0.0
        %3058 = vmatprep.subr.mxu0 0.0
        %3059 = vmatpush2.msra.mxu0 0.0
        %3060 = vmatprep.subr.mxu0 0.0
        %3061 = vmatpush2.msra.mxu0 0.0
        %3062 = vmatprep.subr.mxu0 0.0
        %3063 = vmatpush2.msra.mxu0 0.0
        %3064 = vmatprep.subr.mxu0 0.0
        %3065 = vmatpush2.msra.mxu0 0.0
        %3066 = vmatprep.subr.mxu0 0.0
        %3067 = vmatpush2.msra.mxu0 0.0
        %3068 = vmatprep.subr.mxu0 0.0
        %3069 = vmatpush2.msra.mxu0 0.0
        %3070 = vmatprep.subr.mxu0 0.0
        %3071 = vmatpush2.msra.mxu0 0.0
        %3072 = vmatprep.subr.mxu0 0.0
        %3073 = vmatpush2.msra.mxu0 0.0
        %3074 = vmatprep.subr.mxu0 0.0
        %3075 = vmatpush2.msra.mxu0 0.0
        %3076 = vmatprep.subr.mxu0 0.0
        %3077 = vmatpush2.msra.mxu0 0.0
        %3078 = vmatprep.subr.mxu0 0.0
        %3079 = vmatpush2.msra.mxu0 0.0
        %3080 = vmatprep.subr.mxu0 0.0
        %3081 = vmatpush2.msra.mxu0 0.0
        %3082 = vmatprep.subr.mxu0 0.0
        %3083 = vmatpush2.msra.mxu0 0.0
        %3084 = vmatprep.subr.mxu0 0.0
        %3085 = vmatpush2.msra.mxu0 0.0
        %3086 = vmatprep.subr.mxu0 0.0
        %3087 = vmatpush2.msra.mxu0 0.0
        %3088 = vmatprep.mubr.f32.mxu0 0.0
        %3089 = vmatmul.mubr.f32.gmra.mxu0 %v3022
        %v3090 = vpop.f32.mrf.mxu0
        %v3091 = vadd.f32 %v3018, %v3090
        %v3092 = vpop.f32.mrf.mxu0
        %3093 = vdwg.mxu0
        %3094 = vrot.lane.b32.xlu0 %v2543, 64
        %v3095 = vpop.permute.xlu0 %3094
        %3096 = vrot.lane.b32.xlu0 %v2613, 64
        %v3097 = vpop.permute.xlu0 %3096
        %v3098 = vsel %vm1420, %v3095, 0
        %v3100 = vsel %vm1420, %v3097, 0
        %3102 = vmatprep.subr.mxu0 0.0
        %3103 = vmatpush1.xpose.msra.mxu0 0.0
        %3104 = vmatprep.subr.mxu0 0.0
        %3105 = vmatpush1.xpose.msra.mxu0 0.0
        %3106 = vmatprep.subr.mxu0 0.0
        %3107 = vmatpush1.xpose.msra.mxu0 0.0
        %3108 = vmatprep.subr.mxu0 0.0
        %3109 = vmatpush1.xpose.msra.mxu0 0.0
        %3110 = vmatprep.subr.mxu0 0.0
        %3111 = vmatpush1.xpose.msra.mxu0 0.0
        %3112 = vmatprep.subr.mxu0 0.0
        %3113 = vmatpush1.xpose.msra.mxu0 0.0
        %3114 = vmatprep.subr.mxu0 0.0
        %3115 = vmatpush1.xpose.msra.mxu0 0.0
        %3116 = vmatprep.subr.mxu0 0.0
        %3117 = vmatpush1.xpose.msra.mxu0 0.0
        %3118 = vmatprep.subr.mxu0 0.0
        %3119 = vmatpush1.xpose.msra.mxu0 0.0
        %3120 = vmatprep.subr.mxu0 0.0
        %3121 = vmatpush1.xpose.msra.mxu0 0.0
        %3122 = vmatprep.subr.mxu0 0.0
        %3123 = vmatpush1.xpose.msra.mxu0 0.0
        %3124 = vmatprep.subr.mxu0 0.0
        %3125 = vmatpush1.xpose.msra.mxu0 0.0
        %3126 = vmatprep.subr.mxu0 0.0
        %3127 = vmatpush1.xpose.msra.mxu0 0.0
        %3128 = vmatprep.subr.mxu0 0.0
        %3129 = vmatpush1.xpose.msra.mxu0 0.0
        %3130 = vmatprep.subr.mxu0 0.0
        %3131 = vmatpush1.xpose.msra.mxu0 0.0
        %3132 = vmatprep.subr.mxu0 0.0
        %3133 = vmatpush1.xpose.msra.mxu0 %v3100
        %3134 = vmatprep.subr.mxu0 0.0
        %3135 = vmatpush2.xpose.msra.mxu0 0.0
        %3136 = vmatprep.subr.mxu0 0.0
        %3137 = vmatpush2.xpose.msra.mxu0 0.0
        %3138 = vmatprep.subr.mxu0 0.0
        %3139 = vmatpush2.xpose.msra.mxu0 0.0
        %3140 = vmatprep.subr.mxu0 0.0
        %3141 = vmatpush2.xpose.msra.mxu0 0.0
        %3142 = vmatprep.subr.mxu0 0.0
        %3143 = vmatpush2.xpose.msra.mxu0 0.0
        %3144 = vmatprep.subr.mxu0 0.0
        %3145 = vmatpush2.xpose.msra.mxu0 0.0
        %3146 = vmatprep.subr.mxu0 0.0
        %3147 = vmatpush2.xpose.msra.mxu0 0.0
        %3148 = vmatprep.subr.mxu0 0.0
        %3149 = vmatpush2.xpose.msra.mxu0 0.0
        %3150 = vmatprep.subr.mxu0 0.0
        %3151 = vmatpush2.xpose.msra.mxu0 0.0
        %3152 = vmatprep.subr.mxu0 0.0
        %3153 = vmatpush2.xpose.msra.mxu0 0.0
        %3154 = vmatprep.subr.mxu0 0.0
        %3155 = vmatpush2.xpose.msra.mxu0 0.0
        %3156 = vmatprep.subr.mxu0 0.0
        %3157 = vmatpush2.xpose.msra.mxu0 0.0
        %3158 = vmatprep.subr.mxu0 0.0
        %3159 = vmatpush2.xpose.msra.mxu0 0.0
        %3160 = vmatprep.subr.mxu0 0.0
        %3161 = vmatpush2.xpose.msra.mxu0 0.0
        %3162 = vmatprep.subr.mxu0 0.0
        %3163 = vmatpush2.xpose.msra.mxu0 0.0
        %3164 = vmatprep.subr.mxu0 0.0
        %3165 = vmatpush2.xpose.msra.mxu0 0.0
        %3166 = vmatprep.mubr.f32.mxu0 0.0
        %3167 = vmatmul.mubr.f32.gmra.mxu0 %v3098
        %v3168 = vpop.f32.mrf.mxu0
        %v3169 = vadd.f32 0.0, %v3168
        %v3170 = vpop.f32.mrf.mxu0
        %3171 = vdwg.mxu0
        %v3172 = vmul.f32 %v3169, 0.17677669
        %v3173 = vsel %vm2694, %v3172, -1000000.0
        %v3174 = vsel %vm1500, %v3173, -inf
        %3175 = vmax.xlane.f32.xlu0 %v3174
        %v3176 = vpop.xlane.xlu0 %3175
        %v3177 = vsub.f32 %v3173, %v3176
        %v3178 = vmul.f32 %v3177, 1.442695
        %v3179 = vpow.pop %v3178
        %v3180 = vsel %vm1500, %v3179, 0.0
        %3181 = vadd.xlane.f32.xlu0 %v3180
        %v3182 = vpop.xlane.xlu0 %3181
        %v3183 = vrcp.pop %v3182
        %v3184 = vmul.f32 %v3179, %v3183
        %3185 = vrot.lane.b32.xlu0 %v2615, 64
        %v3186 = vpop.permute.xlu0 %3185
        %v3189 = vsel %vm1500, %v3184, 0
        %3191 = vmatprep.subr.mxu0 0.0
        %3192 = vmatpush1.msra.mxu0 0.0
        %3193 = vmatprep.subr.mxu0 0.0
        %3194 = vmatpush1.msra.mxu0 0.0
        %3195 = vmatprep.subr.mxu0 0.0
        %3196 = vmatpush1.msra.mxu0 0.0
        %3197 = vmatprep.subr.mxu0 0.0
        %3198 = vmatpush1.msra.mxu0 0.0
        %3199 = vmatprep.subr.mxu0 0.0
        %3200 = vmatpush1.msra.mxu0 0.0
        %3201 = vmatprep.subr.mxu0 0.0
        %3202 = vmatpush1.msra.mxu0 0.0
        %3203 = vmatprep.subr.mxu0 0.0
        %3204 = vmatpush1.msra.mxu0 0.0
        %3205 = vmatprep.subr.mxu0 0.0
        %3206 = vmatpush1.msra.mxu0 0.0
        %3207 = vmatprep.subr.mxu0 0.0
        %3208 = vmatpush1.msra.mxu0 0.0
        %3209 = vmatprep.subr.mxu0 0.0
        %3210 = vmatpush1.msra.mxu0 0.0
        %3211 = vmatprep.subr.mxu0 0.0
        %3212 = vmatpush1.msra.mxu0 0.0
        %3213 = vmatprep.subr.mxu0 0.0
        %3214 = vmatpush1.msra.mxu0 0.0
        %3215 = vmatprep.subr.mxu0 0.0
        %3216 = vmatpush1.msra.mxu0 0.0
        %3217 = vmatprep.subr.mxu0 0.0
        %3218 = vmatpush1.msra.mxu0 0.0
        %3219 = vmatprep.subr.mxu0 0.0
        %3220 = vmatpush1.msra.mxu0 0.0
        %3221 = vmatprep.subr.mxu0 0.0
        %3222 = vmatpush1.msra.mxu0 %v3186
        %3223 = vmatprep.subr.mxu0 0.0
        %3224 = vmatpush2.msra.mxu0 0.0
        %3225 = vmatprep.subr.mxu0 0.0
        %3226 = vmatpush2.msra.mxu0 0.0
        %3227 = vmatprep.subr.mxu0 0.0
        %3228 = vmatpush2.msra.mxu0 0.0
        %3229 = vmatprep.subr.mxu0 0.0
        %3230 = vmatpush2.msra.mxu0 0.0
        %3231 = vmatprep.subr.mxu0 0.0
        %3232 = vmatpush2.msra.mxu0 0.0
        %3233 = vmatprep.subr.mxu0 0.0
        %3234 = vmatpush2.msra.mxu0 0.0
        %3235 = vmatprep.subr.mxu0 0.0
        %3236 = vmatpush2.msra.mxu0 0.0
        %3237 = vmatprep.subr.mxu0 0.0
        %3238 = vmatpush2.msra.mxu0 0.0
        %3239 = vmatprep.subr.mxu0 0.0
        %3240 = vmatpush2.msra.mxu0 0.0
        %3241 = vmatprep.subr.mxu0 0.0
        %3242 = vmatpush2.msra.mxu0 0.0
        %3243 = vmatprep.subr.mxu0 0.0
        %3244 = vmatpush2.msra.mxu0 0.0
        %3245 = vmatprep.subr.mxu0 0.0
        %3246 = vmatpush2.msra.mxu0 0.0
        %3247 = vmatprep.subr.mxu0 0.0
        %3248 = vmatpush2.msra.mxu0 0.0
        %3249 = vmatprep.subr.mxu0 0.0
        %3250 = vmatpush2.msra.mxu0 0.0
        %3251 = vmatprep.subr.mxu0 0.0
        %3252 = vmatpush2.msra.mxu0 0.0
        %3253 = vmatprep.subr.mxu0 0.0
        %3254 = vmatpush2.msra.mxu0 0.0
        %3255 = vmatprep.mubr.f32.mxu0 0.0
        %3256 = vmatmul.mubr.f32.gmra.mxu0 %v3189
        %v3257 = vpop.f32.mrf.mxu0
        %v3258 = vadd.f32 0.0, %v3257
        %v3259 = vpop.f32.mrf.mxu0
        %3260 = vdwg.mxu0
        %v3262 = vsel %vm1420, %v3258, 0
        %3264 = vmatprep.subr.mxu0 0.0
        %3265 = vmatpush1.msra.mxu0 0.0
        %3266 = vmatprep.subr.mxu0 0.0
        %3267 = vmatpush1.msra.mxu0 0.0
        %3268 = vmatprep.subr.mxu0 0.0
        %3269 = vmatpush1.msra.mxu0 0.0
        %3270 = vmatprep.subr.mxu0 0.0
        %3271 = vmatpush1.msra.mxu0 0.0
        %3272 = vmatprep.subr.mxu0 0.0
        %3273 = vmatpush1.msra.mxu0 0.0
        %3274 = vmatprep.subr.mxu0 0.0
        %3275 = vmatpush1.msra.mxu0 0.0
        %3276 = vmatprep.subr.mxu0 0.0
        %3277 = vmatpush1.msra.mxu0 0.0
        %3278 = vmatprep.subr.mxu0 0.0
        %3279 = vmatpush1.msra.mxu0 0.0
        %3280 = vmatprep.subr.mxu0 0.0
        %3281 = vmatpush1.msra.mxu0 0.0
        %3282 = vmatprep.subr.mxu0 0.0
        %3283 = vmatpush1.msra.mxu0 0.0
        %3284 = vmatprep.subr.mxu0 0.0
        %3285 = vmatpush1.msra.mxu0 0.0
        %3286 = vmatprep.subr.mxu0 0.0
        %3287 = vmatpush1.msra.mxu0 0.0
        %3288 = vmatprep.subr.mxu0 0.0
        %3289 = vmatpush1.msra.mxu0 %v2471
        %3290 = vmatprep.subr.mxu0 0.0
        %3291 = vmatpush1.msra.mxu0 %v2470
        %3292 = vmatprep.subr.mxu0 0.0
        %3293 = vmatpush1.msra.mxu0 %v2469
        %3294 = vmatprep.subr.mxu0 0.0
        %3295 = vmatpush1.msra.mxu0 %v2468
        %3296 = vmatprep.subr.mxu0 0.0
        %3297 = vmatpush2.msra.mxu0 0.0
        %3298 = vmatprep.subr.mxu0 0.0
        %3299 = vmatpush2.msra.mxu0 0.0
        %3300 = vmatprep.subr.mxu0 0.0
        %3301 = vmatpush2.msra.mxu0 0.0
        %3302 = vmatprep.subr.mxu0 0.0
        %3303 = vmatpush2.msra.mxu0 0.0
        %3304 = vmatprep.subr.mxu0 0.0
        %3305 = vmatpush2.msra.mxu0 0.0
        %3306 = vmatprep.subr.mxu0 0.0
        %3307 = vmatpush2.msra.mxu0 0.0
        %3308 = vmatprep.subr.mxu0 0.0
        %3309 = vmatpush2.msra.mxu0 0.0
        %3310 = vmatprep.subr.mxu0 0.0
        %3311 = vmatpush2.msra.mxu0 0.0
        %3312 = vmatprep.subr.mxu0 0.0
        %3313 = vmatpush2.msra.mxu0 0.0
        %3314 = vmatprep.subr.mxu0 0.0
        %3315 = vmatpush2.msra.mxu0 0.0
        %3316 = vmatprep.subr.mxu0 0.0
        %3317 = vmatpush2.msra.mxu0 0.0
        %3318 = vmatprep.subr.mxu0 0.0
        %3319 = vmatpush2.msra.mxu0 0.0
        %3320 = vmatprep.subr.mxu0 0.0
        %3321 = vmatpush2.msra.mxu0 0.0
        %3322 = vmatprep.subr.mxu0 0.0
        %3323 = vmatpush2.msra.mxu0 0.0
        %3324 = vmatprep.subr.mxu0 0.0
        %3325 = vmatpush2.msra.mxu0 0.0
        %3326 = vmatprep.subr.mxu0 0.0
        %3327 = vmatpush2.msra.mxu0 0.0
        %3328 = vmatprep.mubr.f32.mxu0 0.0
        %3329 = vmatmul.mubr.f32.gmra.mxu0 %v3262
        %v3330 = vpop.f32.mrf.mxu0
        %v3331 = vadd.f32 0.0, %v3330
        %v3332 = vpop.f32.mrf.mxu0
        %3333 = vdwg.mxu0
        %v3334 = vadd.f32 %v3091, %v3331
        %3335 = vrot.lane.b32.xlu0 %v2543, 32
        %v3336 = vpop.permute.xlu0 %3335
        %3337 = vrot.lane.b32.xlu0 %v2613, 32
        %v3338 = vpop.permute.xlu0 %3337
        %v3339 = vsel %vm1420, %v3336, 0
        %v3341 = vsel %vm1420, %v3338, 0
        %3343 = vmatprep.subr.mxu0 0.0
        %3344 = vmatpush1.xpose.msra.mxu0 0.0
        %3345 = vmatprep.subr.mxu0 0.0
        %3346 = vmatpush1.xpose.msra.mxu0 0.0
        %3347 = vmatprep.subr.mxu0 0.0
        %3348 = vmatpush1.xpose.msra.mxu0 0.0
        %3349 = vmatprep.subr.mxu0 0.0
        %3350 = vmatpush1.xpose.msra.mxu0 0.0
        %3351 = vmatprep.subr.mxu0 0.0
        %3352 = vmatpush1.xpose.msra.mxu0 0.0
        %3353 = vmatprep.subr.mxu0 0.0
        %3354 = vmatpush1.xpose.msra.mxu0 0.0
        %3355 = vmatprep.subr.mxu0 0.0
        %3356 = vmatpush1.xpose.msra.mxu0 0.0
        %3357 = vmatprep.subr.mxu0 0.0
        %3358 = vmatpush1.xpose.msra.mxu0 0.0
        %3359 = vmatprep.subr.mxu0 0.0
        %3360 = vmatpush1.xpose.msra.mxu0 0.0
        %3361 = vmatprep.subr.mxu0 0.0
        %3362 = vmatpush1.xpose.msra.mxu0 0.0
        %3363 = vmatprep.subr.mxu0 0.0
        %3364 = vmatpush1.xpose.msra.mxu0 0.0
        %3365 = vmatprep.subr.mxu0 0.0
        %3366 = vmatpush1.xpose.msra.mxu0 0.0
        %3367 = vmatprep.subr.mxu0 0.0
        %3368 = vmatpush1.xpose.msra.mxu0 0.0
        %3369 = vmatprep.subr.mxu0 0.0
        %3370 = vmatpush1.xpose.msra.mxu0 0.0
        %3371 = vmatprep.subr.mxu0 0.0
        %3372 = vmatpush1.xpose.msra.mxu0 0.0
        %3373 = vmatprep.subr.mxu0 0.0
        %3374 = vmatpush1.xpose.msra.mxu0 %v3341
        %3375 = vmatprep.subr.mxu0 0.0
        %3376 = vmatpush2.xpose.msra.mxu0 0.0
        %3377 = vmatprep.subr.mxu0 0.0
        %3378 = vmatpush2.xpose.msra.mxu0 0.0
        %3379 = vmatprep.subr.mxu0 0.0
        %3380 = vmatpush2.xpose.msra.mxu0 0.0
        %3381 = vmatprep.subr.mxu0 0.0
        %3382 = vmatpush2.xpose.msra.mxu0 0.0
        %3383 = vmatprep.subr.mxu0 0.0
        %3384 = vmatpush2.xpose.msra.mxu0 0.0
        %3385 = vmatprep.subr.mxu0 0.0
        %3386 = vmatpush2.xpose.msra.mxu0 0.0
        %3387 = vmatprep.subr.mxu0 0.0
        %3388 = vmatpush2.xpose.msra.mxu0 0.0
        %3389 = vmatprep.subr.mxu0 0.0
        %3390 = vmatpush2.xpose.msra.mxu0 0.0
        %3391 = vmatprep.subr.mxu0 0.0
        %3392 = vmatpush2.xpose.msra.mxu0 0.0
        %3393 = vmatprep.subr.mxu0 0.0
        %3394 = vmatpush2.xpose.msra.mxu0 0.0
        %3395 = vmatprep.subr.mxu0 0.0
        %3396 = vmatpush2.xpose.msra.mxu0 0.0
        %3397 = vmatprep.subr.mxu0 0.0
        %3398 = vmatpush2.xpose.msra.mxu0 0.0
        %3399 = vmatprep.subr.mxu0 0.0
        %3400 = vmatpush2.xpose.msra.mxu0 0.0
        %3401 = vmatprep.subr.mxu0 0.0
        %3402 = vmatpush2.xpose.msra.mxu0 0.0
        %3403 = vmatprep.subr.mxu0 0.0
        %3404 = vmatpush2.xpose.msra.mxu0 0.0
        %3405 = vmatprep.subr.mxu0 0.0
        %3406 = vmatpush2.xpose.msra.mxu0 0.0
        %3407 = vmatprep.mubr.f32.mxu0 0.0
        %3408 = vmatmul.mubr.f32.gmra.mxu0 %v3339
        %v3409 = vpop.f32.mrf.mxu0
        %v3410 = vadd.f32 0.0, %v3409
        %v3411 = vpop.f32.mrf.mxu0
        %3412 = vdwg.mxu0
        %v3413 = vmul.f32 %v3410, 0.17677669
        %v3414 = vsel %vm2694, %v3413, -1000000.0
        %v3415 = vsel %vm1500, %v3414, -inf
        %3416 = vmax.xlane.f32.xlu0 %v3415
        %v3417 = vpop.xlane.xlu0 %3416
        %v3418 = vsub.f32 %v3414, %v3417
        %v3419 = vmul.f32 %v3418, 1.442695
        %v3420 = vpow.pop %v3419
        %v3421 = vsel %vm1500, %v3420, 0.0
        %3422 = vadd.xlane.f32.xlu0 %v3421
        %v3423 = vpop.xlane.xlu0 %3422
        %v3424 = vrcp.pop %v3423
        %v3425 = vmul.f32 %v3420, %v3424
        %3426 = vrot.lane.b32.xlu0 %v2615, 32
        %v3427 = vpop.permute.xlu0 %3426
        %v3430 = vsel %vm1500, %v3425, 0
        %3432 = vmatprep.subr.mxu0 0.0
        %3433 = vmatpush1.msra.mxu0 0.0
        %3434 = vmatprep.subr.mxu0 0.0
        %3435 = vmatpush1.msra.mxu0 0.0
        %3436 = vmatprep.subr.mxu0 0.0
        %3437 = vmatpush1.msra.mxu0 0.0
        %3438 = vmatprep.subr.mxu0 0.0
        %3439 = vmatpush1.msra.mxu0 0.0
        %3440 = vmatprep.subr.mxu0 0.0
        %3441 = vmatpush1.msra.mxu0 0.0
        %3442 = vmatprep.subr.mxu0 0.0
        %3443 = vmatpush1.msra.mxu0 0.0
        %3444 = vmatprep.subr.mxu0 0.0
        %3445 = vmatpush1.msra.mxu0 0.0
        %3446 = vmatprep.subr.mxu0 0.0
        %3447 = vmatpush1.msra.mxu0 0.0
        %3448 = vmatprep.subr.mxu0 0.0
        %3449 = vmatpush1.msra.mxu0 0.0
        %3450 = vmatprep.subr.mxu0 0.0
        %3451 = vmatpush1.msra.mxu0 0.0
        %3452 = vmatprep.subr.mxu0 0.0
        %3453 = vmatpush1.msra.mxu0 0.0
        %3454 = vmatprep.subr.mxu0 0.0
        %3455 = vmatpush1.msra.mxu0 0.0
        %3456 = vmatprep.subr.mxu0 0.0
        %3457 = vmatpush1.msra.mxu0 0.0
        %3458 = vmatprep.subr.mxu0 0.0
        %3459 = vmatpush1.msra.mxu0 0.0
        %3460 = vmatprep.subr.mxu0 0.0
        %3461 = vmatpush1.msra.mxu0 0.0
        %3462 = vmatprep.subr.mxu0 0.0
        %3463 = vmatpush1.msra.mxu0 %v3427
        %3464 = vmatprep.subr.mxu0 0.0
        %3465 = vmatpush2.msra.mxu0 0.0
        %3466 = vmatprep.subr.mxu0 0.0
        %3467 = vmatpush2.msra.mxu0 0.0
        %3468 = vmatprep.subr.mxu0 0.0
        %3469 = vmatpush2.msra.mxu0 0.0
        %3470 = vmatprep.subr.mxu0 0.0
        %3471 = vmatpush2.msra.mxu0 0.0
        %3472 = vmatprep.subr.mxu0 0.0
        %3473 = vmatpush2.msra.mxu0 0.0
        %3474 = vmatprep.subr.mxu0 0.0
        %3475 = vmatpush2.msra.mxu0 0.0
        %3476 = vmatprep.subr.mxu0 0.0
        %3477 = vmatpush2.msra.mxu0 0.0
        %3478 = vmatprep.subr.mxu0 0.0
        %3479 = vmatpush2.msra.mxu0 0.0
        %3480 = vmatprep.subr.mxu0 0.0
        %3481 = vmatpush2.msra.mxu0 0.0
        %3482 = vmatprep.subr.mxu0 0.0
        %3483 = vmatpush2.msra.mxu0 0.0
        %3484 = vmatprep.subr.mxu0 0.0
        %3485 = vmatpush2.msra.mxu0 0.0
        %3486 = vmatprep.subr.mxu0 0.0
        %3487 = vmatpush2.msra.mxu0 0.0
        %3488 = vmatprep.subr.mxu0 0.0
        %3489 = vmatpush2.msra.mxu0 0.0
        %3490 = vmatprep.subr.mxu0 0.0
        %3491 = vmatpush2.msra.mxu0 0.0
        %3492 = vmatprep.subr.mxu0 0.0
        %3493 = vmatpush2.msra.mxu0 0.0
        %3494 = vmatprep.subr.mxu0 0.0
        %3495 = vmatpush2.msra.mxu0 0.0
        %3496 = vmatprep.mubr.f32.mxu0 0.0
        %3497 = vmatmul.mubr.f32.gmra.mxu0 %v3430
        %v3498 = vpop.f32.mrf.mxu0
        %v3499 = vadd.f32 0.0, %v3498
        %v3500 = vpop.f32.mrf.mxu0
        %3501 = vdwg.mxu0
        %v3503 = vsel %vm1420, %v3499, 0
        %3505 = vmatprep.subr.mxu0 0.0
        %3506 = vmatpush1.msra.mxu0 0.0
        %3507 = vmatprep.subr.mxu0 0.0
        %3508 = vmatpush1.msra.mxu0 0.0
        %3509 = vmatprep.subr.mxu0 0.0
        %3510 = vmatpush1.msra.mxu0 0.0
        %3511 = vmatprep.subr.mxu0 0.0
        %3512 = vmatpush1.msra.mxu0 0.0
        %3513 = vmatprep.subr.mxu0 0.0
        %3514 = vmatpush1.msra.mxu0 0.0
        %3515 = vmatprep.subr.mxu0 0.0
        %3516 = vmatpush1.msra.mxu0 0.0
        %3517 = vmatprep.subr.mxu0 0.0
        %3518 = vmatpush1.msra.mxu0 0.0
        %3519 = vmatprep.subr.mxu0 0.0
        %3520 = vmatpush1.msra.mxu0 0.0
        %3521 = vmatprep.subr.mxu0 0.0
        %3522 = vmatpush1.msra.mxu0 0.0
        %3523 = vmatprep.subr.mxu0 0.0
        %3524 = vmatpush1.msra.mxu0 0.0
        %3525 = vmatprep.subr.mxu0 0.0
        %3526 = vmatpush1.msra.mxu0 0.0
        %3527 = vmatprep.subr.mxu0 0.0
        %3528 = vmatpush1.msra.mxu0 0.0
        %3529 = vmatprep.subr.mxu0 0.0
        %3530 = vmatpush1.msra.mxu0 %v2475
        %3531 = vmatprep.subr.mxu0 0.0
        %3532 = vmatpush1.msra.mxu0 %v2474
        %3533 = vmatprep.subr.mxu0 0.0
        %3534 = vmatpush1.msra.mxu0 %v2473
        %3535 = vmatprep.subr.mxu0 0.0
        %3536 = vmatpush1.msra.mxu0 %v2472
        %3537 = vmatprep.subr.mxu0 0.0
        %3538 = vmatpush2.msra.mxu0 0.0
        %3539 = vmatprep.subr.mxu0 0.0
        %3540 = vmatpush2.msra.mxu0 0.0
        %3541 = vmatprep.subr.mxu0 0.0
        %3542 = vmatpush2.msra.mxu0 0.0
        %3543 = vmatprep.subr.mxu0 0.0
        %3544 = vmatpush2.msra.mxu0 0.0
        %3545 = vmatprep.subr.mxu0 0.0
        %3546 = vmatpush2.msra.mxu0 0.0
        %3547 = vmatprep.subr.mxu0 0.0
        %3548 = vmatpush2.msra.mxu0 0.0
        %3549 = vmatprep.subr.mxu0 0.0
        %3550 = vmatpush2.msra.mxu0 0.0
        %3551 = vmatprep.subr.mxu0 0.0
        %3552 = vmatpush2.msra.mxu0 0.0
        %3553 = vmatprep.subr.mxu0 0.0
        %3554 = vmatpush2.msra.mxu0 0.0
        %3555 = vmatprep.subr.mxu0 0.0
        %3556 = vmatpush2.msra.mxu0 0.0
        %3557 = vmatprep.subr.mxu0 0.0
        %3558 = vmatpush2.msra.mxu0 0.0
        %3559 = vmatprep.subr.mxu0 0.0
        %3560 = vmatpush2.msra.mxu0 0.0
        %3561 = vmatprep.subr.mxu0 0.0
        %3562 = vmatpush2.msra.mxu0 0.0
        %3563 = vmatprep.subr.mxu0 0.0
        %3564 = vmatpush2.msra.mxu0 0.0
        %3565 = vmatprep.subr.mxu0 0.0
        %3566 = vmatpush2.msra.mxu0 0.0
        %3567 = vmatprep.subr.mxu0 0.0
        %3568 = vmatpush2.msra.mxu0 0.0
        %3569 = vmatprep.mubr.f32.mxu0 0.0
        %3570 = vmatmul.mubr.f32.gmra.mxu0 %v3503
        %v3571 = vpop.f32.mrf.mxu0
        %v3572 = vadd.f32 0.0, %v3571
        %v3573 = vpop.f32.mrf.mxu0
        %3574 = vdwg.mxu0
        %v3575 = vadd.f32 %v3334, %v3572
        %v3576 = vadd.f32 %v2409, %v3575
        %v3577 = vld [vmem:[%s1189] sm:$0x1]
        %v3578 = vld [vmem:[%s1192] sm:$0x1]
        %3579 = vadd.xlane.f32.xlu0 %v3576
        %v3580 = vpop.xlane.xlu0 %3579
        %v3581 = vmul.f32 %v3580, %v2386
        %v3582 = vsub.f32 %v3576, %v3581
        %v3583 = vmul.f32 %v3582, %v3582
        %3584 = vadd.xlane.f32.xlu0 %v3583
        %v3585 = vpop.xlane.xlu0 %3584
        %v3586 = vmul.f32 %v3585, %v2386
        %v3587 = vadd.f32 %v3586, 1e-05
        %v3588 = vrsqrt.pop %v3587
        %v3589 = vmul.f32 %v3582, %v3588
        %v3591 = vlaneseq
        %v3592 = vshrl.u32 %v3591, 7
        %v3593 = vsub.s32 0, %v3592
        %v3594 = vrot.slane %v3577, %v3593
        %v3596 = vmul.f32 %v3589, %v3594
        %v3598 = vlaneseq
        %v3599 = vshrl.u32 %v3598, 7
        %v3600 = vsub.s32 0, %v3599
        %v3601 = vrot.slane %v3578, %v3600
        %v3603 = vadd.f32 %v3596, %v3601
        %v3604 = vld [vmem:[%s1033] sm:$0xff]
        %v3605 = vld [vmem:[%s1033 + $0x8] sm:$0xff]
        %v3606 = vld [vmem:[%s1033 + $0x10] sm:$0xff]
        %v3607 = vld [vmem:[%s1033 + $0x18] sm:$0xff]
        %v3608 = vld [vmem:[%s1033 + $0x20] sm:$0xff]
        %v3609 = vld [vmem:[%s1033 + $0x28] sm:$0xff]
        %v3610 = vld [vmem:[%s1033 + $0x30] sm:$0xff]
        %v3611 = vld [vmem:[%s1033 + $0x38] sm:$0xff]
        %v3612 = vld [vmem:[%s1033 + $0x40] sm:$0xff]
        %v3613 = vld [vmem:[%s1033 + $0x48] sm:$0xff]
        %v3614 = vld [vmem:[%s1033 + $0x50] sm:$0xff]
        %v3615 = vld [vmem:[%s1033 + $0x58] sm:$0xff]
        %v3616 = vld [vmem:[%s1033 + $0x60] sm:$0xff]
        %v3617 = vld [vmem:[%s1033 + $0x68] sm:$0xff]
        %v3618 = vld [vmem:[%s1033 + $0x70] sm:$0xff]
        %v3619 = vld [vmem:[%s1033 + $0x78] sm:$0xff]
        %v3620 = vld [vmem:[%s1033 + $0x80] sm:$0xff]
        %v3621 = vld [vmem:[%s1033 + $0x88] sm:$0xff]
        %v3622 = vld [vmem:[%s1033 + $0x90] sm:$0xff]
        %v3623 = vld [vmem:[%s1033 + $0x98] sm:$0xff]
        %v3624 = vld [vmem:[%s1033 + $0xa0] sm:$0xff]
        %v3625 = vld [vmem:[%s1033 + $0xa8] sm:$0xff]
        %v3626 = vld [vmem:[%s1033 + $0xb0] sm:$0xff]
        %v3627 = vld [vmem:[%s1033 + $0xb8] sm:$0xff]
        %v3628 = vld [vmem:[%s1033 + $0xc0] sm:$0xff]
        %v3629 = vld [vmem:[%s1033 + $0xc8] sm:$0xff]
        %v3630 = vld [vmem:[%s1033 + $0xd0] sm:$0xff]
        %v3631 = vld [vmem:[%s1033 + $0xd8] sm:$0xff]
        %v3632 = vld [vmem:[%s1033 + $0xe0] sm:$0xff]
        %v3633 = vld [vmem:[%s1033 + $0xe8] sm:$0xff]
        %v3634 = vld [vmem:[%s1033 + $0xf0] sm:$0xff]
        %v3635 = vld [vmem:[%s1033 + $0xf8] sm:$0xff]
        %v3636 = vld [vmem:[%s1196] sm:$0x3]
        %v3638 = vlaneseq
        %v3639 = vshrl.u32 %v3638, 7
        %v3640 = vsub.s32 0, %v3639
        %v3641 = vrot.slane %v3636, %v3640
        %v3642 = vlaneseq
        %v3643 = vshrl.u32 %v3642, 7
        %v3644 = vsub.s32 1, %v3643
        %v3645 = vrot.slane %v3636, %v3644
        %3648 = vmatprep.subr.mxu0 %v3635
        %3649 = vmatpush1.msra.mxu0 %v3634
        %3650 = vmatprep.subr.mxu0 %v3633
        %3651 = vmatpush1.msra.mxu0 %v3632
        %3652 = vmatprep.subr.mxu0 %v3631
        %3653 = vmatpush1.msra.mxu0 %v3630
        %3654 = vmatprep.subr.mxu0 %v3629
        %3655 = vmatpush1.msra.mxu0 %v3628
        %3656 = vmatprep.subr.mxu0 %v3627
        %3657 = vmatpush1.msra.mxu0 %v3626
        %3658 = vmatprep.subr.mxu0 %v3625
        %3659 = vmatpush1.msra.mxu0 %v3624
        %3660 = vmatprep.subr.mxu0 %v3623
        %3661 = vmatpush1.msra.mxu0 %v3622
        %3662 = vmatprep.subr.mxu0 %v3621
        %3663 = vmatpush1.msra.mxu0 %v3620
        %3664 = vmatprep.subr.mxu0 %v3619
        %3665 = vmatpush1.msra.mxu0 %v3618
        %3666 = vmatprep.subr.mxu0 %v3617
        %3667 = vmatpush1.msra.mxu0 %v3616
        %3668 = vmatprep.subr.mxu0 %v3615
        %3669 = vmatpush1.msra.mxu0 %v3614
        %3670 = vmatprep.subr.mxu0 %v3613
        %3671 = vmatpush1.msra.mxu0 %v3612
        %3672 = vmatprep.subr.mxu0 %v3611
        %3673 = vmatpush1.msra.mxu0 %v3610
        %3674 = vmatprep.subr.mxu0 %v3609
        %3675 = vmatpush1.msra.mxu0 %v3608
        %3676 = vmatprep.subr.mxu0 %v3607
        %3677 = vmatpush1.msra.mxu0 %v3606
        %3678 = vmatprep.subr.mxu0 %v3605
        %3679 = vmatpush1.msra.mxu0 %v3604
        %3680 = vmatprep.subr.mxu0 0.0
        %3681 = vmatpush2.msra.mxu0 0.0
        %3682 = vmatprep.subr.mxu0 0.0
        %3683 = vmatpush2.msra.mxu0 0.0
        %3684 = vmatprep.subr.mxu0 0.0
        %3685 = vmatpush2.msra.mxu0 0.0
        %3686 = vmatprep.subr.mxu0 0.0
        %3687 = vmatpush2.msra.mxu0 0.0
        %3688 = vmatprep.subr.mxu0 0.0
        %3689 = vmatpush2.msra.mxu0 0.0
        %3690 = vmatprep.subr.mxu0 0.0
        %3691 = vmatpush2.msra.mxu0 0.0
        %3692 = vmatprep.subr.mxu0 0.0
        %3693 = vmatpush2.msra.mxu0 0.0
        %3694 = vmatprep.subr.mxu0 0.0
        %3695 = vmatpush2.msra.mxu0 0.0
        %3696 = vmatprep.subr.mxu0 0.0
        %3697 = vmatpush2.msra.mxu0 0.0
        %3698 = vmatprep.subr.mxu0 0.0
        %3699 = vmatpush2.msra.mxu0 0.0
        %3700 = vmatprep.subr.mxu0 0.0
        %3701 = vmatpush2.msra.mxu0 0.0
        %3702 = vmatprep.subr.mxu0 0.0
        %3703 = vmatpush2.msra.mxu0 0.0
        %3704 = vmatprep.subr.mxu0 0.0
        %3705 = vmatpush2.msra.mxu0 0.0
        %3706 = vmatprep.subr.mxu0 0.0
        %3707 = vmatpush2.msra.mxu0 0.0
        %3708 = vmatprep.subr.mxu0 0.0
        %3709 = vmatpush2.msra.mxu0 0.0
        %3710 = vmatprep.subr.mxu0 0.0
        %3711 = vmatpush2.msra.mxu0 0.0
        %3712 = vmatprep.mubr.f32.mxu0 0.0
        %3713 = vmatmul.mubr.f32.gmra.mxu0 %v3603
        %v3714 = vpop.f32.mrf.mxu0
        %v3715 = vadd.f32 %v3641, %v3714
        %v3716 = vpop.f32.mrf.mxu0
        %v3717 = vadd.f32 %v3645, %v3716
        %3718 = vdwg.mxu0
        %v3719 = vmax.f32 %v3715, 0.0
        %v3720 = vmax.f32 %v3717, 0.0
        %v3721 = vld [vmem:[%s1042] sm:$0xff]
        %v3722 = vld [vmem:[%s1042 + $0x8] sm:$0xff]
        %v3723 = vld [vmem:[%s1042 + $0x10] sm:$0xff]
        %v3724 = vld [vmem:[%s1042 + $0x18] sm:$0xff]
        %v3725 = vld [vmem:[%s1042 + $0x20] sm:$0xff]
        %v3726 = vld [vmem:[%s1042 + $0x28] sm:$0xff]
        %v3727 = vld [vmem:[%s1042 + $0x30] sm:$0xff]
        %v3728 = vld [vmem:[%s1042 + $0x38] sm:$0xff]
        %v3729 = vld [vmem:[%s1042 + $0x40] sm:$0xff]
        %v3730 = vld [vmem:[%s1042 + $0x48] sm:$0xff]
        %v3731 = vld [vmem:[%s1042 + $0x50] sm:$0xff]
        %v3732 = vld [vmem:[%s1042 + $0x58] sm:$0xff]
        %v3733 = vld [vmem:[%s1042 + $0x60] sm:$0xff]
        %v3734 = vld [vmem:[%s1042 + $0x68] sm:$0xff]
        %v3735 = vld [vmem:[%s1042 + $0x70] sm:$0xff]
        %v3736 = vld [vmem:[%s1042 + $0x78] sm:$0xff]
        %v3737 = vld [vmem:[%s1042 + $0x80] sm:$0xff]
        %v3738 = vld [vmem:[%s1042 + $0x88] sm:$0xff]
        %v3739 = vld [vmem:[%s1042 + $0x90] sm:$0xff]
        %v3740 = vld [vmem:[%s1042 + $0x98] sm:$0xff]
        %v3741 = vld [vmem:[%s1042 + $0xa0] sm:$0xff]
        %v3742 = vld [vmem:[%s1042 + $0xa8] sm:$0xff]
        %v3743 = vld [vmem:[%s1042 + $0xb0] sm:$0xff]
        %v3744 = vld [vmem:[%s1042 + $0xb8] sm:$0xff]
        %v3745 = vld [vmem:[%s1042 + $0xc0] sm:$0xff]
        %v3746 = vld [vmem:[%s1042 + $0xc8] sm:$0xff]
        %v3747 = vld [vmem:[%s1042 + $0xd0] sm:$0xff]
        %v3748 = vld [vmem:[%s1042 + $0xd8] sm:$0xff]
        %v3749 = vld [vmem:[%s1042 + $0xe0] sm:$0xff]
        %v3750 = vld [vmem:[%s1042 + $0xe8] sm:$0xff]
        %v3751 = vld [vmem:[%s1042 + $0xf0] sm:$0xff]
        %v3752 = vld [vmem:[%s1042 + $0xf8] sm:$0xff]
        %v3753 = vld [vmem:[%s1199] sm:$0x1]
        %v3755 = vlaneseq
        %v3756 = vshrl.u32 %v3755, 7
        %v3757 = vsub.s32 0, %v3756
        %v3758 = vrot.slane %v3753, %v3757
        %3760 = vmatprep.subr.mxu0 0.0
        %3761 = vmatpush1.msra.mxu0 %v3736
        %3762 = vmatprep.subr.mxu0 0.0
        %3763 = vmatpush1.msra.mxu0 %v3735
        %3764 = vmatprep.subr.mxu0 0.0
        %3765 = vmatpush1.msra.mxu0 %v3734
        %3766 = vmatprep.subr.mxu0 0.0
        %3767 = vmatpush1.msra.mxu0 %v3733
        %3768 = vmatprep.subr.mxu0 0.0
        %3769 = vmatpush1.msra.mxu0 %v3732
        %3770 = vmatprep.subr.mxu0 0.0
        %3771 = vmatpush1.msra.mxu0 %v3731
        %3772 = vmatprep.subr.mxu0 0.0
        %3773 = vmatpush1.msra.mxu0 %v3730
        %3774 = vmatprep.subr.mxu0 0.0
        %3775 = vmatpush1.msra.mxu0 %v3729
        %3776 = vmatprep.subr.mxu0 0.0
        %3777 = vmatpush1.msra.mxu0 %v3728
        %3778 = vmatprep.subr.mxu0 0.0
        %3779 = vmatpush1.msra.mxu0 %v3727
        %3780 = vmatprep.subr.mxu0 0.0
        %3781 = vmatpush1.msra.mxu0 %v3726
        %3782 = vmatprep.subr.mxu0 0.0
        %3783 = vmatpush1.msra.mxu0 %v3725
        %3784 = vmatprep.subr.mxu0 0.0
        %3785 = vmatpush1.msra.mxu0 %v3724
        %3786 = vmatprep.subr.mxu0 0.0
        %3787 = vmatpush1.msra.mxu0 %v3723
        %3788 = vmatprep.subr.mxu0 0.0
        %3789 = vmatpush1.msra.mxu0 %v3722
        %3790 = vmatprep.subr.mxu0 0.0
        %3791 = vmatpush1.msra.mxu0 %v3721
        %3792 = vmatprep.subr.mxu0 0.0
        %3793 = vmatpush2.msra.mxu0 %v3752
        %3794 = vmatprep.subr.mxu0 0.0
        %3795 = vmatpush2.msra.mxu0 %v3751
        %3796 = vmatprep.subr.mxu0 0.0
        %3797 = vmatpush2.msra.mxu0 %v3750
        %3798 = vmatprep.subr.mxu0 0.0
        %3799 = vmatpush2.msra.mxu0 %v3749
        %3800 = vmatprep.subr.mxu0 0.0
        %3801 = vmatpush2.msra.mxu0 %v3748
        %3802 = vmatprep.subr.mxu0 0.0
        %3803 = vmatpush2.msra.mxu0 %v3747
        %3804 = vmatprep.subr.mxu0 0.0
        %3805 = vmatpush2.msra.mxu0 %v3746
        %3806 = vmatprep.subr.mxu0 0.0
        %3807 = vmatpush2.msra.mxu0 %v3745
        %3808 = vmatprep.subr.mxu0 0.0
        %3809 = vmatpush2.msra.mxu0 %v3744
        %3810 = vmatprep.subr.mxu0 0.0
        %3811 = vmatpush2.msra.mxu0 %v3743
        %3812 = vmatprep.subr.mxu0 0.0
        %3813 = vmatpush2.msra.mxu0 %v3742
        %3814 = vmatprep.subr.mxu0 0.0
        %3815 = vmatpush2.msra.mxu0 %v3741
        %3816 = vmatprep.subr.mxu0 0.0
        %3817 = vmatpush2.msra.mxu0 %v3740
        %3818 = vmatprep.subr.mxu0 0.0
        %3819 = vmatpush2.msra.mxu0 %v3739
        %3820 = vmatprep.subr.mxu0 0.0
        %3821 = vmatpush2.msra.mxu0 %v3738
        %3822 = vmatprep.subr.mxu0 0.0
        %3823 = vmatpush2.msra.mxu0 %v3737
        %3824 = vmatprep.mubr.f32.mxu0 %v3720
        %3825 = vmatmul.mubr.f32.gmra.mxu0 %v3719
        %v3826 = vpop.f32.mrf.mxu0
        %v3827 = vadd.f32 %v3758, %v3826
        %v3828 = vpop.f32.mrf.mxu0
        %3829 = vdwg.mxu0
        %v3830 = vadd.f32 %v3603, %v3827
        %v3831 = vld [vmem:[%s1202] sm:$0x1]
        %v3832 = vld [vmem:[%s1205] sm:$0x1]
        %3833 = vadd.xlane.f32.xlu0 %v3830
        %v3834 = vpop.xlane.xlu0 %3833
        %v3835 = vmul.f32 %v3834, %v2386
        %v3836 = vsub.f32 %v3830, %v3835
        %v3837 = vmul.f32 %v3836, %v3836
        %3838 = vadd.xlane.f32.xlu0 %v3837
        %v3839 = vpop.xlane.xlu0 %3838
        %v3840 = vmul.f32 %v3839, %v2386
        %v3841 = vadd.f32 %v3840, 1e-05
        %v3842 = vrsqrt.pop %v3841
        %v3843 = vmul.f32 %v3836, %v3842
        %v3845 = vlaneseq
        %v3846 = vshrl.u32 %v3845, 7
        %v3847 = vsub.s32 0, %v3846
        %v3848 = vrot.slane %v3831, %v3847
        %v3850 = vmul.f32 %v3843, %v3848
        %v3852 = vlaneseq
        %v3853 = vshrl.u32 %v3852, 7
        %v3854 = vsub.s32 0, %v3853
        %v3855 = vrot.slane %v3832, %v3854
        %v3857 = vadd.f32 %v3850, %v3855
        %3858 = vst [vmem:[#allocation2] sm:$0xff] %v3857
        %3859 = vst [vmem:[%s1173] sm:$0xff] %v3857
        %s3860 = sand.u32 %s595, 1
        %s3861 = scalar_lea.sflag [#allocation5], %s3860
        %s3862 = sand.u32 %s595, 1
        %s3863 = smul.addr %s3862, 8
        %s3864 = scalar_lea.vmem [#allocation23], %s3863
        %s3865 = sand.u32 %s623, 1
        %s3866 = scalar_lea.sflag [#allocation25], %s3865
        %s3867 = sand.u32 %s623, 1
        %s3868 = smul.addr %s3867, 8
        %s3869 = scalar_lea.vmem [#allocation24], %s3868
        // Predicated region
        $region153: #{tpu_custom_call.1} parent=99 // pred_check
          %p3870 = pneg %p605
        $region154: #{tpu_custom_call.1} parent=99 // pred_check_branch
          %3872 = sbr.rel (%p3870) target = $region156
        $region155: #{tpu_custom_call.1} parent=99 // pred_region
          %s3874 = ssub.s32 128, 128
          %3875 = vsyncadd %s3861, %s3874
          %s3876 = smul.addr %s64, 128
          %s3877 = scalar_lea.hbm %s20, %s3876
          %s3879 = sshll.u32 %s3864, 4
          %s3880 = int_to_ptr.vmem [resolvable:$true] %s3879
          %3882 = dma.vmem_to_hbm [thread:$0]  %s3880, 128, %s3877, %s3861
        $region156: #{tpu_custom_call.1} parent=99 // pred_fallthru
          _
        // Predicated region
        $region157: #{tpu_custom_call.1} parent=99 // pred_check
          %p3883 = pneg %p633
        $region158: #{tpu_custom_call.1} parent=99 // pred_check_branch
          %3885 = sbr.rel (%p3883) target = $region160
        $region159: #{tpu_custom_call.1} parent=99 // pred_region
          %s3887 = ssub.s32 128, 128
          %3888 = vsyncadd %s3866, %s3887
          %s3889 = smul.addr %s64, 2
          %s3890 = sadd.s32 %s65, %s3889
          %s3891 = smul.addr %s3890, 128
          %s3892 = scalar_lea.hbm %s21, %s3891
          %s3894 = sshll.u32 %s3869, 4
          %s3895 = int_to_ptr.vmem [resolvable:$true] %s3894
          %3897 = dma.vmem_to_hbm [thread:$0]  %s3895, 128, %s3892, %s3866
        $region160: #{tpu_custom_call.1} parent=99 // pred_fallthru
          _
      $region100: #{tpu_custom_call.1} parent=5 // pred_fallthru
        _
      %p3898 = scmp.le.s32.totalorder 2, %s55
      // Predicated region
      $region161: #{tpu_custom_call.1} parent=5 // pred_check
        %p3899 = pneg %p3898
      $region162: #{tpu_custom_call.1} parent=5 // pred_check_branch
        %3901 = sbr.rel (%p3899) target = $region164
      $region163: #{tpu_custom_call.1} parent=5 // pred_region
        %s3902 = ssub.s32 %s55, 2
        // Predicated region
        $region165: #{tpu_custom_call.1} parent=163 // pred_check
          %p3903 = pneg %p611
        $region166: #{tpu_custom_call.1} parent=163 // pred_check_branch
          %3905 = sbr.rel (%p3903) target = $region168
        $region167: #{tpu_custom_call.1} parent=163 // pred_region
          %s3906 = sand.u32 %s596, 1
          %s3907 = scalar_lea.sflag [#allocation5], %s3906
          %s3908 = sand.u32 %s596, 1
          %s3909 = smul.addr %s3908, 8
          %s3910 = scalar_lea.vmem [#allocation23], %s3909
          %3911 = dma.done %s3907, 128
        $region168: #{tpu_custom_call.1} parent=163 // pred_fallthru
          _
        // Predicated region
        $region169: #{tpu_custom_call.1} parent=163 // pred_check
          %p3912 = pneg %p639
        $region170: #{tpu_custom_call.1} parent=163 // pred_check_branch
          %3914 = sbr.rel (%p3912) target = $region172
        $region171: #{tpu_custom_call.1} parent=163 // pred_region
          %s3915 = sand.u32 %s624, 1
          %s3916 = scalar_lea.sflag [#allocation25], %s3915
          %s3917 = sand.u32 %s624, 1
          %s3918 = smul.addr %s3917, 8
          %s3919 = scalar_lea.vmem [#allocation24], %s3918
          %3920 = dma.done %s3916, 128
        $region172: #{tpu_custom_call.1} parent=163 // pred_fallthru
          _
      $region164: #{tpu_custom_call.1} parent=5 // pred_fallthru
        _
    $region6: #{tpu_custom_call.1} parent=1 // loop_footer
      %s59 = sadd.s32 1, %s55
    $region7: #{tpu_custom_call.1} parent=1 // loop_footer_branch
      %54 = sbr.rel target = $region3
    $region8: #{tpu_custom_call.1} parent=1 // loop_exit
      _
    %3921 = vsyncpa [#allocation4], 1
    %s3922 = scalar_lea.sflag [#allocation4], 1
    %3923 = vsyncpa %s3922, 1
    %3924 = vsyncpa [#allocation7], 1
    %s3925 = scalar_lea.sflag [#allocation7], 1
    %3926 = vsyncpa %s3925, 1
    %3927 = vsyncpa [#allocation10], 1
    %s3928 = scalar_lea.sflag [#allocation10], 1
    %3929 = vsyncpa %s3928, 1
    %3930 = vsyncpa [#allocation13], 1
    %s3931 = scalar_lea.sflag [#allocation13], 1
    %3932 = vsyncpa %s3931, 1
    %3933 = vsyncpa [#allocation16], 1
    %s3934 = scalar_lea.sflag [#allocation16], 1
    %3935 = vsyncpa %s3934, 1
    %3936 = vsyncpa [#allocation19], 1
    %s3937 = scalar_lea.sflag [#allocation19], 1
    %3938 = vsyncpa %s3937, 1
    %3939 = vsyncpa [#allocation22], 1
    %s3940 = scalar_lea.sflag [#allocation22], 1
    %3941 = vsyncpa %s3940, 1
    %3942 = vsyncpa [#allocation5], 1
    %s3943 = scalar_lea.sflag [#allocation5], 1
    %3944 = vsyncpa %s3943, 1
    %3945 = vsyncpa [#allocation25], 1
    %s3946 = scalar_lea.sflag [#allocation25], 1
    %3947 = vsyncpa %s3946, 1

</llo_original>
